<compile_context>
chip_gen: v7x
topology: tpu7x:2x2x1
jax: 0.10.0
libtpu: 0.0.40
codegen_flags: <defaults>
</compile_context>

<pallas_src>
import jax
import jax.numpy as jnp
import numpy as np
from jax.experimental import pallas as pl
from jax.experimental.pallas import tpu as pltpu


def _make_fused_kernel(h, w, cin, cout, compute_dtype):
    wp = w + 2              # padded row width (1 left + 1 right zero column)
    hwp = h * wp            # flat length of the "working" output domain
    lp = (h + 3) * wp       # flat length of padded input / scratch buffers

    def kernel(xf_ref, w1_ref, b1_ref, a1_ref, w2_ref, b2_ref, a2_ref,
               mask_ref, o_ref, yf_ref):
        # xf_ref : (1, Cin, Lp)    zero-padded input, spatially flattened
        # w1_ref : (9, Cin, Cin)   w1_ref[t, co, ci] = W1[ky, kx, ci, co]
        # w2_ref : (9, Cout, Cin)
        # b*_ref / a*_ref : (C, 1) per-channel bias / PReLU slope (f32)
        # mask_ref : (1, HWp)      1.0 on the W valid columns of each row
        # o_ref  : (1, Cout, HWp)  lane-dense output (2 junk pad cols per row)
        # yf_ref : (Cin, Lp)       VMEM scratch: re-padded intermediate

        def conv3x3(src, w_ref, b_ref, nco):
            # src(off) -> (Cin, HWp) tile shifted by `off` lanes in flat space.
            # Bias-initialised f32 accumulator; 9 MXU matmuls, one per tap.
            acc = jnp.broadcast_to(b_ref[...], (nco, hwp)).astype(jnp.float32)
            for ky in range(3):
                for kx in range(3):
                    t = ky * 3 + kx
                    off = ky * wp + kx          # static lane offset
                    taps = src(off)
                    lhs = w_ref[t]
                    acc = acc + jnp.dot(lhs, taps,
                                        preferred_element_type=jnp.float32)
            return acc

        def prelu(v, a_ref):
            return jnp.where(v >= 0.0, v, a_ref[...] * v)

        # ---- stage 1: conv_1 (3x3, pad=1) + PReLU, channels-first ----
        acc1 = conv3x3(lambda off: xf_ref[0, :, off:off + hwp],
                       w1_ref, b1_ref, cin)
        y = prelu(acc1, a1_ref)
        # Zero the 2 junk columns of each row, then re-pad into the same flat
        # layout as the input (top row + left column of zeros, zero tail rows).
        y = (y * mask_ref[...]).astype(compute_dtype)
        yf_ref[...] = jnp.concatenate(
            [jnp.zeros((cin, wp + 1), compute_dtype),
             y,
             jnp.zeros((cin, 2 * wp - 1), compute_dtype)], axis=1)

        # ---- stage 2: conv_2 (3x3, pad=1) + PReLU, lane-dense output ----
        acc2 = conv3x3(lambda off: yf_ref[:, off:off + hwp],
                       w2_ref, b2_ref, cout)
        z = prelu(acc2, a2_ref)
        o_ref[0] = z.astype(o_ref.dtype)

    return kernel


def output_block_forward(x_nchw, params, compute_dtype=jnp.float32):
    """OutputBlock.forward — NCHW in, NCHW out, single fused Pallas kernel."""
    n, cin, h, w = x_nchw.shape
    cout = params["w2"].shape[-1]
    wp = w + 2
    hwp = h * wp
    lp = (h + 3) * wp

    # Single cheap pad+flatten pass: 1 top / 2 bottom / 1 left / 1 right zeros
    # (the extra bottom row keeps the last tap's flat slice in bounds).
    xf = jnp.pad(x_nchw, ((0, 0), (0, 0), (1, 2), (1, 1))).reshape(n, cin, lp)
    xf = xf.astype(compute_dtype)

    # Per-tap transposed weights: w?t[t, co, ci] = W[ky, kx, ci, co].
    w1t = jnp.transpose(params["w1"].reshape(9, cin, cin), (0, 2, 1))
    w2t = jnp.transpose(params["w2"].reshape(9, cin, cout), (0, 2, 1))
    w1t = w1t.astype(compute_dtype)
    w2t = w2t.astype(compute_dtype)
    b1 = params["b1"].reshape(cin, 1).astype(jnp.float32)
    a1 = params["a1"].reshape(cin, 1).astype(jnp.float32)
    b2 = params["b2"].reshape(cout, 1).astype(jnp.float32)
    a2 = params["a2"].reshape(cout, 1).astype(jnp.float32)
    mask = (jnp.arange(hwp, dtype=jnp.int32) % wp < w
            ).astype(jnp.float32).reshape(1, hwp)

    kernel = _make_fused_kernel(h, w, cin, cout, compute_dtype)

    out_flat = pl.pallas_call(
        kernel,
        out_shape=jax.ShapeDtypeStruct((n, cout, hwp), jnp.float32),
        grid=(n,),
        in_specs=[
            pl.BlockSpec((1, cin, lp), lambda i: (i, 0, 0)),     # padded input
            pl.BlockSpec((9, cin, cin), lambda i: (0, 0, 0)),    # W1^T per tap
            pl.BlockSpec((cin, 1), lambda i: (0, 0)),            # b1
            pl.BlockSpec((cin, 1), lambda i: (0, 0)),            # alpha1
            pl.BlockSpec((9, cout, cin), lambda i: (0, 0, 0)),   # W2^T per tap
            pl.BlockSpec((cout, 1), lambda i: (0, 0)),           # b2
            pl.BlockSpec((cout, 1), lambda i: (0, 0)),            # alpha2
            pl.BlockSpec((1, hwp), lambda i: (0, 0)),            # valid-col mask
        ],
        out_specs=pl.BlockSpec((1, cout, hwp), lambda i: (i, 0, 0)),
        scratch_shapes=[pltpu.VMEM((cin, lp), compute_dtype)],
        compiler_params=pltpu.CompilerParams(
            dimension_semantics=("parallel",)),
    )(xf, w1t, b1, a1, w2t, b2, a2, mask)

    # (N, Cout, H*Wp) -> (N, Cout, H, W): drop the 2 padded columns per row.
    return out_flat.reshape(n, cout, h, wp)[:, :, :, :w]


def init_params(key, in_channels, out_channels):
    # Deterministic synthetic parameters (shapes from nn.Conv2d / nn.PReLU).
    # Conv weights stored as (kh, kw, cin, cout) == transpose of torch's
    # (cout, cin, kh, kw).
    k1, k2, k3, k4, k5, k6 = jax.random.split(key, 6)
    fan = in_channels * 9
    w1 = jax.random.uniform(k1, (3, 3, in_channels, in_channels),
                            jnp.float32, -1.0, 1.0) / np.sqrt(fan)
    b1 = jax.random.uniform(k2, (in_channels,), jnp.float32, -1.0, 1.0) / np.sqrt(fan)
    w2 = jax.random.uniform(k3, (3, 3, in_channels, out_channels),
                            jnp.float32, -1.0, 1.0) / np.sqrt(fan)
    b2 = jax.random.uniform(k4, (out_channels,), jnp.float32, -1.0, 1.0) / np.sqrt(fan)
    # PReLU slopes (PyTorch default init is 0.25; perturbed so the test is nontrivial)
    a1 = 0.25 + 0.1 * jax.random.normal(k5, (in_channels,), jnp.float32)
    a2 = 0.25 + 0.1 * jax.random.normal(k6, (out_channels,), jnp.float32)
    return dict(w1=w1, b1=b1, a1=a1, w2=w2, b2=b2, a2=a2)


def _reference(x_nchw, params):
    # Pure-JAX reference of the PyTorch forward, used only for verification.
    def conv(x, w, b):
        return jax.lax.conv_general_dilated(
            x, w, window_strides=(1, 1), padding=((1, 1), (1, 1)),
            dimension_numbers=("NCHW", "HWIO", "NCHW")) + b[None, :, None, None]

    def prelu(x, a):
        a = a[None, :, None, None]
        return jnp.maximum(x, 0.0) + a * jnp.minimum(x, 0.0)

    y = prelu(conv(x_nchw, params["w1"], params["b1"]), params["a1"])
    return prelu(conv(y, params["w2"], params["b2"]), params["a2"])


if __name__ == "__main__":
    key = jax.random.PRNGKey(0)
    kx_, kp_ = jax.random.split(key)
    N, Cin, Cout, H, W = 2, 4, 3, 16, 16
    x = jax.random.normal(kx_, (N, Cin, H, W), jnp.float32)
    params = init_params(kp_, Cin, Cout)

    out = jax.block_until_ready(output_block_forward(x, params))
    ref = _reference(x, params)
    assert out.shape == (N, Cout, H, W)
    np.testing.assert_allclose(np.asarray(out), np.asarray(ref),
                               rtol=1e-4, atol=1e-4)
    print("KERNEL_OK")
</pallas_src>

<mosaic_0001>
module attributes {stable_mosaic.version = 11 : i64} {
  func.func @kernel(%arg0: i32, %arg1: memref<1x4x342xf32, #tpu.memory_space<vmem>>, %arg2: memref<9x4x4xf32, #tpu.memory_space<vmem>>, %arg3: memref<4x1xf32, #tpu.memory_space<vmem>>, %arg4: memref<4x1xf32, #tpu.memory_space<vmem>>, %arg5: memref<9x3x4xf32, #tpu.memory_space<vmem>>, %arg6: memref<3x1xf32, #tpu.memory_space<vmem>>, %arg7: memref<3x1xf32, #tpu.memory_space<vmem>>, %arg8: memref<1x288xf32, #tpu.memory_space<vmem>>, %arg9: memref<1x3x288xf32, #tpu.memory_space<vmem>>, %arg10: memref<4x342xf32, #tpu.memory_space<vmem>>) attributes {dimension_semantics = [#tpu.dimension_semantics<parallel>], iteration_bounds = array<i64: 2>, scalar_prefetch = 0 : i64, scratch_operands = 1 : i64, tpu.core_type = #tpu.core_type<tc>, window_params = [{transform_indices = @transform_0, window_bounds = array<i64: 1, 4, 342>}, {pipeline_mode = #tpu.pipeline_mode<synchronous>, transform_indices = @transform_1, window_bounds = array<i64: 9, 4, 4>}, {pipeline_mode = #tpu.pipeline_mode<synchronous>, transform_indices = @transform_2, window_bounds = array<i64: 4, 1>}, {pipeline_mode = #tpu.pipeline_mode<synchronous>, transform_indices = @transform_3, window_bounds = array<i64: 4, 1>}, {pipeline_mode = #tpu.pipeline_mode<synchronous>, transform_indices = @transform_4, window_bounds = array<i64: 9, 3, 4>}, {pipeline_mode = #tpu.pipeline_mode<synchronous>, transform_indices = @transform_5, window_bounds = array<i64: 3, 1>}, {pipeline_mode = #tpu.pipeline_mode<synchronous>, transform_indices = @transform_6, window_bounds = array<i64: 3, 1>}, {pipeline_mode = #tpu.pipeline_mode<synchronous>, transform_indices = @transform_7, window_bounds = array<i64: 1, 288>}, {transform_indices = @transform_8, window_bounds = array<i64: 1, 3, 288>}]} {
    %c0 = arith.constant 0 : index
    %c0_0 = arith.constant 0 : index
    %0 = vector.load %arg3[%c0, %c0_0] : memref<4x1xf32, #tpu.memory_space<vmem>>, vector<4x1xf32>
    %1 = vector.shape_cast %0 : vector<4x1xf32> to vector<4x1xf32>
    %2 = vector.broadcast %1 : vector<4x1xf32> to vector<4x288xf32>
    %c0_1 = arith.constant 0 : index
    %c0_2 = arith.constant 0 : index
    %c0_3 = arith.constant 0 : index
    %3 = vector.load %arg1[%c0_1, %c0_2, %c0_3] : memref<1x4x342xf32, #tpu.memory_space<vmem>>, vector<1x4x288xf32>
    %4 = vector.shape_cast %3 : vector<1x4x288xf32> to vector<4x288xf32>
    %c0_4 = arith.constant 0 : index
    %c0_5 = arith.constant 0 : index
    %c0_6 = arith.constant 0 : index
    %5 = vector.load %arg2[%c0_4, %c0_5, %c0_6] : memref<9x4x4xf32, #tpu.memory_space<vmem>>, vector<1x4x4xf32>
    %6 = vector.shape_cast %5 : vector<1x4x4xf32> to vector<4x4xf32>
    %cst = arith.constant dense<0.000000e+00> : vector<4x288xf32>
    %7 = tpu.matmul %6, %4, %cst {dimension_numbers = #tpu.dot_dimension_numbers<[1], [0], [0], [1], [0, 0, 1, 1], [], []>} : vector<4x4xf32>, vector<4x288xf32>, vector<4x288xf32> -> vector<4x288xf32>
    %8 = arith.addf %2, %7 : vector<4x288xf32>
    %c0_7 = arith.constant 0 : index
    %c0_8 = arith.constant 0 : index
    %c1 = arith.constant 1 : index
    %9 = vector.load %arg1[%c0_7, %c0_8, %c1] : memref<1x4x342xf32, #tpu.memory_space<vmem>>, vector<1x4x288xf32>
    %10 = vector.shape_cast %9 : vector<1x4x288xf32> to vector<4x288xf32>
    %c1_9 = arith.constant 1 : index
    %c0_10 = arith.constant 0 : index
    %c0_11 = arith.constant 0 : index
    %11 = vector.load %arg2[%c1_9, %c0_10, %c0_11] : memref<9x4x4xf32, #tpu.memory_space<vmem>>, vector<1x4x4xf32>
    %12 = vector.shape_cast %11 : vector<1x4x4xf32> to vector<4x4xf32>
    %cst_12 = arith.constant dense<0.000000e+00> : vector<4x288xf32>
    %13 = tpu.matmul %12, %10, %cst_12 {dimension_numbers = #tpu.dot_dimension_numbers<[1], [0], [0], [1], [0, 0, 1, 1], [], []>} : vector<4x4xf32>, vector<4x288xf32>, vector<4x288xf32> -> vector<4x288xf32>
    %14 = arith.addf %8, %13 : vector<4x288xf32>
    %c0_13 = arith.constant 0 : index
    %c0_14 = arith.constant 0 : index
    %c2 = arith.constant 2 : index
    %15 = vector.load %arg1[%c0_13, %c0_14, %c2] : memref<1x4x342xf32, #tpu.memory_space<vmem>>, vector<1x4x288xf32>
    %16 = vector.shape_cast %15 : vector<1x4x288xf32> to vector<4x288xf32>
    %c2_15 = arith.constant 2 : index
    %c0_16 = arith.constant 0 : index
    %c0_17 = arith.constant 0 : index
    %17 = vector.load %arg2[%c2_15, %c0_16, %c0_17] : memref<9x4x4xf32, #tpu.memory_space<vmem>>, vector<1x4x4xf32>
    %18 = vector.shape_cast %17 : vector<1x4x4xf32> to vector<4x4xf32>
    %cst_18 = arith.constant dense<0.000000e+00> : vector<4x288xf32>
    %19 = tpu.matmul %18, %16, %cst_18 {dimension_numbers = #tpu.dot_dimension_numbers<[1], [0], [0], [1], [0, 0, 1, 1], [], []>} : vector<4x4xf32>, vector<4x288xf32>, vector<4x288xf32> -> vector<4x288xf32>
    %20 = arith.addf %14, %19 : vector<4x288xf32>
    %c0_19 = arith.constant 0 : index
    %c0_20 = arith.constant 0 : index
    %c18 = arith.constant 18 : index
    %21 = vector.load %arg1[%c0_19, %c0_20, %c18] : memref<1x4x342xf32, #tpu.memory_space<vmem>>, vector<1x4x288xf32>
    %22 = vector.shape_cast %21 : vector<1x4x288xf32> to vector<4x288xf32>
    %c3 = arith.constant 3 : index
    %c0_21 = arith.constant 0 : index
    %c0_22 = arith.constant 0 : index
    %23 = vector.load %arg2[%c3, %c0_21, %c0_22] : memref<9x4x4xf32, #tpu.memory_space<vmem>>, vector<1x4x4xf32>
    %24 = vector.shape_cast %23 : vector<1x4x4xf32> to vector<4x4xf32>
    %cst_23 = arith.constant dense<0.000000e+00> : vector<4x288xf32>
    %25 = tpu.matmul %24, %22, %cst_23 {dimension_numbers = #tpu.dot_dimension_numbers<[1], [0], [0], [1], [0, 0, 1, 1], [], []>} : vector<4x4xf32>, vector<4x288xf32>, vector<4x288xf32> -> vector<4x288xf32>
    %26 = arith.addf %20, %25 : vector<4x288xf32>
    %c0_24 = arith.constant 0 : index
    %c0_25 = arith.constant 0 : index
    %c19 = arith.constant 19 : index
    %27 = vector.load %arg1[%c0_24, %c0_25, %c19] : memref<1x4x342xf32, #tpu.memory_space<vmem>>, vector<1x4x288xf32>
    %28 = vector.shape_cast %27 : vector<1x4x288xf32> to vector<4x288xf32>
    %c4 = arith.constant 4 : index
    %c0_26 = arith.constant 0 : index
    %c0_27 = arith.constant 0 : index
    %29 = vector.load %arg2[%c4, %c0_26, %c0_27] : memref<9x4x4xf32, #tpu.memory_space<vmem>>, vector<1x4x4xf32>
    %30 = vector.shape_cast %29 : vector<1x4x4xf32> to vector<4x4xf32>
    %cst_28 = arith.constant dense<0.000000e+00> : vector<4x288xf32>
    %31 = tpu.matmul %30, %28, %cst_28 {dimension_numbers = #tpu.dot_dimension_numbers<[1], [0], [0], [1], [0, 0, 1, 1], [], []>} : vector<4x4xf32>, vector<4x288xf32>, vector<4x288xf32> -> vector<4x288xf32>
    %32 = arith.addf %26, %31 : vector<4x288xf32>
    %c0_29 = arith.constant 0 : index
    %c0_30 = arith.constant 0 : index
    %c20 = arith.constant 20 : index
    %33 = vector.load %arg1[%c0_29, %c0_30, %c20] : memref<1x4x342xf32, #tpu.memory_space<vmem>>, vector<1x4x288xf32>
    %34 = vector.shape_cast %33 : vector<1x4x288xf32> to vector<4x288xf32>
    %c5 = arith.constant 5 : index
    %c0_31 = arith.constant 0 : index
    %c0_32 = arith.constant 0 : index
    %35 = vector.load %arg2[%c5, %c0_31, %c0_32] : memref<9x4x4xf32, #tpu.memory_space<vmem>>, vector<1x4x4xf32>
    %36 = vector.shape_cast %35 : vector<1x4x4xf32> to vector<4x4xf32>
    %cst_33 = arith.constant dense<0.000000e+00> : vector<4x288xf32>
    %37 = tpu.matmul %36, %34, %cst_33 {dimension_numbers = #tpu.dot_dimension_numbers<[1], [0], [0], [1], [0, 0, 1, 1], [], []>} : vector<4x4xf32>, vector<4x288xf32>, vector<4x288xf32> -> vector<4x288xf32>
    %38 = arith.addf %32, %37 : vector<4x288xf32>
    %c0_34 = arith.constant 0 : index
    %c0_35 = arith.constant 0 : index
    %c36 = arith.constant 36 : index
    %39 = vector.load %arg1[%c0_34, %c0_35, %c36] : memref<1x4x342xf32, #tpu.memory_space<vmem>>, vector<1x4x288xf32>
    %40 = vector.shape_cast %39 : vector<1x4x288xf32> to vector<4x288xf32>
    %c6 = arith.constant 6 : index
    %c0_36 = arith.constant 0 : index
    %c0_37 = arith.constant 0 : index
    %41 = vector.load %arg2[%c6, %c0_36, %c0_37] : memref<9x4x4xf32, #tpu.memory_space<vmem>>, vector<1x4x4xf32>
    %42 = vector.shape_cast %41 : vector<1x4x4xf32> to vector<4x4xf32>
    %cst_38 = arith.constant dense<0.000000e+00> : vector<4x288xf32>
    %43 = tpu.matmul %42, %40, %cst_38 {dimension_numbers = #tpu.dot_dimension_numbers<[1], [0], [0], [1], [0, 0, 1, 1], [], []>} : vector<4x4xf32>, vector<4x288xf32>, vector<4x288xf32> -> vector<4x288xf32>
    %44 = arith.addf %38, %43 : vector<4x288xf32>
    %c0_39 = arith.constant 0 : index
    %c0_40 = arith.constant 0 : index
    %c37 = arith.constant 37 : index
    %45 = vector.load %arg1[%c0_39, %c0_40, %c37] : memref<1x4x342xf32, #tpu.memory_space<vmem>>, vector<1x4x288xf32>
    %46 = vector.shape_cast %45 : vector<1x4x288xf32> to vector<4x288xf32>
    %c7 = arith.constant 7 : index
    %c0_41 = arith.constant 0 : index
    %c0_42 = arith.constant 0 : index
    %47 = vector.load %arg2[%c7, %c0_41, %c0_42] : memref<9x4x4xf32, #tpu.memory_space<vmem>>, vector<1x4x4xf32>
    %48 = vector.shape_cast %47 : vector<1x4x4xf32> to vector<4x4xf32>
    %cst_43 = arith.constant dense<0.000000e+00> : vector<4x288xf32>
    %49 = tpu.matmul %48, %46, %cst_43 {dimension_numbers = #tpu.dot_dimension_numbers<[1], [0], [0], [1], [0, 0, 1, 1], [], []>} : vector<4x4xf32>, vector<4x288xf32>, vector<4x288xf32> -> vector<4x288xf32>
    %50 = arith.addf %44, %49 : vector<4x288xf32>
    %c0_44 = arith.constant 0 : index
    %c0_45 = arith.constant 0 : index
    %c38 = arith.constant 38 : index
    %51 = vector.load %arg1[%c0_44, %c0_45, %c38] : memref<1x4x342xf32, #tpu.memory_space<vmem>>, vector<1x4x288xf32>
    %52 = vector.shape_cast %51 : vector<1x4x288xf32> to vector<4x288xf32>
    %c8 = arith.constant 8 : index
    %c0_46 = arith.constant 0 : index
    %c0_47 = arith.constant 0 : index
    %53 = vector.load %arg2[%c8, %c0_46, %c0_47] : memref<9x4x4xf32, #tpu.memory_space<vmem>>, vector<1x4x4xf32>
    %54 = vector.shape_cast %53 : vector<1x4x4xf32> to vector<4x4xf32>
    %cst_48 = arith.constant dense<0.000000e+00> : vector<4x288xf32>
    %55 = tpu.matmul %54, %52, %cst_48 {dimension_numbers = #tpu.dot_dimension_numbers<[1], [0], [0], [1], [0, 0, 1, 1], [], []>} : vector<4x4xf32>, vector<4x288xf32>, vector<4x288xf32> -> vector<4x288xf32>
    %56 = arith.addf %50, %55 : vector<4x288xf32>
    %cst_49 = arith.constant 0.000000e+00 : f32
    %57 = vector.broadcast %cst_49 : f32 to vector<4x288xf32>
    %58 = arith.cmpf oge, %56, %57 : vector<4x288xf32>
    %c0_50 = arith.constant 0 : index
    %c0_51 = arith.constant 0 : index
    %59 = vector.load %arg4[%c0_50, %c0_51] : memref<4x1xf32, #tpu.memory_space<vmem>>, vector<4x1xf32>
    %60 = vector.broadcast %59 : vector<4x1xf32> to vector<4x288xf32>
    %61 = arith.mulf %60, %56 : vector<4x288xf32>
    %62 = arith.select %58, %56, %61 : vector<4x288xi1>, vector<4x288xf32>
    %c0_52 = arith.constant 0 : index
    %c0_53 = arith.constant 0 : index
    %63 = vector.load %arg8[%c0_52, %c0_53] : memref<1x288xf32, #tpu.memory_space<vmem>>, vector<1x288xf32>
    %64 = vector.broadcast %63 : vector<1x288xf32> to vector<4x288xf32>
    %65 = arith.mulf %62, %64 : vector<4x288xf32>
    %cst_54 = arith.constant 0.000000e+00 : f32
    %66 = vector.broadcast %cst_54 : f32 to vector<4x19xf32>
    %cst_55 = arith.constant 0.000000e+00 : f32
    %67 = vector.broadcast %cst_55 : f32 to vector<4x35xf32>
    %68 = tpu.concatenate %66, %65, %67 in 1 : vector<4x19xf32>, vector<4x288xf32>, vector<4x35xf32> -> vector<4x342xf32>
    %c0_56 = arith.constant 0 : index
    %c0_57 = arith.constant 0 : index
    %69 = vector.load %arg10[%c0_56, %c0_57] : memref<4x342xf32, #tpu.memory_space<vmem>>, vector<4x342xf32>
    tpu.vector_store %arg10[%c0_56, %c0_57], %68 {strides = array<i32>} : memref<4x342xf32, #tpu.memory_space<vmem>>, vector<4x342xf32>,
    %c0_58 = arith.constant 0 : index
    %c0_59 = arith.constant 0 : index
    %70 = vector.load %arg6[%c0_58, %c0_59] : memref<3x1xf32, #tpu.memory_space<vmem>>, vector<3x1xf32>
    %71 = vector.shape_cast %70 : vector<3x1xf32> to vector<3x1xf32>
    %72 = vector.broadcast %71 : vector<3x1xf32> to vector<3x288xf32>
    %c0_60 = arith.constant 0 : index
    %c0_61 = arith.constant 0 : index
    %73 = vector.load %arg10[%c0_60, %c0_61] : memref<4x342xf32, #tpu.memory_space<vmem>>, vector<4x288xf32>
    %c0_62 = arith.constant 0 : index
    %c0_63 = arith.constant 0 : index
    %c0_64 = arith.constant 0 : index
    %74 = vector.load %arg5[%c0_62, %c0_63, %c0_64] : memref<9x3x4xf32, #tpu.memory_space<vmem>>, vector<1x3x4xf32>
    %75 = vector.shape_cast %74 : vector<1x3x4xf32> to vector<3x4xf32>
    %cst_65 = arith.constant dense<0.000000e+00> : vector<3x288xf32>
    %76 = tpu.matmul %75, %73, %cst_65 {dimension_numbers = #tpu.dot_dimension_numbers<[1], [0], [0], [1], [0, 0, 1, 1], [], []>} : vector<3x4xf32>, vector<4x288xf32>, vector<3x288xf32> -> vector<3x288xf32>
    %77 = arith.addf %72, %76 : vector<3x288xf32>
    %c0_66 = arith.constant 0 : index
    %c1_67 = arith.constant 1 : index
    %78 = vector.load %arg10[%c0_66, %c1_67] : memref<4x342xf32, #tpu.memory_space<vmem>>, vector<4x288xf32>
    %c1_68 = arith.constant 1 : index
    %c0_69 = arith.constant 0 : index
    %c0_70 = arith.constant 0 : index
    %79 = vector.load %arg5[%c1_68, %c0_69, %c0_70] : memref<9x3x4xf32, #tpu.memory_space<vmem>>, vector<1x3x4xf32>
    %80 = vector.shape_cast %79 : vector<1x3x4xf32> to vector<3x4xf32>
    %cst_71 = arith.constant dense<0.000000e+00> : vector<3x288xf32>
    %81 = tpu.matmul %80, %78, %cst_71 {dimension_numbers = #tpu.dot_dimension_numbers<[1], [0], [0], [1], [0, 0, 1, 1], [], []>} : vector<3x4xf32>, vector<4x288xf32>, vector<3x288xf32> -> vector<3x288xf32>
    %82 = arith.addf %77, %81 : vector<3x288xf32>
    %c0_72 = arith.constant 0 : index
    %c2_73 = arith.constant 2 : index
    %83 = vector.load %arg10[%c0_72, %c2_73] : memref<4x342xf32, #tpu.memory_space<vmem>>, vector<4x288xf32>
    %c2_74 = arith.constant 2 : index
    %c0_75 = arith.constant 0 : index
    %c0_76 = arith.constant 0 : index
    %84 = vector.load %arg5[%c2_74, %c0_75, %c0_76] : memref<9x3x4xf32, #tpu.memory_space<vmem>>, vector<1x3x4xf32>
    %85 = vector.shape_cast %84 : vector<1x3x4xf32> to vector<3x4xf32>
    %cst_77 = arith.constant dense<0.000000e+00> : vector<3x288xf32>
    %86 = tpu.matmul %85, %83, %cst_77 {dimension_numbers = #tpu.dot_dimension_numbers<[1], [0], [0], [1], [0, 0, 1, 1], [], []>} : vector<3x4xf32>, vector<4x288xf32>, vector<3x288xf32> -> vector<3x288xf32>
    %87 = arith.addf %82, %86 : vector<3x288xf32>
    %c0_78 = arith.constant 0 : index
    %c18_79 = arith.constant 18 : index
    %88 = vector.load %arg10[%c0_78, %c18_79] : memref<4x342xf32, #tpu.memory_space<vmem>>, vector<4x288xf32>
    %c3_80 = arith.constant 3 : index
    %c0_81 = arith.constant 0 : index
    %c0_82 = arith.constant 0 : index
    %89 = vector.load %arg5[%c3_80, %c0_81, %c0_82] : memref<9x3x4xf32, #tpu.memory_space<vmem>>, vector<1x3x4xf32>
    %90 = vector.shape_cast %89 : vector<1x3x4xf32> to vector<3x4xf32>
    %cst_83 = arith.constant dense<0.000000e+00> : vector<3x288xf32>
    %91 = tpu.matmul %90, %88, %cst_83 {dimension_numbers = #tpu.dot_dimension_numbers<[1], [0], [0], [1], [0, 0, 1, 1], [], []>} : vector<3x4xf32>, vector<4x288xf32>, vector<3x288xf32> -> vector<3x288xf32>
    %92 = arith.addf %87, %91 : vector<3x288xf32>
    %c0_84 = arith.constant 0 : index
    %c19_85 = arith.constant 19 : index
    %93 = vector.load %arg10[%c0_84, %c19_85] : memref<4x342xf32, #tpu.memory_space<vmem>>, vector<4x288xf32>
    %c4_86 = arith.constant 4 : index
    %c0_87 = arith.constant 0 : index
    %c0_88 = arith.constant 0 : index
    %94 = vector.load %arg5[%c4_86, %c0_87, %c0_88] : memref<9x3x4xf32, #tpu.memory_space<vmem>>, vector<1x3x4xf32>
    %95 = vector.shape_cast %94 : vector<1x3x4xf32> to vector<3x4xf32>
    %cst_89 = arith.constant dense<0.000000e+00> : vector<3x288xf32>
    %96 = tpu.matmul %95, %93, %cst_89 {dimension_numbers = #tpu.dot_dimension_numbers<[1], [0], [0], [1], [0, 0, 1, 1], [], []>} : vector<3x4xf32>, vector<4x288xf32>, vector<3x288xf32> -> vector<3x288xf32>
    %97 = arith.addf %92, %96 : vector<3x288xf32>
    %c0_90 = arith.constant 0 : index
    %c20_91 = arith.constant 20 : index
    %98 = vector.load %arg10[%c0_90, %c20_91] : memref<4x342xf32, #tpu.memory_space<vmem>>, vector<4x288xf32>
    %c5_92 = arith.constant 5 : index
    %c0_93 = arith.constant 0 : index
    %c0_94 = arith.constant 0 : index
    %99 = vector.load %arg5[%c5_92, %c0_93, %c0_94] : memref<9x3x4xf32, #tpu.memory_space<vmem>>, vector<1x3x4xf32>
    %100 = vector.shape_cast %99 : vector<1x3x4xf32> to vector<3x4xf32>
    %cst_95 = arith.constant dense<0.000000e+00> : vector<3x288xf32>
    %101 = tpu.matmul %100, %98, %cst_95 {dimension_numbers = #tpu.dot_dimension_numbers<[1], [0], [0], [1], [0, 0, 1, 1], [], []>} : vector<3x4xf32>, vector<4x288xf32>, vector<3x288xf32> -> vector<3x288xf32>
    %102 = arith.addf %97, %101 : vector<3x288xf32>
    %c0_96 = arith.constant 0 : index
    %c36_97 = arith.constant 36 : index
    %103 = vector.load %arg10[%c0_96, %c36_97] : memref<4x342xf32, #tpu.memory_space<vmem>>, vector<4x288xf32>
    %c6_98 = arith.constant 6 : index
    %c0_99 = arith.constant 0 : index
    %c0_100 = arith.constant 0 : index
    %104 = vector.load %arg5[%c6_98, %c0_99, %c0_100] : memref<9x3x4xf32, #tpu.memory_space<vmem>>, vector<1x3x4xf32>
    %105 = vector.shape_cast %104 : vector<1x3x4xf32> to vector<3x4xf32>
    %cst_101 = arith.constant dense<0.000000e+00> : vector<3x288xf32>
    %106 = tpu.matmul %105, %103, %cst_101 {dimension_numbers = #tpu.dot_dimension_numbers<[1], [0], [0], [1], [0, 0, 1, 1], [], []>} : vector<3x4xf32>, vector<4x288xf32>, vector<3x288xf32> -> vector<3x288xf32>
    %107 = arith.addf %102, %106 : vector<3x288xf32>
    %c0_102 = arith.constant 0 : index
    %c37_103 = arith.constant 37 : index
    %108 = vector.load %arg10[%c0_102, %c37_103] : memref<4x342xf32, #tpu.memory_space<vmem>>, vector<4x288xf32>
    %c7_104 = arith.constant 7 : index
    %c0_105 = arith.constant 0 : index
    %c0_106 = arith.constant 0 : index
    %109 = vector.load %arg5[%c7_104, %c0_105, %c0_106] : memref<9x3x4xf32, #tpu.memory_space<vmem>>, vector<1x3x4xf32>
    %110 = vector.shape_cast %109 : vector<1x3x4xf32> to vector<3x4xf32>
    %cst_107 = arith.constant dense<0.000000e+00> : vector<3x288xf32>
    %111 = tpu.matmul %110, %108, %cst_107 {dimension_numbers = #tpu.dot_dimension_numbers<[1], [0], [0], [1], [0, 0, 1, 1], [], []>} : vector<3x4xf32>, vector<4x288xf32>, vector<3x288xf32> -> vector<3x288xf32>
    %112 = arith.addf %107, %111 : vector<3x288xf32>
    %c0_108 = arith.constant 0 : index
    %c38_109 = arith.constant 38 : index
    %113 = vector.load %arg10[%c0_108, %c38_109] : memref<4x342xf32, #tpu.memory_space<vmem>>, vector<4x288xf32>
    %c8_110 = arith.constant 8 : index
    %c0_111 = arith.constant 0 : index
    %c0_112 = arith.constant 0 : index
    %114 = vector.load %arg5[%c8_110, %c0_111, %c0_112] : memref<9x3x4xf32, #tpu.memory_space<vmem>>, vector<1x3x4xf32>
    %115 = vector.shape_cast %114 : vector<1x3x4xf32> to vector<3x4xf32>
    %cst_113 = arith.constant dense<0.000000e+00> : vector<3x288xf32>
    %116 = tpu.matmul %115, %113, %cst_113 {dimension_numbers = #tpu.dot_dimension_numbers<[1], [0], [0], [1], [0, 0, 1, 1], [], []>} : vector<3x4xf32>, vector<4x288xf32>, vector<3x288xf32> -> vector<3x288xf32>
    %117 = arith.addf %112, %116 : vector<3x288xf32>
    %cst_114 = arith.constant 0.000000e+00 : f32
    %118 = vector.broadcast %cst_114 : f32 to vector<3x288xf32>
    %119 = arith.cmpf oge, %117, %118 : vector<3x288xf32>
    %c0_115 = arith.constant 0 : index
    %c0_116 = arith.constant 0 : index
    %120 = vector.load %arg7[%c0_115, %c0_116] : memref<3x1xf32, #tpu.memory_space<vmem>>, vector<3x1xf32>
    %121 = vector.broadcast %120 : vector<3x1xf32> to vector<3x288xf32>
    %122 = arith.mulf %121, %117 : vector<3x288xf32>
    %123 = arith.select %119, %117, %122 : vector<3x288xi1>, vector<3x288xf32>
    %c0_117 = arith.constant 0 : index
    %c0_118 = arith.constant 0 : index
    %c0_119 = arith.constant 0 : index
    %124 = vector.load %arg9[%c0_117, %c0_118, %c0_119] : memref<1x3x288xf32, #tpu.memory_space<vmem>>, vector<1x3x288xf32>
    %125 = vector.shape_cast %124 : vector<1x3x288xf32> to vector<3x288xf32>
    %126 = vector.shape_cast %123 : vector<3x288xf32> to vector<1x3x288xf32>
    tpu.vector_store %arg9[%c0_117, %c0_118, %c0_119], %126 {strides = array<i32>} : memref<1x3x288xf32, #tpu.memory_space<vmem>>, vector<1x3x288xf32>,
    return
  }
  func.func @transform_0(%arg0: i32) -> (i32, i32, i32) {
    %c0_i32 = arith.constant 0 : i32
    %c0_i32_0 = arith.constant 0 : i32
    %c0_i32_1 = arith.constant 0 : i32
    return %arg0, %c0_i32, %c0_i32_0 : i32, i32, i32
  }
  func.func @transform_1(%arg0: i32) -> (i32, i32, i32) {
    %c0_i32 = arith.constant 0 : i32
    %c0_i32_0 = arith.constant 0 : i32
    %c0_i32_1 = arith.constant 0 : i32
    %c0_i32_2 = arith.constant 0 : i32
    return %c0_i32, %c0_i32_0, %c0_i32_1 : i32, i32, i32
  }
  func.func @transform_2(%arg0: i32) -> (i32, i32) {
    %c0_i32 = arith.constant 0 : i32
    %c0_i32_0 = arith.constant 0 : i32
    %c0_i32_1 = arith.constant 0 : i32
    return %c0_i32, %c0_i32_0 : i32, i32
  }
  func.func @transform_3(%arg0: i32) -> (i32, i32) {
    %c0_i32 = arith.constant 0 : i32
    %c0_i32_0 = arith.constant 0 : i32
    %c0_i32_1 = arith.constant 0 : i32
    return %c0_i32, %c0_i32_0 : i32, i32
  }
  func.func @transform_4(%arg0: i32) -> (i32, i32, i32) {
    %c0_i32 = arith.constant 0 : i32
    %c0_i32_0 = arith.constant 0 : i32
    %c0_i32_1 = arith.constant 0 : i32
    %c0_i32_2 = arith.constant 0 : i32
    return %c0_i32, %c0_i32_0, %c0_i32_1 : i32, i32, i32
  }
  func.func @transform_5(%arg0: i32) -> (i32, i32) {
    %c0_i32 = arith.constant 0 : i32
    %c0_i32_0 = arith.constant 0 : i32
    %c0_i32_1 = arith.constant 0 : i32
    return %c0_i32, %c0_i32_0 : i32, i32
  }
  func.func @transform_6(%arg0: i32) -> (i32, i32) {
    %c0_i32 = arith.constant 0 : i32
    %c0_i32_0 = arith.constant 0 : i32
    %c0_i32_1 = arith.constant 0 : i32
    return %c0_i32, %c0_i32_0 : i32, i32
  }
  func.func @transform_7(%arg0: i32) -> (i32, i32) {
    %c0_i32 = arith.constant 0 : i32
    %c0_i32_0 = arith.constant 0 : i32
    %c0_i32_1 = arith.constant 0 : i32
    return %c0_i32, %c0_i32_0 : i32, i32
  }
  func.func @transform_8(%arg0: i32) -> (i32, i32, i32) {
    %c0_i32 = arith.constant 0 : i32
    %c0_i32_0 = arith.constant 0 : i32
    %c0_i32_1 = arith.constant 0 : i32
    return %arg0, %c0_i32, %c0_i32_0 : i32, i32, i32
  }
}

</mosaic_0001>

<llo_original>
// kernel: tpu_custom_call.1
$region0: #{tpu_custom_call.1}
  #allocation0 [shape = 'u32[]', space=smem, size = 0x4, offset = 0x4, fixed_abs, tag = 'smem constant byte address 0x4 - core index']
  #allocation1 [shape = 'u32[144,128]{1,0:T(1,128)}', space=vmem, size = 0x12000, scoped, tag = 'internal scratch']
  #allocation2 [shape = 'f32[4,342]{1,0:T(4,128)}', space=vmem, size = 0x1800, scoped, tag = 'scratch operand']
  %s0 = inlined_call_operand.vmem [shape: f32[2,4,342], index: 0, kind: input, shape index: {}]
  %s1 = inlined_call_operand.vmem [shape: f32[9,4,4], index: 1, kind: input, shape index: {}]
  %s2 = inlined_call_operand.vmem [shape: f32[4,1], index: 2, kind: input, shape index: {}]
  %s3 = inlined_call_operand.vmem [shape: f32[4,1], index: 3, kind: input, shape index: {}]
  %s4 = inlined_call_operand.vmem [shape: f32[9,3,4], index: 4, kind: input, shape index: {}]
  %s5 = inlined_call_operand.vmem [shape: f32[3,1], index: 5, kind: input, shape index: {}]
  %s6 = inlined_call_operand.vmem [shape: f32[3,1], index: 6, kind: input, shape index: {}]
  %s7 = inlined_call_operand.vmem [shape: f32[1,288], index: 7, kind: input, shape index: {}]
  %s8 = inlined_call_operand.vmem [shape: f32[2,3,288], index: 8, kind: output, shape index: {}]
  %s9 = sld [smem:[#allocation0]]
  $region65: #{tpu_custom_call.1} parent=0
    _
  %s11 = ssub.s32 1, %s9
  %s12 = scalar_select 0, %s11, %s9
  loop: start=0, step=1, limit=4
  $region2: #{tpu_custom_call.1} parent=0 // loop_pre_header
    _
  $region3: #{tpu_custom_call.1} parent=0 // loop_header
    %s14 = sphi 0, %s18
    %p15 = scmp.ge.s32.totalorder %s14, 4
    %s24 = sphi 0, %s26
    %s27 = sphi 0, %s24
    %s28 = sphi 0, %s27
    %s44 = sphi 0, %s28
    %s48 = sphi 0, %s48
    %s50 = sphi 0, %s48
    %s51 = sphi 0, %s50
    %s65 = sphi 0, %s51
    %s69 = sphi 0, %s69
    %s71 = sphi 0, %s69
    %s72 = sphi 0, %s71
    %s86 = sphi 0, %s72
    %s90 = sphi 0, %s90
    %s92 = sphi 0, %s90
    %s93 = sphi 0, %s92
    %s107 = sphi 0, %s93
    %s111 = sphi 0, %s111
    %s113 = sphi 0, %s111
    %s114 = sphi 0, %s113
    %s128 = sphi 0, %s114
    %s132 = sphi 0, %s132
    %s134 = sphi 0, %s132
    %s135 = sphi 0, %s134
    %s149 = sphi 0, %s135
    %s153 = sphi 0, %s153
    %s155 = sphi 0, %s153
    %s156 = sphi 0, %s155
    %s170 = sphi 0, %s156
    %s174 = sphi 0, %s174
    %s176 = sphi 0, %s174
    %s177 = sphi 0, %s176
    %s191 = sphi 0, %s177
    %s197 = sphi 0, %s199
    %s200 = sphi 0, %s197
    %s201 = sphi 0, %s200
    %s217 = sphi 0, %s201
  $region4: #{tpu_custom_call.1} parent=0 // loop_header_branch
    %17 = sbr.rel (%p15) target = $region8
  $region5: #{tpu_custom_call.1} parent=0 // loop_body
    %s19 = ssub.s32 %s14, 1
    %s20 = ssub.s32 %s14, 2
    %s21 = sadd.s32 %s14, 1
    %s22 = ssub.s32 %s14, %s21
    %p23 = scmp.eq.s32.totalorder %s22, 0
    %s25 = sadd.s32 %s24, 1
    %s26 = scalar_select %p23, %s24, %s25
    %p29 = pneg %p23
    %p30 = scmp.eq.s32.totalorder %s14, 1
    %p31 = por %p29, %p30
    %p32 = scmp.ne.s32.totalorder %s24, %s27
    %p33 = scmp.eq.s32.totalorder %s14, 0
    %p34 = por %p32, %p33
    %p35 = scmp.ne.s32.totalorder %s24, %s27
    %p36 = scmp.eq.s32.totalorder %s19, 1
    %p37 = por %p35, %p36
    %p38 = scmp.ne.s32.totalorder %s27, %s28
    %p39 = scmp.eq.s32.totalorder %s19, 0
    %p40 = por %p38, %p39
    %p41 = scmp.ne.s32.totalorder %s27, %s28
    %p42 = scmp.eq.s32.totalorder %s20, 1
    %p43 = por %p41, %p42
    %p45 = scmp.ne.s32.totalorder %s28, %s44
    %p46 = scmp.eq.s32.totalorder %s20, 0
    %p47 = por %p45, %p46
    %s49 = sadd.s32 %s48, 1
    %p52 = scmp.eq.s32.totalorder %s14, 1
    %p53 = scmp.ne.s32.totalorder %s48, %s50
    %p54 = scmp.eq.s32.totalorder %s14, 0
    %p55 = por %p53, %p54
    %p56 = scmp.ne.s32.totalorder %s48, %s50
    %p57 = scmp.eq.s32.totalorder %s19, 1
    %p58 = por %p56, %p57
    %p59 = scmp.ne.s32.totalorder %s50, %s51
    %p60 = scmp.eq.s32.totalorder %s19, 0
    %p61 = por %p59, %p60
    %p62 = scmp.ne.s32.totalorder %s50, %s51
    %p63 = scmp.eq.s32.totalorder %s20, 1
    %p64 = por %p62, %p63
    %p66 = scmp.ne.s32.totalorder %s51, %s65
    %p67 = scmp.eq.s32.totalorder %s20, 0
    %p68 = por %p66, %p67
    %s70 = sadd.s32 %s69, 1
    %p73 = scmp.eq.s32.totalorder %s14, 1
    %p74 = scmp.ne.s32.totalorder %s69, %s71
    %p75 = scmp.eq.s32.totalorder %s14, 0
    %p76 = por %p74, %p75
    %p77 = scmp.ne.s32.totalorder %s69, %s71
    %p78 = scmp.eq.s32.totalorder %s19, 1
    %p79 = por %p77, %p78
    %p80 = scmp.ne.s32.totalorder %s71, %s72
    %p81 = scmp.eq.s32.totalorder %s19, 0
    %p82 = por %p80, %p81
    %p83 = scmp.ne.s32.totalorder %s71, %s72
    %p84 = scmp.eq.s32.totalorder %s20, 1
    %p85 = por %p83, %p84
    %p87 = scmp.ne.s32.totalorder %s72, %s86
    %p88 = scmp.eq.s32.totalorder %s20, 0
    %p89 = por %p87, %p88
    %s91 = sadd.s32 %s90, 1
    %p94 = scmp.eq.s32.totalorder %s14, 1
    %p95 = scmp.ne.s32.totalorder %s90, %s92
    %p96 = scmp.eq.s32.totalorder %s14, 0
    %p97 = por %p95, %p96
    %p98 = scmp.ne.s32.totalorder %s90, %s92
    %p99 = scmp.eq.s32.totalorder %s19, 1
    %p100 = por %p98, %p99
    %p101 = scmp.ne.s32.totalorder %s92, %s93
    %p102 = scmp.eq.s32.totalorder %s19, 0
    %p103 = por %p101, %p102
    %p104 = scmp.ne.s32.totalorder %s92, %s93
    %p105 = scmp.eq.s32.totalorder %s20, 1
    %p106 = por %p104, %p105
    %p108 = scmp.ne.s32.totalorder %s93, %s107
    %p109 = scmp.eq.s32.totalorder %s20, 0
    %p110 = por %p108, %p109
    %s112 = sadd.s32 %s111, 1
    %p115 = scmp.eq.s32.totalorder %s14, 1
    %p116 = scmp.ne.s32.totalorder %s111, %s113
    %p117 = scmp.eq.s32.totalorder %s14, 0
    %p118 = por %p116, %p117
    %p119 = scmp.ne.s32.totalorder %s111, %s113
    %p120 = scmp.eq.s32.totalorder %s19, 1
    %p121 = por %p119, %p120
    %p122 = scmp.ne.s32.totalorder %s113, %s114
    %p123 = scmp.eq.s32.totalorder %s19, 0
    %p124 = por %p122, %p123
    %p125 = scmp.ne.s32.totalorder %s113, %s114
    %p126 = scmp.eq.s32.totalorder %s20, 1
    %p127 = por %p125, %p126
    %p129 = scmp.ne.s32.totalorder %s114, %s128
    %p130 = scmp.eq.s32.totalorder %s20, 0
    %p131 = por %p129, %p130
    %s133 = sadd.s32 %s132, 1
    %p136 = scmp.eq.s32.totalorder %s14, 1
    %p137 = scmp.ne.s32.totalorder %s132, %s134
    %p138 = scmp.eq.s32.totalorder %s14, 0
    %p139 = por %p137, %p138
    %p140 = scmp.ne.s32.totalorder %s132, %s134
    %p141 = scmp.eq.s32.totalorder %s19, 1
    %p142 = por %p140, %p141
    %p143 = scmp.ne.s32.totalorder %s134, %s135
    %p144 = scmp.eq.s32.totalorder %s19, 0
    %p145 = por %p143, %p144
    %p146 = scmp.ne.s32.totalorder %s134, %s135
    %p147 = scmp.eq.s32.totalorder %s20, 1
    %p148 = por %p146, %p147
    %p150 = scmp.ne.s32.totalorder %s135, %s149
    %p151 = scmp.eq.s32.totalorder %s20, 0
    %p152 = por %p150, %p151
    %s154 = sadd.s32 %s153, 1
    %p157 = scmp.eq.s32.totalorder %s14, 1
    %p158 = scmp.ne.s32.totalorder %s153, %s155
    %p159 = scmp.eq.s32.totalorder %s14, 0
    %p160 = por %p158, %p159
    %p161 = scmp.ne.s32.totalorder %s153, %s155
    %p162 = scmp.eq.s32.totalorder %s19, 1
    %p163 = por %p161, %p162
    %p164 = scmp.ne.s32.totalorder %s155, %s156
    %p165 = scmp.eq.s32.totalorder %s19, 0
    %p166 = por %p164, %p165
    %p167 = scmp.ne.s32.totalorder %s155, %s156
    %p168 = scmp.eq.s32.totalorder %s20, 1
    %p169 = por %p167, %p168
    %p171 = scmp.ne.s32.totalorder %s156, %s170
    %p172 = scmp.eq.s32.totalorder %s20, 0
    %p173 = por %p171, %p172
    %s175 = sadd.s32 %s174, 1
    %p178 = scmp.eq.s32.totalorder %s14, 1
    %p179 = scmp.ne.s32.totalorder %s174, %s176
    %p180 = scmp.eq.s32.totalorder %s14, 0
    %p181 = por %p179, %p180
    %p182 = scmp.ne.s32.totalorder %s174, %s176
    %p183 = scmp.eq.s32.totalorder %s19, 1
    %p184 = por %p182, %p183
    %p185 = scmp.ne.s32.totalorder %s176, %s177
    %p186 = scmp.eq.s32.totalorder %s19, 0
    %p187 = por %p185, %p186
    %p188 = scmp.ne.s32.totalorder %s176, %s177
    %p189 = scmp.eq.s32.totalorder %s20, 1
    %p190 = por %p188, %p189
    %p192 = scmp.ne.s32.totalorder %s177, %s191
    %p193 = scmp.eq.s32.totalorder %s20, 0
    %p194 = por %p192, %p193
    %s195 = ssub.s32 %s14, %s21
    %p196 = scmp.eq.s32.totalorder %s195, 0
    %s198 = sadd.s32 %s197, 1
    %s199 = scalar_select %p196, %s197, %s198
    %p202 = pneg %p196
    %p203 = scmp.eq.s32.totalorder %s14, 1
    %p204 = por %p202, %p203
    %p205 = scmp.ne.s32.totalorder %s197, %s200
    %p206 = scmp.eq.s32.totalorder %s14, 0
    %p207 = por %p205, %p206
    %p208 = scmp.ne.s32.totalorder %s197, %s200
    %p209 = scmp.eq.s32.totalorder %s19, 1
    %p210 = por %p208, %p209
    %p211 = scmp.ne.s32.totalorder %s200, %s201
    %p212 = scmp.eq.s32.totalorder %s19, 0
    %p213 = por %p211, %p212
    %p214 = scmp.ne.s32.totalorder %s200, %s201
    %p215 = scmp.eq.s32.totalorder %s20, 1
    %p216 = por %p214, %p215
    %p218 = scmp.ne.s32.totalorder %s201, %s217
    %p219 = scmp.eq.s32.totalorder %s20, 0
    %p220 = por %p218, %p219
    %p221 = scmp.le.s32.totalorder 1, %s14
    %p222 = scmp.lt.s32.totalorder %s14, 3
    %p223 = pnand %p221, %p222
    %p224 = pneg %p223
    // Predicated region
    $region9: #{tpu_custom_call.1} parent=5 // pred_check
      _
    $region10: #{tpu_custom_call.1} parent=5 // pred_check_branch
      %226 = sbr.rel (%p223) target = $region12
    $region11: #{tpu_custom_call.1} parent=5 // pred_region
      %s227 = ssub.s32 %s14, 1
      // Predicated region
      $region13: #{tpu_custom_call.1} parent=11 // pred_check
        %p228 = pneg %p61
      $region14: #{tpu_custom_call.1} parent=11 // pred_check_branch
        %230 = sbr.rel (%p228) target = $region16
      $region15: #{tpu_custom_call.1} parent=11 // pred_region
        _
      $region16: #{tpu_custom_call.1} parent=11 // pred_fallthru
        _
      // Predicated region
      $region17: #{tpu_custom_call.1} parent=11 // pred_check
        %p231 = pneg %p82
      $region18: #{tpu_custom_call.1} parent=11 // pred_check_branch
        %233 = sbr.rel (%p231) target = $region20
      $region19: #{tpu_custom_call.1} parent=11 // pred_region
        _
      $region20: #{tpu_custom_call.1} parent=11 // pred_fallthru
        _
      // Predicated region
      $region21: #{tpu_custom_call.1} parent=11 // pred_check
        %p234 = pneg %p103
      $region22: #{tpu_custom_call.1} parent=11 // pred_check_branch
        %236 = sbr.rel (%p234) target = $region24
      $region23: #{tpu_custom_call.1} parent=11 // pred_region
        _
      $region24: #{tpu_custom_call.1} parent=11 // pred_fallthru
        _
      // Predicated region
      $region25: #{tpu_custom_call.1} parent=11 // pred_check
        %p237 = pneg %p124
      $region26: #{tpu_custom_call.1} parent=11 // pred_check_branch
        %239 = sbr.rel (%p237) target = $region28
      $region27: #{tpu_custom_call.1} parent=11 // pred_region
        _
      $region28: #{tpu_custom_call.1} parent=11 // pred_fallthru
        _
      // Predicated region
      $region29: #{tpu_custom_call.1} parent=11 // pred_check
        %p240 = pneg %p145
      $region30: #{tpu_custom_call.1} parent=11 // pred_check_branch
        %242 = sbr.rel (%p240) target = $region32
      $region31: #{tpu_custom_call.1} parent=11 // pred_region
        _
      $region32: #{tpu_custom_call.1} parent=11 // pred_fallthru
        _
      // Predicated region
      $region33: #{tpu_custom_call.1} parent=11 // pred_check
        %p243 = pneg %p166
      $region34: #{tpu_custom_call.1} parent=11 // pred_check_branch
        %245 = sbr.rel (%p243) target = $region36
      $region35: #{tpu_custom_call.1} parent=11 // pred_region
        _
      $region36: #{tpu_custom_call.1} parent=11 // pred_fallthru
        _
      // Predicated region
      $region37: #{tpu_custom_call.1} parent=11 // pred_check
        %p246 = pneg %p187
      $region38: #{tpu_custom_call.1} parent=11 // pred_check_branch
        %248 = sbr.rel (%p246) target = $region40
      $region39: #{tpu_custom_call.1} parent=11 // pred_region
        _
      $region40: #{tpu_custom_call.1} parent=11 // pred_fallthru
        _
    $region12: #{tpu_custom_call.1} parent=5 // pred_fallthru
      _
    %p249 = scmp.lt.s32.totalorder %s14, 2
    // Predicated region
    $region41: #{tpu_custom_call.1} parent=5 // pred_check
      %p250 = pneg %p249
    $region42: #{tpu_custom_call.1} parent=5 // pred_check_branch
      %252 = sbr.rel (%p250) target = $region44
    $region43: #{tpu_custom_call.1} parent=5 // pred_region
      // Predicated region
      $region45: #{tpu_custom_call.1} parent=43 // pred_check
        %p253 = pneg %p34
      $region46: #{tpu_custom_call.1} parent=43 // pred_check_branch
        %255 = sbr.rel (%p253) target = $region48
      $region47: #{tpu_custom_call.1} parent=43 // pred_region
        %p256 = scmp.lt.s32.totalorder %s14, 1
        %s257 = scalar_select %p256, %s14, 1
        %s258 = smul.addr %s257, 3
        %s259 = smul.addr %s258, 4
        %s260 = scalar_lea.vmem %s0, %s259
      $region48: #{tpu_custom_call.1} parent=43 // pred_fallthru
        _
    $region44: #{tpu_custom_call.1} parent=5 // pred_fallthru
      _
    %p261 = scmp.le.s32.totalorder 1, %s14
    %p262 = scmp.lt.s32.totalorder %s14, 3
    %p263 = pnand %p261, %p262
    %p264 = pneg %p263
    // Predicated region
    $region49: #{tpu_custom_call.1} parent=5 // pred_check
      _
    $region50: #{tpu_custom_call.1} parent=5 // pred_check_branch
      %266 = sbr.rel (%p263) target = $region52
    $region51: #{tpu_custom_call.1} parent=5 // pred_region
      %s267 = ssub.s32 %s14, 1
      %p268 = scmp.lt.s32.totalorder %s19, 1
      %s269 = scalar_select %p268, %s19, 1
      %s270 = smul.addr %s269, 3
      %s271 = smul.addr %s270, 4
      %s272 = scalar_lea.vmem %s0, %s271
      %p273 = pneg %p40
      %p274 = pneg %p37
      %p275 = pneg %p61
      %p276 = pneg %p58
      %p277 = pneg %p82
      %p278 = pneg %p79
      %p279 = pneg %p103
      %p280 = pneg %p100
      %p281 = pneg %p124
      %p282 = pneg %p121
      %p283 = pneg %p145
      %p284 = pneg %p142
      %p285 = pneg %p166
      %p286 = pneg %p163
      %p287 = pneg %p187
      %p288 = pneg %p184
      %p289 = pneg %p213
      %p290 = pneg %p210
      %p291 = scmp.lt.s32.totalorder %s19, 1
      %s292 = scalar_select %p291, %s19, 1
      %s293 = smul.addr %s292, 3
      %s294 = smul.addr %s293, 4
      %s295 = scalar_lea.vmem %s8, %s294
      %p296 = scmp.lt.s32.totalorder %s19, 1
      %s297 = scalar_select %p296, %s19, 1
      %s298 = smul.addr %s297, 3
      %s299 = smul.addr %s298, 4
      %s300 = scalar_lea.vmem %s0, %s299
      %p301 = scmp.lt.s32.totalorder %s19, 1
      %s302 = scalar_select %p301, %s19, 1
      %s303 = smul.addr %s302, 3
      %s304 = smul.addr %s303, 4
      %s305 = scalar_lea.vmem %s8, %s304
      %v306 = vld [vmem:[%s2] sm:$0xf]
      %308 = vset.pattern.permute.xlu0 0
      %309 = vperm.xlu0 %308, %v306
      %v310 = vpop.permute.xlu0 %309
      %v312 = vld [vmem:[%s300] sm:$0xff]
      %v313 = vld [vmem:[%s300 + $0x8] sm:$0xf]
      %v314 = vld [vmem:[%s1] sm:$0xf]
      %v317 = vcombine.high %v312, %v312
      %vm318 = vcmask 31744
      %v320 = vsel %vm318, %v314, 0
      %vm322 = vcmask 1043456
      %v323 = vsel %vm322, %v312, 0
      %v325 = vsel %vm322, %v317, 0
      %v327 = vsel %vm322, %v313, 0
      %329 = vmatprep.subr.mxu0 %v325
      %330 = vmatpush1.msra.mxu0 %v323
      %331 = vmatprep.subr.mxu0 0.0
      %332 = vmatpush1.msra.mxu0 0.0
      %333 = vmatprep.subr.mxu0 0.0
      %334 = vmatpush1.msra.mxu0 0.0
      %335 = vmatprep.subr.mxu0 0.0
      %336 = vmatpush1.msra.mxu0 0.0
      %337 = vmatprep.subr.mxu0 0.0
      %338 = vmatpush1.msra.mxu0 0.0
      %339 = vmatprep.subr.mxu0 0.0
      %340 = vmatpush1.msra.mxu0 0.0
      %341 = vmatprep.subr.mxu0 0.0
      %342 = vmatpush1.msra.mxu0 0.0
      %343 = vmatprep.subr.mxu0 0.0
      %344 = vmatpush1.msra.mxu0 0.0
      %345 = vmatprep.subr.mxu0 0.0
      %346 = vmatpush1.msra.mxu0 0.0
      %347 = vmatprep.subr.mxu0 0.0
      %348 = vmatpush1.msra.mxu0 0.0
      %349 = vmatprep.subr.mxu0 0.0
      %350 = vmatpush1.msra.mxu0 0.0
      %351 = vmatprep.subr.mxu0 0.0
      %352 = vmatpush1.msra.mxu0 0.0
      %353 = vmatprep.subr.mxu0 0.0
      %354 = vmatpush1.msra.mxu0 0.0
      %355 = vmatprep.subr.mxu0 0.0
      %356 = vmatpush1.msra.mxu0 0.0
      %357 = vmatprep.subr.mxu0 0.0
      %358 = vmatpush1.msra.mxu0 0.0
      %359 = vmatprep.subr.mxu0 0.0
      %360 = vmatpush1.msra.mxu0 0.0
      %361 = vmatprep.subr.mxu0 0.0
      %362 = vmatpush1.msra.mxu0 0.0
      %363 = vmatprep.subr.mxu0 0.0
      %364 = vmatpush1.msra.mxu0 0.0
      %365 = vmatprep.subr.mxu0 0.0
      %366 = vmatpush1.msra.mxu0 0.0
      %367 = vmatprep.subr.mxu0 0.0
      %368 = vmatpush1.msra.mxu0 0.0
      %369 = vmatprep.subr.mxu0 0.0
      %370 = vmatpush1.msra.mxu0 0.0
      %371 = vmatprep.subr.mxu0 0.0
      %372 = vmatpush1.msra.mxu0 0.0
      %373 = vmatprep.subr.mxu0 0.0
      %374 = vmatpush1.msra.mxu0 0.0
      %375 = vmatprep.subr.mxu0 0.0
      %376 = vmatpush1.msra.mxu0 0.0
      %377 = vmatprep.subr.mxu0 0.0
      %378 = vmatpush1.msra.mxu0 0.0
      %379 = vmatprep.subr.mxu0 0.0
      %380 = vmatpush1.msra.mxu0 0.0
      %381 = vmatprep.subr.mxu0 0.0
      %382 = vmatpush1.msra.mxu0 0.0
      %383 = vmatprep.subr.mxu0 0.0
      %384 = vmatpush1.msra.mxu0 0.0
      %385 = vmatprep.subr.mxu0 0.0
      %386 = vmatpush1.msra.mxu0 0.0
      %387 = vmatprep.subr.mxu0 0.0
      %388 = vmatpush1.msra.mxu0 0.0
      %389 = vmatprep.subr.mxu0 0.0
      %390 = vmatpush1.msra.mxu0 0.0
      %391 = vmatprep.subr.mxu0 0.0
      %392 = vmatpush1.msra.mxu0 0.0
      %393 = vmatprep.mubr.f32.mxu0 0.0
      %394 = vmatmul.mubr.f32.gmra.mrb[0].mxu0 %v320
      %v395 = vpop.f32.mrb[0].mxu0
      %v396 = vadd.f32 0.0, %v395
      %v397 = vpop.f32.mrb[0].mxu0
      %v398 = vadd.f32 0.0, %v397
      %399 = vdwg.mxu0
      %400 = vmatprep.subr.mxu0 0.0
      %401 = vmatpush1.msra.mxu0 %v327
      %402 = vmatprep.subr.mxu0 0.0
      %403 = vmatpush1.msra.mxu0 0.0
      %404 = vmatprep.subr.mxu0 0.0
      %405 = vmatpush1.msra.mxu0 0.0
      %406 = vmatprep.subr.mxu0 0.0
      %407 = vmatpush1.msra.mxu0 0.0
      %408 = vmatprep.subr.mxu0 0.0
      %409 = vmatpush1.msra.mxu0 0.0
      %410 = vmatprep.subr.mxu0 0.0
      %411 = vmatpush1.msra.mxu0 0.0
      %412 = vmatprep.subr.mxu0 0.0
      %413 = vmatpush1.msra.mxu0 0.0
      %414 = vmatprep.subr.mxu0 0.0
      %415 = vmatpush1.msra.mxu0 0.0
      %416 = vmatprep.subr.mxu0 0.0
      %417 = vmatpush1.msra.mxu0 0.0
      %418 = vmatprep.subr.mxu0 0.0
      %419 = vmatpush1.msra.mxu0 0.0
      %420 = vmatprep.subr.mxu0 0.0
      %421 = vmatpush1.msra.mxu0 0.0
      %422 = vmatprep.subr.mxu0 0.0
      %423 = vmatpush1.msra.mxu0 0.0
      %424 = vmatprep.subr.mxu0 0.0
      %425 = vmatpush1.msra.mxu0 0.0
      %426 = vmatprep.subr.mxu0 0.0
      %427 = vmatpush1.msra.mxu0 0.0
      %428 = vmatprep.subr.mxu0 0.0
      %429 = vmatpush1.msra.mxu0 0.0
      %430 = vmatprep.subr.mxu0 0.0
      %431 = vmatpush1.msra.mxu0 0.0
      %432 = vmatprep.subr.mxu0 0.0
      %433 = vmatpush1.msra.mxu0 0.0
      %434 = vmatprep.subr.mxu0 0.0
      %435 = vmatpush1.msra.mxu0 0.0
      %436 = vmatprep.subr.mxu0 0.0
      %437 = vmatpush1.msra.mxu0 0.0
      %438 = vmatprep.subr.mxu0 0.0
      %439 = vmatpush1.msra.mxu0 0.0
      %440 = vmatprep.subr.mxu0 0.0
      %441 = vmatpush1.msra.mxu0 0.0
      %442 = vmatprep.subr.mxu0 0.0
      %443 = vmatpush1.msra.mxu0 0.0
      %444 = vmatprep.subr.mxu0 0.0
      %445 = vmatpush1.msra.mxu0 0.0
      %446 = vmatprep.subr.mxu0 0.0
      %447 = vmatpush1.msra.mxu0 0.0
      %448 = vmatprep.subr.mxu0 0.0
      %449 = vmatpush1.msra.mxu0 0.0
      %450 = vmatprep.subr.mxu0 0.0
      %451 = vmatpush1.msra.mxu0 0.0
      %452 = vmatprep.subr.mxu0 0.0
      %453 = vmatpush1.msra.mxu0 0.0
      %454 = vmatprep.subr.mxu0 0.0
      %455 = vmatpush1.msra.mxu0 0.0
      %456 = vmatprep.subr.mxu0 0.0
      %457 = vmatpush1.msra.mxu0 0.0
      %458 = vmatprep.subr.mxu0 0.0
      %459 = vmatpush1.msra.mxu0 0.0
      %460 = vmatprep.subr.mxu0 0.0
      %461 = vmatpush1.msra.mxu0 0.0
      %462 = vmatprep.subr.mxu0 0.0
      %463 = vmatpush1.msra.mxu0 0.0
      %464 = vmatprep.mubr.f32.mxu0 0.0
      %465 = vmatmul.mubr.f32.gmra.mrb[0].mxu0 %v320
      %v466 = vpop.f32.mrb[0].mxu0
      %v467 = vadd.f32 0.0, %v466
      %v468 = vpop.f32.mrb[0].mxu0
      %469 = vdwg.mxu0
      %v470 = vadd.f32 %v310, %v396
      %v471 = vadd.f32 %v310, %v398
      %v472 = vadd.f32 %v310, %v467
      %v473 = vld [vmem:[%s300] sm:$0xff]
      %v474 = vld [vmem:[%s300 + $0x8] sm:$0xf]
      %s475 = scalar_lea.vmem %s1, 4
      %v476 = vld [vmem:[%s475] sm:$0xf]
      %v479 = vcombine.high %v473, %v473
      %480 = vrot.lane.b32.xlu0 %v473, 127
      %v481 = vpop.permute.xlu0 %480
      %482 = vrot.lane.b32.xlu0 %v479, 127
      %v483 = vpop.permute.xlu0 %482
      %484 = vrot.lane.b32.xlu0 %v474, 127
      %v485 = vpop.permute.xlu0 %484
      %vm486 = vcmask 1039360
      %v487 = vsel %vm486, %v481, %v483
      %v488 = vsel %vm486, %v483, %v485
      %v490 = vsel %vm318, %v476, 0
      %v492 = vsel %vm322, %v487, 0
      %v494 = vsel %vm322, %v488, 0
      %v496 = vsel %vm322, %v485, 0
      %498 = vmatprep.subr.mxu0 %v494
      %499 = vmatpush1.msra.mxu0 %v492
      %500 = vmatprep.subr.mxu0 0.0
      %501 = vmatpush1.msra.mxu0 0.0
      %502 = vmatprep.subr.mxu0 0.0
      %503 = vmatpush1.msra.mxu0 0.0
      %504 = vmatprep.subr.mxu0 0.0
      %505 = vmatpush1.msra.mxu0 0.0
      %506 = vmatprep.subr.mxu0 0.0
      %507 = vmatpush1.msra.mxu0 0.0
      %508 = vmatprep.subr.mxu0 0.0
      %509 = vmatpush1.msra.mxu0 0.0
      %510 = vmatprep.subr.mxu0 0.0
      %511 = vmatpush1.msra.mxu0 0.0
      %512 = vmatprep.subr.mxu0 0.0
      %513 = vmatpush1.msra.mxu0 0.0
      %514 = vmatprep.subr.mxu0 0.0
      %515 = vmatpush1.msra.mxu0 0.0
      %516 = vmatprep.subr.mxu0 0.0
      %517 = vmatpush1.msra.mxu0 0.0
      %518 = vmatprep.subr.mxu0 0.0
      %519 = vmatpush1.msra.mxu0 0.0
      %520 = vmatprep.subr.mxu0 0.0
      %521 = vmatpush1.msra.mxu0 0.0
      %522 = vmatprep.subr.mxu0 0.0
      %523 = vmatpush1.msra.mxu0 0.0
      %524 = vmatprep.subr.mxu0 0.0
      %525 = vmatpush1.msra.mxu0 0.0
      %526 = vmatprep.subr.mxu0 0.0
      %527 = vmatpush1.msra.mxu0 0.0
      %528 = vmatprep.subr.mxu0 0.0
      %529 = vmatpush1.msra.mxu0 0.0
      %530 = vmatprep.subr.mxu0 0.0
      %531 = vmatpush1.msra.mxu0 0.0
      %532 = vmatprep.subr.mxu0 0.0
      %533 = vmatpush1.msra.mxu0 0.0
      %534 = vmatprep.subr.mxu0 0.0
      %535 = vmatpush1.msra.mxu0 0.0
      %536 = vmatprep.subr.mxu0 0.0
      %537 = vmatpush1.msra.mxu0 0.0
      %538 = vmatprep.subr.mxu0 0.0
      %539 = vmatpush1.msra.mxu0 0.0
      %540 = vmatprep.subr.mxu0 0.0
      %541 = vmatpush1.msra.mxu0 0.0
      %542 = vmatprep.subr.mxu0 0.0
      %543 = vmatpush1.msra.mxu0 0.0
      %544 = vmatprep.subr.mxu0 0.0
      %545 = vmatpush1.msra.mxu0 0.0
      %546 = vmatprep.subr.mxu0 0.0
      %547 = vmatpush1.msra.mxu0 0.0
      %548 = vmatprep.subr.mxu0 0.0
      %549 = vmatpush1.msra.mxu0 0.0
      %550 = vmatprep.subr.mxu0 0.0
      %551 = vmatpush1.msra.mxu0 0.0
      %552 = vmatprep.subr.mxu0 0.0
      %553 = vmatpush1.msra.mxu0 0.0
      %554 = vmatprep.subr.mxu0 0.0
      %555 = vmatpush1.msra.mxu0 0.0
      %556 = vmatprep.subr.mxu0 0.0
      %557 = vmatpush1.msra.mxu0 0.0
      %558 = vmatprep.subr.mxu0 0.0
      %559 = vmatpush1.msra.mxu0 0.0
      %560 = vmatprep.subr.mxu0 0.0
      %561 = vmatpush1.msra.mxu0 0.0
      %562 = vmatprep.mubr.f32.mxu0 0.0
      %563 = vmatmul.mubr.f32.gmra.mrb[0].mxu0 %v490
      %v564 = vpop.f32.mrb[0].mxu0
      %v565 = vadd.f32 0.0, %v564
      %v566 = vpop.f32.mrb[0].mxu0
      %v567 = vadd.f32 0.0, %v566
      %568 = vdwg.mxu0
      %569 = vmatprep.subr.mxu0 0.0
      %570 = vmatpush1.msra.mxu0 %v496
      %571 = vmatprep.subr.mxu0 0.0
      %572 = vmatpush1.msra.mxu0 0.0
      %573 = vmatprep.subr.mxu0 0.0
      %574 = vmatpush1.msra.mxu0 0.0
      %575 = vmatprep.subr.mxu0 0.0
      %576 = vmatpush1.msra.mxu0 0.0
      %577 = vmatprep.subr.mxu0 0.0
      %578 = vmatpush1.msra.mxu0 0.0
      %579 = vmatprep.subr.mxu0 0.0
      %580 = vmatpush1.msra.mxu0 0.0
      %581 = vmatprep.subr.mxu0 0.0
      %582 = vmatpush1.msra.mxu0 0.0
      %583 = vmatprep.subr.mxu0 0.0
      %584 = vmatpush1.msra.mxu0 0.0
      %585 = vmatprep.subr.mxu0 0.0
      %586 = vmatpush1.msra.mxu0 0.0
      %587 = vmatprep.subr.mxu0 0.0
      %588 = vmatpush1.msra.mxu0 0.0
      %589 = vmatprep.subr.mxu0 0.0
      %590 = vmatpush1.msra.mxu0 0.0
      %591 = vmatprep.subr.mxu0 0.0
      %592 = vmatpush1.msra.mxu0 0.0
      %593 = vmatprep.subr.mxu0 0.0
      %594 = vmatpush1.msra.mxu0 0.0
      %595 = vmatprep.subr.mxu0 0.0
      %596 = vmatpush1.msra.mxu0 0.0
      %597 = vmatprep.subr.mxu0 0.0
      %598 = vmatpush1.msra.mxu0 0.0
      %599 = vmatprep.subr.mxu0 0.0
      %600 = vmatpush1.msra.mxu0 0.0
      %601 = vmatprep.subr.mxu0 0.0
      %602 = vmatpush1.msra.mxu0 0.0
      %603 = vmatprep.subr.mxu0 0.0
      %604 = vmatpush1.msra.mxu0 0.0
      %605 = vmatprep.subr.mxu0 0.0
      %606 = vmatpush1.msra.mxu0 0.0
      %607 = vmatprep.subr.mxu0 0.0
      %608 = vmatpush1.msra.mxu0 0.0
      %609 = vmatprep.subr.mxu0 0.0
      %610 = vmatpush1.msra.mxu0 0.0
      %611 = vmatprep.subr.mxu0 0.0
      %612 = vmatpush1.msra.mxu0 0.0
      %613 = vmatprep.subr.mxu0 0.0
      %614 = vmatpush1.msra.mxu0 0.0
      %615 = vmatprep.subr.mxu0 0.0
      %616 = vmatpush1.msra.mxu0 0.0
      %617 = vmatprep.subr.mxu0 0.0
      %618 = vmatpush1.msra.mxu0 0.0
      %619 = vmatprep.subr.mxu0 0.0
      %620 = vmatpush1.msra.mxu0 0.0
      %621 = vmatprep.subr.mxu0 0.0
      %622 = vmatpush1.msra.mxu0 0.0
      %623 = vmatprep.subr.mxu0 0.0
      %624 = vmatpush1.msra.mxu0 0.0
      %625 = vmatprep.subr.mxu0 0.0
      %626 = vmatpush1.msra.mxu0 0.0
      %627 = vmatprep.subr.mxu0 0.0
      %628 = vmatpush1.msra.mxu0 0.0
      %629 = vmatprep.subr.mxu0 0.0
      %630 = vmatpush1.msra.mxu0 0.0
      %631 = vmatprep.subr.mxu0 0.0
      %632 = vmatpush1.msra.mxu0 0.0
      %633 = vmatprep.mubr.f32.mxu0 0.0
      %634 = vmatmul.mubr.f32.gmra.mrb[0].mxu0 %v490
      %v635 = vpop.f32.mrb[0].mxu0
      %v636 = vadd.f32 0.0, %v635
      %v637 = vpop.f32.mrb[0].mxu0
      %638 = vdwg.mxu0
      %v639 = vadd.f32 %v470, %v565
      %v640 = vadd.f32 %v471, %v567
      %v641 = vadd.f32 %v472, %v636
      %v642 = vld [vmem:[%s300] sm:$0xff]
      %v643 = vld [vmem:[%s300 + $0x8] sm:$0xf]
      %s644 = scalar_lea.vmem %s1, 8
      %v645 = vld [vmem:[%s644] sm:$0xf]
      %v648 = vcombine.high %v642, %v642
      %649 = vrot.lane.b32.xlu0 %v642, 126
      %v650 = vpop.permute.xlu0 %649
      %651 = vrot.lane.b32.xlu0 %v648, 126
      %v652 = vpop.permute.xlu0 %651
      %653 = vrot.lane.b32.xlu0 %v643, 126
      %v654 = vpop.permute.xlu0 %653
      %vm655 = vcmask 1031168
      %v656 = vsel %vm655, %v650, %v652
      %v657 = vsel %vm655, %v652, %v654
      %v659 = vsel %vm318, %v645, 0
      %v661 = vsel %vm322, %v656, 0
      %v663 = vsel %vm322, %v657, 0
      %v665 = vsel %vm322, %v654, 0
      %667 = vmatprep.subr.mxu0 %v663
      %668 = vmatpush1.msra.mxu0 %v661
      %669 = vmatprep.subr.mxu0 0.0
      %670 = vmatpush1.msra.mxu0 0.0
      %671 = vmatprep.subr.mxu0 0.0
      %672 = vmatpush1.msra.mxu0 0.0
      %673 = vmatprep.subr.mxu0 0.0
      %674 = vmatpush1.msra.mxu0 0.0
      %675 = vmatprep.subr.mxu0 0.0
      %676 = vmatpush1.msra.mxu0 0.0
      %677 = vmatprep.subr.mxu0 0.0
      %678 = vmatpush1.msra.mxu0 0.0
      %679 = vmatprep.subr.mxu0 0.0
      %680 = vmatpush1.msra.mxu0 0.0
      %681 = vmatprep.subr.mxu0 0.0
      %682 = vmatpush1.msra.mxu0 0.0
      %683 = vmatprep.subr.mxu0 0.0
      %684 = vmatpush1.msra.mxu0 0.0
      %685 = vmatprep.subr.mxu0 0.0
      %686 = vmatpush1.msra.mxu0 0.0
      %687 = vmatprep.subr.mxu0 0.0
      %688 = vmatpush1.msra.mxu0 0.0
      %689 = vmatprep.subr.mxu0 0.0
      %690 = vmatpush1.msra.mxu0 0.0
      %691 = vmatprep.subr.mxu0 0.0
      %692 = vmatpush1.msra.mxu0 0.0
      %693 = vmatprep.subr.mxu0 0.0
      %694 = vmatpush1.msra.mxu0 0.0
      %695 = vmatprep.subr.mxu0 0.0
      %696 = vmatpush1.msra.mxu0 0.0
      %697 = vmatprep.subr.mxu0 0.0
      %698 = vmatpush1.msra.mxu0 0.0
      %699 = vmatprep.subr.mxu0 0.0
      %700 = vmatpush1.msra.mxu0 0.0
      %701 = vmatprep.subr.mxu0 0.0
      %702 = vmatpush1.msra.mxu0 0.0
      %703 = vmatprep.subr.mxu0 0.0
      %704 = vmatpush1.msra.mxu0 0.0
      %705 = vmatprep.subr.mxu0 0.0
      %706 = vmatpush1.msra.mxu0 0.0
      %707 = vmatprep.subr.mxu0 0.0
      %708 = vmatpush1.msra.mxu0 0.0
      %709 = vmatprep.subr.mxu0 0.0
      %710 = vmatpush1.msra.mxu0 0.0
      %711 = vmatprep.subr.mxu0 0.0
      %712 = vmatpush1.msra.mxu0 0.0
      %713 = vmatprep.subr.mxu0 0.0
      %714 = vmatpush1.msra.mxu0 0.0
      %715 = vmatprep.subr.mxu0 0.0
      %716 = vmatpush1.msra.mxu0 0.0
      %717 = vmatprep.subr.mxu0 0.0
      %718 = vmatpush1.msra.mxu0 0.0
      %719 = vmatprep.subr.mxu0 0.0
      %720 = vmatpush1.msra.mxu0 0.0
      %721 = vmatprep.subr.mxu0 0.0
      %722 = vmatpush1.msra.mxu0 0.0
      %723 = vmatprep.subr.mxu0 0.0
      %724 = vmatpush1.msra.mxu0 0.0
      %725 = vmatprep.subr.mxu0 0.0
      %726 = vmatpush1.msra.mxu0 0.0
      %727 = vmatprep.subr.mxu0 0.0
      %728 = vmatpush1.msra.mxu0 0.0
      %729 = vmatprep.subr.mxu0 0.0
      %730 = vmatpush1.msra.mxu0 0.0
      %731 = vmatprep.mubr.f32.mxu0 0.0
      %732 = vmatmul.mubr.f32.gmra.mrb[0].mxu0 %v659
      %v733 = vpop.f32.mrb[0].mxu0
      %v734 = vadd.f32 0.0, %v733
      %v735 = vpop.f32.mrb[0].mxu0
      %v736 = vadd.f32 0.0, %v735
      %737 = vdwg.mxu0
      %738 = vmatprep.subr.mxu0 0.0
      %739 = vmatpush1.msra.mxu0 %v665
      %740 = vmatprep.subr.mxu0 0.0
      %741 = vmatpush1.msra.mxu0 0.0
      %742 = vmatprep.subr.mxu0 0.0
      %743 = vmatpush1.msra.mxu0 0.0
      %744 = vmatprep.subr.mxu0 0.0
      %745 = vmatpush1.msra.mxu0 0.0
      %746 = vmatprep.subr.mxu0 0.0
      %747 = vmatpush1.msra.mxu0 0.0
      %748 = vmatprep.subr.mxu0 0.0
      %749 = vmatpush1.msra.mxu0 0.0
      %750 = vmatprep.subr.mxu0 0.0
      %751 = vmatpush1.msra.mxu0 0.0
      %752 = vmatprep.subr.mxu0 0.0
      %753 = vmatpush1.msra.mxu0 0.0
      %754 = vmatprep.subr.mxu0 0.0
      %755 = vmatpush1.msra.mxu0 0.0
      %756 = vmatprep.subr.mxu0 0.0
      %757 = vmatpush1.msra.mxu0 0.0
      %758 = vmatprep.subr.mxu0 0.0
      %759 = vmatpush1.msra.mxu0 0.0
      %760 = vmatprep.subr.mxu0 0.0
      %761 = vmatpush1.msra.mxu0 0.0
      %762 = vmatprep.subr.mxu0 0.0
      %763 = vmatpush1.msra.mxu0 0.0
      %764 = vmatprep.subr.mxu0 0.0
      %765 = vmatpush1.msra.mxu0 0.0
      %766 = vmatprep.subr.mxu0 0.0
      %767 = vmatpush1.msra.mxu0 0.0
      %768 = vmatprep.subr.mxu0 0.0
      %769 = vmatpush1.msra.mxu0 0.0
      %770 = vmatprep.subr.mxu0 0.0
      %771 = vmatpush1.msra.mxu0 0.0
      %772 = vmatprep.subr.mxu0 0.0
      %773 = vmatpush1.msra.mxu0 0.0
      %774 = vmatprep.subr.mxu0 0.0
      %775 = vmatpush1.msra.mxu0 0.0
      %776 = vmatprep.subr.mxu0 0.0
      %777 = vmatpush1.msra.mxu0 0.0
      %778 = vmatprep.subr.mxu0 0.0
      %779 = vmatpush1.msra.mxu0 0.0
      %780 = vmatprep.subr.mxu0 0.0
      %781 = vmatpush1.msra.mxu0 0.0
      %782 = vmatprep.subr.mxu0 0.0
      %783 = vmatpush1.msra.mxu0 0.0
      %784 = vmatprep.subr.mxu0 0.0
      %785 = vmatpush1.msra.mxu0 0.0
      %786 = vmatprep.subr.mxu0 0.0
      %787 = vmatpush1.msra.mxu0 0.0
      %788 = vmatprep.subr.mxu0 0.0
      %789 = vmatpush1.msra.mxu0 0.0
      %790 = vmatprep.subr.mxu0 0.0
      %791 = vmatpush1.msra.mxu0 0.0
      %792 = vmatprep.subr.mxu0 0.0
      %793 = vmatpush1.msra.mxu0 0.0
      %794 = vmatprep.subr.mxu0 0.0
      %795 = vmatpush1.msra.mxu0 0.0
      %796 = vmatprep.subr.mxu0 0.0
      %797 = vmatpush1.msra.mxu0 0.0
      %798 = vmatprep.subr.mxu0 0.0
      %799 = vmatpush1.msra.mxu0 0.0
      %800 = vmatprep.subr.mxu0 0.0
      %801 = vmatpush1.msra.mxu0 0.0
      %802 = vmatprep.mubr.f32.mxu0 0.0
      %803 = vmatmul.mubr.f32.gmra.mrb[0].mxu0 %v659
      %v804 = vpop.f32.mrb[0].mxu0
      %v805 = vadd.f32 0.0, %v804
      %v806 = vpop.f32.mrb[0].mxu0
      %807 = vdwg.mxu0
      %v808 = vadd.f32 %v639, %v734
      %v809 = vadd.f32 %v640, %v736
      %v810 = vadd.f32 %v641, %v805
      %v811 = vld [vmem:[%s300] sm:$0xff]
      %v812 = vld [vmem:[%s300 + $0x8] sm:$0xf]
      %s813 = scalar_lea.vmem %s1, 12
      %v814 = vld [vmem:[%s813] sm:$0xf]
      %v817 = vcombine.high %v811, %v811
      %818 = vrot.lane.b32.xlu0 %v811, 110
      %v819 = vpop.permute.xlu0 %818
      %820 = vrot.lane.b32.xlu0 %v817, 110
      %v821 = vpop.permute.xlu0 %820
      %822 = vrot.lane.b32.xlu0 %v812, 110
      %v823 = vpop.permute.xlu0 %822
      %vm824 = vcmask 900096
      %v825 = vsel %vm824, %v819, %v821
      %v826 = vsel %vm824, %v821, %v823
      %v828 = vsel %vm318, %v814, 0
      %v830 = vsel %vm322, %v825, 0
      %v832 = vsel %vm322, %v826, 0
      %v834 = vsel %vm322, %v823, 0
      %836 = vmatprep.subr.mxu0 %v832
      %837 = vmatpush1.msra.mxu0 %v830
      %838 = vmatprep.subr.mxu0 0.0
      %839 = vmatpush1.msra.mxu0 0.0
      %840 = vmatprep.subr.mxu0 0.0
      %841 = vmatpush1.msra.mxu0 0.0
      %842 = vmatprep.subr.mxu0 0.0
      %843 = vmatpush1.msra.mxu0 0.0
      %844 = vmatprep.subr.mxu0 0.0
      %845 = vmatpush1.msra.mxu0 0.0
      %846 = vmatprep.subr.mxu0 0.0
      %847 = vmatpush1.msra.mxu0 0.0
      %848 = vmatprep.subr.mxu0 0.0
      %849 = vmatpush1.msra.mxu0 0.0
      %850 = vmatprep.subr.mxu0 0.0
      %851 = vmatpush1.msra.mxu0 0.0
      %852 = vmatprep.subr.mxu0 0.0
      %853 = vmatpush1.msra.mxu0 0.0
      %854 = vmatprep.subr.mxu0 0.0
      %855 = vmatpush1.msra.mxu0 0.0
      %856 = vmatprep.subr.mxu0 0.0
      %857 = vmatpush1.msra.mxu0 0.0
      %858 = vmatprep.subr.mxu0 0.0
      %859 = vmatpush1.msra.mxu0 0.0
      %860 = vmatprep.subr.mxu0 0.0
      %861 = vmatpush1.msra.mxu0 0.0
      %862 = vmatprep.subr.mxu0 0.0
      %863 = vmatpush1.msra.mxu0 0.0
      %864 = vmatprep.subr.mxu0 0.0
      %865 = vmatpush1.msra.mxu0 0.0
      %866 = vmatprep.subr.mxu0 0.0
      %867 = vmatpush1.msra.mxu0 0.0
      %868 = vmatprep.subr.mxu0 0.0
      %869 = vmatpush1.msra.mxu0 0.0
      %870 = vmatprep.subr.mxu0 0.0
      %871 = vmatpush1.msra.mxu0 0.0
      %872 = vmatprep.subr.mxu0 0.0
      %873 = vmatpush1.msra.mxu0 0.0
      %874 = vmatprep.subr.mxu0 0.0
      %875 = vmatpush1.msra.mxu0 0.0
      %876 = vmatprep.subr.mxu0 0.0
      %877 = vmatpush1.msra.mxu0 0.0
      %878 = vmatprep.subr.mxu0 0.0
      %879 = vmatpush1.msra.mxu0 0.0
      %880 = vmatprep.subr.mxu0 0.0
      %881 = vmatpush1.msra.mxu0 0.0
      %882 = vmatprep.subr.mxu0 0.0
      %883 = vmatpush1.msra.mxu0 0.0
      %884 = vmatprep.subr.mxu0 0.0
      %885 = vmatpush1.msra.mxu0 0.0
      %886 = vmatprep.subr.mxu0 0.0
      %887 = vmatpush1.msra.mxu0 0.0
      %888 = vmatprep.subr.mxu0 0.0
      %889 = vmatpush1.msra.mxu0 0.0
      %890 = vmatprep.subr.mxu0 0.0
      %891 = vmatpush1.msra.mxu0 0.0
      %892 = vmatprep.subr.mxu0 0.0
      %893 = vmatpush1.msra.mxu0 0.0
      %894 = vmatprep.subr.mxu0 0.0
      %895 = vmatpush1.msra.mxu0 0.0
      %896 = vmatprep.subr.mxu0 0.0
      %897 = vmatpush1.msra.mxu0 0.0
      %898 = vmatprep.subr.mxu0 0.0
      %899 = vmatpush1.msra.mxu0 0.0
      %900 = vmatprep.mubr.f32.mxu0 0.0
      %901 = vmatmul.mubr.f32.gmra.mrb[0].mxu0 %v828
      %v902 = vpop.f32.mrb[0].mxu0
      %v903 = vadd.f32 0.0, %v902
      %v904 = vpop.f32.mrb[0].mxu0
      %v905 = vadd.f32 0.0, %v904
      %906 = vdwg.mxu0
      %907 = vmatprep.subr.mxu0 0.0
      %908 = vmatpush1.msra.mxu0 %v834
      %909 = vmatprep.subr.mxu0 0.0
      %910 = vmatpush1.msra.mxu0 0.0
      %911 = vmatprep.subr.mxu0 0.0
      %912 = vmatpush1.msra.mxu0 0.0
      %913 = vmatprep.subr.mxu0 0.0
      %914 = vmatpush1.msra.mxu0 0.0
      %915 = vmatprep.subr.mxu0 0.0
      %916 = vmatpush1.msra.mxu0 0.0
      %917 = vmatprep.subr.mxu0 0.0
      %918 = vmatpush1.msra.mxu0 0.0
      %919 = vmatprep.subr.mxu0 0.0
      %920 = vmatpush1.msra.mxu0 0.0
      %921 = vmatprep.subr.mxu0 0.0
      %922 = vmatpush1.msra.mxu0 0.0
      %923 = vmatprep.subr.mxu0 0.0
      %924 = vmatpush1.msra.mxu0 0.0
      %925 = vmatprep.subr.mxu0 0.0
      %926 = vmatpush1.msra.mxu0 0.0
      %927 = vmatprep.subr.mxu0 0.0
      %928 = vmatpush1.msra.mxu0 0.0
      %929 = vmatprep.subr.mxu0 0.0
      %930 = vmatpush1.msra.mxu0 0.0
      %931 = vmatprep.subr.mxu0 0.0
      %932 = vmatpush1.msra.mxu0 0.0
      %933 = vmatprep.subr.mxu0 0.0
      %934 = vmatpush1.msra.mxu0 0.0
      %935 = vmatprep.subr.mxu0 0.0
      %936 = vmatpush1.msra.mxu0 0.0
      %937 = vmatprep.subr.mxu0 0.0
      %938 = vmatpush1.msra.mxu0 0.0
      %939 = vmatprep.subr.mxu0 0.0
      %940 = vmatpush1.msra.mxu0 0.0
      %941 = vmatprep.subr.mxu0 0.0
      %942 = vmatpush1.msra.mxu0 0.0
      %943 = vmatprep.subr.mxu0 0.0
      %944 = vmatpush1.msra.mxu0 0.0
      %945 = vmatprep.subr.mxu0 0.0
      %946 = vmatpush1.msra.mxu0 0.0
      %947 = vmatprep.subr.mxu0 0.0
      %948 = vmatpush1.msra.mxu0 0.0
      %949 = vmatprep.subr.mxu0 0.0
      %950 = vmatpush1.msra.mxu0 0.0
      %951 = vmatprep.subr.mxu0 0.0
      %952 = vmatpush1.msra.mxu0 0.0
      %953 = vmatprep.subr.mxu0 0.0
      %954 = vmatpush1.msra.mxu0 0.0
      %955 = vmatprep.subr.mxu0 0.0
      %956 = vmatpush1.msra.mxu0 0.0
      %957 = vmatprep.subr.mxu0 0.0
      %958 = vmatpush1.msra.mxu0 0.0
      %959 = vmatprep.subr.mxu0 0.0
      %960 = vmatpush1.msra.mxu0 0.0
      %961 = vmatprep.subr.mxu0 0.0
      %962 = vmatpush1.msra.mxu0 0.0
      %963 = vmatprep.subr.mxu0 0.0
      %964 = vmatpush1.msra.mxu0 0.0
      %965 = vmatprep.subr.mxu0 0.0
      %966 = vmatpush1.msra.mxu0 0.0
      %967 = vmatprep.subr.mxu0 0.0
      %968 = vmatpush1.msra.mxu0 0.0
      %969 = vmatprep.subr.mxu0 0.0
      %970 = vmatpush1.msra.mxu0 0.0
      %971 = vmatprep.mubr.f32.mxu0 0.0
      %972 = vmatmul.mubr.f32.gmra.mrb[0].mxu0 %v828
      %v973 = vpop.f32.mrb[0].mxu0
      %v974 = vadd.f32 0.0, %v973
      %v975 = vpop.f32.mrb[0].mxu0
      %976 = vdwg.mxu0
      %v977 = vadd.f32 %v808, %v903
      %v978 = vadd.f32 %v809, %v905
      %v979 = vadd.f32 %v810, %v974
      %v980 = vld [vmem:[%s300] sm:$0xff]
      %v981 = vld [vmem:[%s300 + $0x8] sm:$0xf]
      %s982 = scalar_lea.vmem %s1, 16
      %v983 = vld [vmem:[%s982] sm:$0xf]
      %v986 = vcombine.high %v980, %v980
      %987 = vrot.lane.b32.xlu0 %v980, 109
      %v988 = vpop.permute.xlu0 %987
      %989 = vrot.lane.b32.xlu0 %v986, 109
      %v990 = vpop.permute.xlu0 %989
      %991 = vrot.lane.b32.xlu0 %v981, 109
      %v992 = vpop.permute.xlu0 %991
      %vm993 = vcmask 891904
      %v994 = vsel %vm993, %v988, %v990
      %v995 = vsel %vm993, %v990, %v992
      %v997 = vsel %vm318, %v983, 0
      %v999 = vsel %vm322, %v994, 0
      %v1001 = vsel %vm322, %v995, 0
      %v1003 = vsel %vm322, %v992, 0
      %1005 = vmatprep.subr.mxu0 %v1001
      %1006 = vmatpush1.msra.mxu0 %v999
      %1007 = vmatprep.subr.mxu0 0.0
      %1008 = vmatpush1.msra.mxu0 0.0
      %1009 = vmatprep.subr.mxu0 0.0
      %1010 = vmatpush1.msra.mxu0 0.0
      %1011 = vmatprep.subr.mxu0 0.0
      %1012 = vmatpush1.msra.mxu0 0.0
      %1013 = vmatprep.subr.mxu0 0.0
      %1014 = vmatpush1.msra.mxu0 0.0
      %1015 = vmatprep.subr.mxu0 0.0
      %1016 = vmatpush1.msra.mxu0 0.0
      %1017 = vmatprep.subr.mxu0 0.0
      %1018 = vmatpush1.msra.mxu0 0.0
      %1019 = vmatprep.subr.mxu0 0.0
      %1020 = vmatpush1.msra.mxu0 0.0
      %1021 = vmatprep.subr.mxu0 0.0
      %1022 = vmatpush1.msra.mxu0 0.0
      %1023 = vmatprep.subr.mxu0 0.0
      %1024 = vmatpush1.msra.mxu0 0.0
      %1025 = vmatprep.subr.mxu0 0.0
      %1026 = vmatpush1.msra.mxu0 0.0
      %1027 = vmatprep.subr.mxu0 0.0
      %1028 = vmatpush1.msra.mxu0 0.0
      %1029 = vmatprep.subr.mxu0 0.0
      %1030 = vmatpush1.msra.mxu0 0.0
      %1031 = vmatprep.subr.mxu0 0.0
      %1032 = vmatpush1.msra.mxu0 0.0
      %1033 = vmatprep.subr.mxu0 0.0
      %1034 = vmatpush1.msra.mxu0 0.0
      %1035 = vmatprep.subr.mxu0 0.0
      %1036 = vmatpush1.msra.mxu0 0.0
      %1037 = vmatprep.subr.mxu0 0.0
      %1038 = vmatpush1.msra.mxu0 0.0
      %1039 = vmatprep.subr.mxu0 0.0
      %1040 = vmatpush1.msra.mxu0 0.0
      %1041 = vmatprep.subr.mxu0 0.0
      %1042 = vmatpush1.msra.mxu0 0.0
      %1043 = vmatprep.subr.mxu0 0.0
      %1044 = vmatpush1.msra.mxu0 0.0
      %1045 = vmatprep.subr.mxu0 0.0
      %1046 = vmatpush1.msra.mxu0 0.0
      %1047 = vmatprep.subr.mxu0 0.0
      %1048 = vmatpush1.msra.mxu0 0.0
      %1049 = vmatprep.subr.mxu0 0.0
      %1050 = vmatpush1.msra.mxu0 0.0
      %1051 = vmatprep.subr.mxu0 0.0
      %1052 = vmatpush1.msra.mxu0 0.0
      %1053 = vmatprep.subr.mxu0 0.0
      %1054 = vmatpush1.msra.mxu0 0.0
      %1055 = vmatprep.subr.mxu0 0.0
      %1056 = vmatpush1.msra.mxu0 0.0
      %1057 = vmatprep.subr.mxu0 0.0
      %1058 = vmatpush1.msra.mxu0 0.0
      %1059 = vmatprep.subr.mxu0 0.0
      %1060 = vmatpush1.msra.mxu0 0.0
      %1061 = vmatprep.subr.mxu0 0.0
      %1062 = vmatpush1.msra.mxu0 0.0
      %1063 = vmatprep.subr.mxu0 0.0
      %1064 = vmatpush1.msra.mxu0 0.0
      %1065 = vmatprep.subr.mxu0 0.0
      %1066 = vmatpush1.msra.mxu0 0.0
      %1067 = vmatprep.subr.mxu0 0.0
      %1068 = vmatpush1.msra.mxu0 0.0
      %1069 = vmatprep.mubr.f32.mxu0 0.0
      %1070 = vmatmul.mubr.f32.gmra.mrb[0].mxu0 %v997
      %v1071 = vpop.f32.mrb[0].mxu0
      %v1072 = vadd.f32 0.0, %v1071
      %v1073 = vpop.f32.mrb[0].mxu0
      %v1074 = vadd.f32 0.0, %v1073
      %1075 = vdwg.mxu0
      %1076 = vmatprep.subr.mxu0 0.0
      %1077 = vmatpush1.msra.mxu0 %v1003
      %1078 = vmatprep.subr.mxu0 0.0
      %1079 = vmatpush1.msra.mxu0 0.0
      %1080 = vmatprep.subr.mxu0 0.0
      %1081 = vmatpush1.msra.mxu0 0.0
      %1082 = vmatprep.subr.mxu0 0.0
      %1083 = vmatpush1.msra.mxu0 0.0
      %1084 = vmatprep.subr.mxu0 0.0
      %1085 = vmatpush1.msra.mxu0 0.0
      %1086 = vmatprep.subr.mxu0 0.0
      %1087 = vmatpush1.msra.mxu0 0.0
      %1088 = vmatprep.subr.mxu0 0.0
      %1089 = vmatpush1.msra.mxu0 0.0
      %1090 = vmatprep.subr.mxu0 0.0
      %1091 = vmatpush1.msra.mxu0 0.0
      %1092 = vmatprep.subr.mxu0 0.0
      %1093 = vmatpush1.msra.mxu0 0.0
      %1094 = vmatprep.subr.mxu0 0.0
      %1095 = vmatpush1.msra.mxu0 0.0
      %1096 = vmatprep.subr.mxu0 0.0
      %1097 = vmatpush1.msra.mxu0 0.0
      %1098 = vmatprep.subr.mxu0 0.0
      %1099 = vmatpush1.msra.mxu0 0.0
      %1100 = vmatprep.subr.mxu0 0.0
      %1101 = vmatpush1.msra.mxu0 0.0
      %1102 = vmatprep.subr.mxu0 0.0
      %1103 = vmatpush1.msra.mxu0 0.0
      %1104 = vmatprep.subr.mxu0 0.0
      %1105 = vmatpush1.msra.mxu0 0.0
      %1106 = vmatprep.subr.mxu0 0.0
      %1107 = vmatpush1.msra.mxu0 0.0
      %1108 = vmatprep.subr.mxu0 0.0
      %1109 = vmatpush1.msra.mxu0 0.0
      %1110 = vmatprep.subr.mxu0 0.0
      %1111 = vmatpush1.msra.mxu0 0.0
      %1112 = vmatprep.subr.mxu0 0.0
      %1113 = vmatpush1.msra.mxu0 0.0
      %1114 = vmatprep.subr.mxu0 0.0
      %1115 = vmatpush1.msra.mxu0 0.0
      %1116 = vmatprep.subr.mxu0 0.0
      %1117 = vmatpush1.msra.mxu0 0.0
      %1118 = vmatprep.subr.mxu0 0.0
      %1119 = vmatpush1.msra.mxu0 0.0
      %1120 = vmatprep.subr.mxu0 0.0
      %1121 = vmatpush1.msra.mxu0 0.0
      %1122 = vmatprep.subr.mxu0 0.0
      %1123 = vmatpush1.msra.mxu0 0.0
      %1124 = vmatprep.subr.mxu0 0.0
      %1125 = vmatpush1.msra.mxu0 0.0
      %1126 = vmatprep.subr.mxu0 0.0
      %1127 = vmatpush1.msra.mxu0 0.0
      %1128 = vmatprep.subr.mxu0 0.0
      %1129 = vmatpush1.msra.mxu0 0.0
      %1130 = vmatprep.subr.mxu0 0.0
      %1131 = vmatpush1.msra.mxu0 0.0
      %1132 = vmatprep.subr.mxu0 0.0
      %1133 = vmatpush1.msra.mxu0 0.0
      %1134 = vmatprep.subr.mxu0 0.0
      %1135 = vmatpush1.msra.mxu0 0.0
      %1136 = vmatprep.subr.mxu0 0.0
      %1137 = vmatpush1.msra.mxu0 0.0
      %1138 = vmatprep.subr.mxu0 0.0
      %1139 = vmatpush1.msra.mxu0 0.0
      %1140 = vmatprep.mubr.f32.mxu0 0.0
      %1141 = vmatmul.mubr.f32.gmra.mrb[0].mxu0 %v997
      %v1142 = vpop.f32.mrb[0].mxu0
      %v1143 = vadd.f32 0.0, %v1142
      %v1144 = vpop.f32.mrb[0].mxu0
      %1145 = vdwg.mxu0
      %v1146 = vadd.f32 %v977, %v1072
      %v1147 = vadd.f32 %v978, %v1074
      %v1148 = vadd.f32 %v979, %v1143
      %v1149 = vld [vmem:[%s300] sm:$0xff]
      %v1150 = vld [vmem:[%s300 + $0x8] sm:$0xf]
      %s1151 = scalar_lea.vmem %s1, 20
      %v1152 = vld [vmem:[%s1151] sm:$0xf]
      %v1155 = vcombine.high %v1149, %v1149
      %1156 = vrot.lane.b32.xlu0 %v1149, 108
      %v1157 = vpop.permute.xlu0 %1156
      %1158 = vrot.lane.b32.xlu0 %v1155, 108
      %v1159 = vpop.permute.xlu0 %1158
      %1160 = vrot.lane.b32.xlu0 %v1150, 108
      %v1161 = vpop.permute.xlu0 %1160
      %vm1162 = vcmask 883712
      %v1163 = vsel %vm1162, %v1157, %v1159
      %v1164 = vsel %vm1162, %v1159, %v1161
      %v1166 = vsel %vm318, %v1152, 0
      %v1168 = vsel %vm322, %v1163, 0
      %v1170 = vsel %vm322, %v1164, 0
      %v1172 = vsel %vm322, %v1161, 0
      %1174 = vmatprep.subr.mxu0 %v1170
      %1175 = vmatpush1.msra.mxu0 %v1168
      %1176 = vmatprep.subr.mxu0 0.0
      %1177 = vmatpush1.msra.mxu0 0.0
      %1178 = vmatprep.subr.mxu0 0.0
      %1179 = vmatpush1.msra.mxu0 0.0
      %1180 = vmatprep.subr.mxu0 0.0
      %1181 = vmatpush1.msra.mxu0 0.0
      %1182 = vmatprep.subr.mxu0 0.0
      %1183 = vmatpush1.msra.mxu0 0.0
      %1184 = vmatprep.subr.mxu0 0.0
      %1185 = vmatpush1.msra.mxu0 0.0
      %1186 = vmatprep.subr.mxu0 0.0
      %1187 = vmatpush1.msra.mxu0 0.0
      %1188 = vmatprep.subr.mxu0 0.0
      %1189 = vmatpush1.msra.mxu0 0.0
      %1190 = vmatprep.subr.mxu0 0.0
      %1191 = vmatpush1.msra.mxu0 0.0
      %1192 = vmatprep.subr.mxu0 0.0
      %1193 = vmatpush1.msra.mxu0 0.0
      %1194 = vmatprep.subr.mxu0 0.0
      %1195 = vmatpush1.msra.mxu0 0.0
      %1196 = vmatprep.subr.mxu0 0.0
      %1197 = vmatpush1.msra.mxu0 0.0
      %1198 = vmatprep.subr.mxu0 0.0
      %1199 = vmatpush1.msra.mxu0 0.0
      %1200 = vmatprep.subr.mxu0 0.0
      %1201 = vmatpush1.msra.mxu0 0.0
      %1202 = vmatprep.subr.mxu0 0.0
      %1203 = vmatpush1.msra.mxu0 0.0
      %1204 = vmatprep.subr.mxu0 0.0
      %1205 = vmatpush1.msra.mxu0 0.0
      %1206 = vmatprep.subr.mxu0 0.0
      %1207 = vmatpush1.msra.mxu0 0.0
      %1208 = vmatprep.subr.mxu0 0.0
      %1209 = vmatpush1.msra.mxu0 0.0
      %1210 = vmatprep.subr.mxu0 0.0
      %1211 = vmatpush1.msra.mxu0 0.0
      %1212 = vmatprep.subr.mxu0 0.0
      %1213 = vmatpush1.msra.mxu0 0.0
      %1214 = vmatprep.subr.mxu0 0.0
      %1215 = vmatpush1.msra.mxu0 0.0
      %1216 = vmatprep.subr.mxu0 0.0
      %1217 = vmatpush1.msra.mxu0 0.0
      %1218 = vmatprep.subr.mxu0 0.0
      %1219 = vmatpush1.msra.mxu0 0.0
      %1220 = vmatprep.subr.mxu0 0.0
      %1221 = vmatpush1.msra.mxu0 0.0
      %1222 = vmatprep.subr.mxu0 0.0
      %1223 = vmatpush1.msra.mxu0 0.0
      %1224 = vmatprep.subr.mxu0 0.0
      %1225 = vmatpush1.msra.mxu0 0.0
      %1226 = vmatprep.subr.mxu0 0.0
      %1227 = vmatpush1.msra.mxu0 0.0
      %1228 = vmatprep.subr.mxu0 0.0
      %1229 = vmatpush1.msra.mxu0 0.0
      %1230 = vmatprep.subr.mxu0 0.0
      %1231 = vmatpush1.msra.mxu0 0.0
      %1232 = vmatprep.subr.mxu0 0.0
      %1233 = vmatpush1.msra.mxu0 0.0
      %1234 = vmatprep.subr.mxu0 0.0
      %1235 = vmatpush1.msra.mxu0 0.0
      %1236 = vmatprep.subr.mxu0 0.0
      %1237 = vmatpush1.msra.mxu0 0.0
      %1238 = vmatprep.mubr.f32.mxu0 0.0
      %1239 = vmatmul.mubr.f32.gmra.mrb[0].mxu0 %v1166
      %v1240 = vpop.f32.mrb[0].mxu0
      %v1241 = vadd.f32 0.0, %v1240
      %v1242 = vpop.f32.mrb[0].mxu0
      %v1243 = vadd.f32 0.0, %v1242
      %1244 = vdwg.mxu0
      %1245 = vmatprep.subr.mxu0 0.0
      %1246 = vmatpush1.msra.mxu0 %v1172
      %1247 = vmatprep.subr.mxu0 0.0
      %1248 = vmatpush1.msra.mxu0 0.0
      %1249 = vmatprep.subr.mxu0 0.0
      %1250 = vmatpush1.msra.mxu0 0.0
      %1251 = vmatprep.subr.mxu0 0.0
      %1252 = vmatpush1.msra.mxu0 0.0
      %1253 = vmatprep.subr.mxu0 0.0
      %1254 = vmatpush1.msra.mxu0 0.0
      %1255 = vmatprep.subr.mxu0 0.0
      %1256 = vmatpush1.msra.mxu0 0.0
      %1257 = vmatprep.subr.mxu0 0.0
      %1258 = vmatpush1.msra.mxu0 0.0
      %1259 = vmatprep.subr.mxu0 0.0
      %1260 = vmatpush1.msra.mxu0 0.0
      %1261 = vmatprep.subr.mxu0 0.0
      %1262 = vmatpush1.msra.mxu0 0.0
      %1263 = vmatprep.subr.mxu0 0.0
      %1264 = vmatpush1.msra.mxu0 0.0
      %1265 = vmatprep.subr.mxu0 0.0
      %1266 = vmatpush1.msra.mxu0 0.0
      %1267 = vmatprep.subr.mxu0 0.0
      %1268 = vmatpush1.msra.mxu0 0.0
      %1269 = vmatprep.subr.mxu0 0.0
      %1270 = vmatpush1.msra.mxu0 0.0
      %1271 = vmatprep.subr.mxu0 0.0
      %1272 = vmatpush1.msra.mxu0 0.0
      %1273 = vmatprep.subr.mxu0 0.0
      %1274 = vmatpush1.msra.mxu0 0.0
      %1275 = vmatprep.subr.mxu0 0.0
      %1276 = vmatpush1.msra.mxu0 0.0
      %1277 = vmatprep.subr.mxu0 0.0
      %1278 = vmatpush1.msra.mxu0 0.0
      %1279 = vmatprep.subr.mxu0 0.0
      %1280 = vmatpush1.msra.mxu0 0.0
      %1281 = vmatprep.subr.mxu0 0.0
      %1282 = vmatpush1.msra.mxu0 0.0
      %1283 = vmatprep.subr.mxu0 0.0
      %1284 = vmatpush1.msra.mxu0 0.0
      %1285 = vmatprep.subr.mxu0 0.0
      %1286 = vmatpush1.msra.mxu0 0.0
      %1287 = vmatprep.subr.mxu0 0.0
      %1288 = vmatpush1.msra.mxu0 0.0
      %1289 = vmatprep.subr.mxu0 0.0
      %1290 = vmatpush1.msra.mxu0 0.0
      %1291 = vmatprep.subr.mxu0 0.0
      %1292 = vmatpush1.msra.mxu0 0.0
      %1293 = vmatprep.subr.mxu0 0.0
      %1294 = vmatpush1.msra.mxu0 0.0
      %1295 = vmatprep.subr.mxu0 0.0
      %1296 = vmatpush1.msra.mxu0 0.0
      %1297 = vmatprep.subr.mxu0 0.0
      %1298 = vmatpush1.msra.mxu0 0.0
      %1299 = vmatprep.subr.mxu0 0.0
      %1300 = vmatpush1.msra.mxu0 0.0
      %1301 = vmatprep.subr.mxu0 0.0
      %1302 = vmatpush1.msra.mxu0 0.0
      %1303 = vmatprep.subr.mxu0 0.0
      %1304 = vmatpush1.msra.mxu0 0.0
      %1305 = vmatprep.subr.mxu0 0.0
      %1306 = vmatpush1.msra.mxu0 0.0
      %1307 = vmatprep.subr.mxu0 0.0
      %1308 = vmatpush1.msra.mxu0 0.0
      %1309 = vmatprep.mubr.f32.mxu0 0.0
      %1310 = vmatmul.mubr.f32.gmra.mrb[0].mxu0 %v1166
      %v1311 = vpop.f32.mrb[0].mxu0
      %v1312 = vadd.f32 0.0, %v1311
      %v1313 = vpop.f32.mrb[0].mxu0
      %1314 = vdwg.mxu0
      %v1315 = vadd.f32 %v1146, %v1241
      %v1316 = vadd.f32 %v1147, %v1243
      %v1317 = vadd.f32 %v1148, %v1312
      %v1318 = vld [vmem:[%s300] sm:$0xff]
      %v1319 = vld [vmem:[%s300 + $0x8] sm:$0xf]
      %s1320 = scalar_lea.vmem %s1, 24
      %v1321 = vld [vmem:[%s1320] sm:$0xf]
      %v1324 = vcombine.high %v1318, %v1318
      %1325 = vrot.lane.b32.xlu0 %v1318, 92
      %v1326 = vpop.permute.xlu0 %1325
      %1327 = vrot.lane.b32.xlu0 %v1324, 92
      %v1328 = vpop.permute.xlu0 %1327
      %1329 = vrot.lane.b32.xlu0 %v1319, 92
      %v1330 = vpop.permute.xlu0 %1329
      %vm1331 = vcmask 752640
      %v1332 = vsel %vm1331, %v1326, %v1328
      %v1333 = vsel %vm1331, %v1328, %v1330
      %v1335 = vsel %vm318, %v1321, 0
      %v1337 = vsel %vm322, %v1332, 0
      %v1339 = vsel %vm322, %v1333, 0
      %v1341 = vsel %vm322, %v1330, 0
      %1343 = vmatprep.subr.mxu0 %v1339
      %1344 = vmatpush1.msra.mxu0 %v1337
      %1345 = vmatprep.subr.mxu0 0.0
      %1346 = vmatpush1.msra.mxu0 0.0
      %1347 = vmatprep.subr.mxu0 0.0
      %1348 = vmatpush1.msra.mxu0 0.0
      %1349 = vmatprep.subr.mxu0 0.0
      %1350 = vmatpush1.msra.mxu0 0.0
      %1351 = vmatprep.subr.mxu0 0.0
      %1352 = vmatpush1.msra.mxu0 0.0
      %1353 = vmatprep.subr.mxu0 0.0
      %1354 = vmatpush1.msra.mxu0 0.0
      %1355 = vmatprep.subr.mxu0 0.0
      %1356 = vmatpush1.msra.mxu0 0.0
      %1357 = vmatprep.subr.mxu0 0.0
      %1358 = vmatpush1.msra.mxu0 0.0
      %1359 = vmatprep.subr.mxu0 0.0
      %1360 = vmatpush1.msra.mxu0 0.0
      %1361 = vmatprep.subr.mxu0 0.0
      %1362 = vmatpush1.msra.mxu0 0.0
      %1363 = vmatprep.subr.mxu0 0.0
      %1364 = vmatpush1.msra.mxu0 0.0
      %1365 = vmatprep.subr.mxu0 0.0
      %1366 = vmatpush1.msra.mxu0 0.0
      %1367 = vmatprep.subr.mxu0 0.0
      %1368 = vmatpush1.msra.mxu0 0.0
      %1369 = vmatprep.subr.mxu0 0.0
      %1370 = vmatpush1.msra.mxu0 0.0
      %1371 = vmatprep.subr.mxu0 0.0
      %1372 = vmatpush1.msra.mxu0 0.0
      %1373 = vmatprep.subr.mxu0 0.0
      %1374 = vmatpush1.msra.mxu0 0.0
      %1375 = vmatprep.subr.mxu0 0.0
      %1376 = vmatpush1.msra.mxu0 0.0
      %1377 = vmatprep.subr.mxu0 0.0
      %1378 = vmatpush1.msra.mxu0 0.0
      %1379 = vmatprep.subr.mxu0 0.0
      %1380 = vmatpush1.msra.mxu0 0.0
      %1381 = vmatprep.subr.mxu0 0.0
      %1382 = vmatpush1.msra.mxu0 0.0
      %1383 = vmatprep.subr.mxu0 0.0
      %1384 = vmatpush1.msra.mxu0 0.0
      %1385 = vmatprep.subr.mxu0 0.0
      %1386 = vmatpush1.msra.mxu0 0.0
      %1387 = vmatprep.subr.mxu0 0.0
      %1388 = vmatpush1.msra.mxu0 0.0
      %1389 = vmatprep.subr.mxu0 0.0
      %1390 = vmatpush1.msra.mxu0 0.0
      %1391 = vmatprep.subr.mxu0 0.0
      %1392 = vmatpush1.msra.mxu0 0.0
      %1393 = vmatprep.subr.mxu0 0.0
      %1394 = vmatpush1.msra.mxu0 0.0
      %1395 = vmatprep.subr.mxu0 0.0
      %1396 = vmatpush1.msra.mxu0 0.0
      %1397 = vmatprep.subr.mxu0 0.0
      %1398 = vmatpush1.msra.mxu0 0.0
      %1399 = vmatprep.subr.mxu0 0.0
      %1400 = vmatpush1.msra.mxu0 0.0
      %1401 = vmatprep.subr.mxu0 0.0
      %1402 = vmatpush1.msra.mxu0 0.0
      %1403 = vmatprep.subr.mxu0 0.0
      %1404 = vmatpush1.msra.mxu0 0.0
      %1405 = vmatprep.subr.mxu0 0.0
      %1406 = vmatpush1.msra.mxu0 0.0
      %1407 = vmatprep.mubr.f32.mxu0 0.0
      %1408 = vmatmul.mubr.f32.gmra.mrb[0].mxu0 %v1335
      %v1409 = vpop.f32.mrb[0].mxu0
      %v1410 = vadd.f32 0.0, %v1409
      %v1411 = vpop.f32.mrb[0].mxu0
      %v1412 = vadd.f32 0.0, %v1411
      %1413 = vdwg.mxu0
      %1414 = vmatprep.subr.mxu0 0.0
      %1415 = vmatpush1.msra.mxu0 %v1341
      %1416 = vmatprep.subr.mxu0 0.0
      %1417 = vmatpush1.msra.mxu0 0.0
      %1418 = vmatprep.subr.mxu0 0.0
      %1419 = vmatpush1.msra.mxu0 0.0
      %1420 = vmatprep.subr.mxu0 0.0
      %1421 = vmatpush1.msra.mxu0 0.0
      %1422 = vmatprep.subr.mxu0 0.0
      %1423 = vmatpush1.msra.mxu0 0.0
      %1424 = vmatprep.subr.mxu0 0.0
      %1425 = vmatpush1.msra.mxu0 0.0
      %1426 = vmatprep.subr.mxu0 0.0
      %1427 = vmatpush1.msra.mxu0 0.0
      %1428 = vmatprep.subr.mxu0 0.0
      %1429 = vmatpush1.msra.mxu0 0.0
      %1430 = vmatprep.subr.mxu0 0.0
      %1431 = vmatpush1.msra.mxu0 0.0
      %1432 = vmatprep.subr.mxu0 0.0
      %1433 = vmatpush1.msra.mxu0 0.0
      %1434 = vmatprep.subr.mxu0 0.0
      %1435 = vmatpush1.msra.mxu0 0.0
      %1436 = vmatprep.subr.mxu0 0.0
      %1437 = vmatpush1.msra.mxu0 0.0
      %1438 = vmatprep.subr.mxu0 0.0
      %1439 = vmatpush1.msra.mxu0 0.0
      %1440 = vmatprep.subr.mxu0 0.0
      %1441 = vmatpush1.msra.mxu0 0.0
      %1442 = vmatprep.subr.mxu0 0.0
      %1443 = vmatpush1.msra.mxu0 0.0
      %1444 = vmatprep.subr.mxu0 0.0
      %1445 = vmatpush1.msra.mxu0 0.0
      %1446 = vmatprep.subr.mxu0 0.0
      %1447 = vmatpush1.msra.mxu0 0.0
      %1448 = vmatprep.subr.mxu0 0.0
      %1449 = vmatpush1.msra.mxu0 0.0
      %1450 = vmatprep.subr.mxu0 0.0
      %1451 = vmatpush1.msra.mxu0 0.0
      %1452 = vmatprep.subr.mxu0 0.0
      %1453 = vmatpush1.msra.mxu0 0.0
      %1454 = vmatprep.subr.mxu0 0.0
      %1455 = vmatpush1.msra.mxu0 0.0
      %1456 = vmatprep.subr.mxu0 0.0
      %1457 = vmatpush1.msra.mxu0 0.0
      %1458 = vmatprep.subr.mxu0 0.0
      %1459 = vmatpush1.msra.mxu0 0.0
      %1460 = vmatprep.subr.mxu0 0.0
      %1461 = vmatpush1.msra.mxu0 0.0
      %1462 = vmatprep.subr.mxu0 0.0
      %1463 = vmatpush1.msra.mxu0 0.0
      %1464 = vmatprep.subr.mxu0 0.0
      %1465 = vmatpush1.msra.mxu0 0.0
      %1466 = vmatprep.subr.mxu0 0.0
      %1467 = vmatpush1.msra.mxu0 0.0
      %1468 = vmatprep.subr.mxu0 0.0
      %1469 = vmatpush1.msra.mxu0 0.0
      %1470 = vmatprep.subr.mxu0 0.0
      %1471 = vmatpush1.msra.mxu0 0.0
      %1472 = vmatprep.subr.mxu0 0.0
      %1473 = vmatpush1.msra.mxu0 0.0
      %1474 = vmatprep.subr.mxu0 0.0
      %1475 = vmatpush1.msra.mxu0 0.0
      %1476 = vmatprep.subr.mxu0 0.0
      %1477 = vmatpush1.msra.mxu0 0.0
      %1478 = vmatprep.mubr.f32.mxu0 0.0
      %1479 = vmatmul.mubr.f32.gmra.mrb[0].mxu0 %v1335
      %v1480 = vpop.f32.mrb[0].mxu0
      %v1481 = vadd.f32 0.0, %v1480
      %v1482 = vpop.f32.mrb[0].mxu0
      %1483 = vdwg.mxu0
      %v1484 = vadd.f32 %v1315, %v1410
      %v1485 = vadd.f32 %v1316, %v1412
      %v1486 = vadd.f32 %v1317, %v1481
      %v1487 = vld [vmem:[%s300] sm:$0xff]
      %v1488 = vld [vmem:[%s300 + $0x8] sm:$0xf]
      %s1489 = scalar_lea.vmem %s1, 28
      %v1490 = vld [vmem:[%s1489] sm:$0xf]
      %v1493 = vcombine.high %v1487, %v1487
      %1494 = vrot.lane.b32.xlu0 %v1487, 91
      %v1495 = vpop.permute.xlu0 %1494
      %1496 = vrot.lane.b32.xlu0 %v1493, 91
      %v1497 = vpop.permute.xlu0 %1496
      %1498 = vrot.lane.b32.xlu0 %v1488, 91
      %v1499 = vpop.permute.xlu0 %1498
      %vm1500 = vcmask 744448
      %v1501 = vsel %vm1500, %v1495, %v1497
      %v1502 = vsel %vm1500, %v1497, %v1499
      %v1504 = vsel %vm318, %v1490, 0
      %v1506 = vsel %vm322, %v1501, 0
      %v1508 = vsel %vm322, %v1502, 0
      %v1510 = vsel %vm322, %v1499, 0
      %1512 = vmatprep.subr.mxu0 %v1508
      %1513 = vmatpush1.msra.mxu0 %v1506
      %1514 = vmatprep.subr.mxu0 0.0
      %1515 = vmatpush1.msra.mxu0 0.0
      %1516 = vmatprep.subr.mxu0 0.0
      %1517 = vmatpush1.msra.mxu0 0.0
      %1518 = vmatprep.subr.mxu0 0.0
      %1519 = vmatpush1.msra.mxu0 0.0
      %1520 = vmatprep.subr.mxu0 0.0
      %1521 = vmatpush1.msra.mxu0 0.0
      %1522 = vmatprep.subr.mxu0 0.0
      %1523 = vmatpush1.msra.mxu0 0.0
      %1524 = vmatprep.subr.mxu0 0.0
      %1525 = vmatpush1.msra.mxu0 0.0
      %1526 = vmatprep.subr.mxu0 0.0
      %1527 = vmatpush1.msra.mxu0 0.0
      %1528 = vmatprep.subr.mxu0 0.0
      %1529 = vmatpush1.msra.mxu0 0.0
      %1530 = vmatprep.subr.mxu0 0.0
      %1531 = vmatpush1.msra.mxu0 0.0
      %1532 = vmatprep.subr.mxu0 0.0
      %1533 = vmatpush1.msra.mxu0 0.0
      %1534 = vmatprep.subr.mxu0 0.0
      %1535 = vmatpush1.msra.mxu0 0.0
      %1536 = vmatprep.subr.mxu0 0.0
      %1537 = vmatpush1.msra.mxu0 0.0
      %1538 = vmatprep.subr.mxu0 0.0
      %1539 = vmatpush1.msra.mxu0 0.0
      %1540 = vmatprep.subr.mxu0 0.0
      %1541 = vmatpush1.msra.mxu0 0.0
      %1542 = vmatprep.subr.mxu0 0.0
      %1543 = vmatpush1.msra.mxu0 0.0
      %1544 = vmatprep.subr.mxu0 0.0
      %1545 = vmatpush1.msra.mxu0 0.0
      %1546 = vmatprep.subr.mxu0 0.0
      %1547 = vmatpush1.msra.mxu0 0.0
      %1548 = vmatprep.subr.mxu0 0.0
      %1549 = vmatpush1.msra.mxu0 0.0
      %1550 = vmatprep.subr.mxu0 0.0
      %1551 = vmatpush1.msra.mxu0 0.0
      %1552 = vmatprep.subr.mxu0 0.0
      %1553 = vmatpush1.msra.mxu0 0.0
      %1554 = vmatprep.subr.mxu0 0.0
      %1555 = vmatpush1.msra.mxu0 0.0
      %1556 = vmatprep.subr.mxu0 0.0
      %1557 = vmatpush1.msra.mxu0 0.0
      %1558 = vmatprep.subr.mxu0 0.0
      %1559 = vmatpush1.msra.mxu0 0.0
      %1560 = vmatprep.subr.mxu0 0.0
      %1561 = vmatpush1.msra.mxu0 0.0
      %1562 = vmatprep.subr.mxu0 0.0
      %1563 = vmatpush1.msra.mxu0 0.0
      %1564 = vmatprep.subr.mxu0 0.0
      %1565 = vmatpush1.msra.mxu0 0.0
      %1566 = vmatprep.subr.mxu0 0.0
      %1567 = vmatpush1.msra.mxu0 0.0
      %1568 = vmatprep.subr.mxu0 0.0
      %1569 = vmatpush1.msra.mxu0 0.0
      %1570 = vmatprep.subr.mxu0 0.0
      %1571 = vmatpush1.msra.mxu0 0.0
      %1572 = vmatprep.subr.mxu0 0.0
      %1573 = vmatpush1.msra.mxu0 0.0
      %1574 = vmatprep.subr.mxu0 0.0
      %1575 = vmatpush1.msra.mxu0 0.0
      %1576 = vmatprep.mubr.f32.mxu0 0.0
      %1577 = vmatmul.mubr.f32.gmra.mrb[0].mxu0 %v1504
      %v1578 = vpop.f32.mrb[0].mxu0
      %v1579 = vadd.f32 0.0, %v1578
      %v1580 = vpop.f32.mrb[0].mxu0
      %v1581 = vadd.f32 0.0, %v1580
      %1582 = vdwg.mxu0
      %1583 = vmatprep.subr.mxu0 0.0
      %1584 = vmatpush1.msra.mxu0 %v1510
      %1585 = vmatprep.subr.mxu0 0.0
      %1586 = vmatpush1.msra.mxu0 0.0
      %1587 = vmatprep.subr.mxu0 0.0
      %1588 = vmatpush1.msra.mxu0 0.0
      %1589 = vmatprep.subr.mxu0 0.0
      %1590 = vmatpush1.msra.mxu0 0.0
      %1591 = vmatprep.subr.mxu0 0.0
      %1592 = vmatpush1.msra.mxu0 0.0
      %1593 = vmatprep.subr.mxu0 0.0
      %1594 = vmatpush1.msra.mxu0 0.0
      %1595 = vmatprep.subr.mxu0 0.0
      %1596 = vmatpush1.msra.mxu0 0.0
      %1597 = vmatprep.subr.mxu0 0.0
      %1598 = vmatpush1.msra.mxu0 0.0
      %1599 = vmatprep.subr.mxu0 0.0
      %1600 = vmatpush1.msra.mxu0 0.0
      %1601 = vmatprep.subr.mxu0 0.0
      %1602 = vmatpush1.msra.mxu0 0.0
      %1603 = vmatprep.subr.mxu0 0.0
      %1604 = vmatpush1.msra.mxu0 0.0
      %1605 = vmatprep.subr.mxu0 0.0
      %1606 = vmatpush1.msra.mxu0 0.0
      %1607 = vmatprep.subr.mxu0 0.0
      %1608 = vmatpush1.msra.mxu0 0.0
      %1609 = vmatprep.subr.mxu0 0.0
      %1610 = vmatpush1.msra.mxu0 0.0
      %1611 = vmatprep.subr.mxu0 0.0
      %1612 = vmatpush1.msra.mxu0 0.0
      %1613 = vmatprep.subr.mxu0 0.0
      %1614 = vmatpush1.msra.mxu0 0.0
      %1615 = vmatprep.subr.mxu0 0.0
      %1616 = vmatpush1.msra.mxu0 0.0
      %1617 = vmatprep.subr.mxu0 0.0
      %1618 = vmatpush1.msra.mxu0 0.0
      %1619 = vmatprep.subr.mxu0 0.0
      %1620 = vmatpush1.msra.mxu0 0.0
      %1621 = vmatprep.subr.mxu0 0.0
      %1622 = vmatpush1.msra.mxu0 0.0
      %1623 = vmatprep.subr.mxu0 0.0
      %1624 = vmatpush1.msra.mxu0 0.0
      %1625 = vmatprep.subr.mxu0 0.0
      %1626 = vmatpush1.msra.mxu0 0.0
      %1627 = vmatprep.subr.mxu0 0.0
      %1628 = vmatpush1.msra.mxu0 0.0
      %1629 = vmatprep.subr.mxu0 0.0
      %1630 = vmatpush1.msra.mxu0 0.0
      %1631 = vmatprep.subr.mxu0 0.0
      %1632 = vmatpush1.msra.mxu0 0.0
      %1633 = vmatprep.subr.mxu0 0.0
      %1634 = vmatpush1.msra.mxu0 0.0
      %1635 = vmatprep.subr.mxu0 0.0
      %1636 = vmatpush1.msra.mxu0 0.0
      %1637 = vmatprep.subr.mxu0 0.0
      %1638 = vmatpush1.msra.mxu0 0.0
      %1639 = vmatprep.subr.mxu0 0.0
      %1640 = vmatpush1.msra.mxu0 0.0
      %1641 = vmatprep.subr.mxu0 0.0
      %1642 = vmatpush1.msra.mxu0 0.0
      %1643 = vmatprep.subr.mxu0 0.0
      %1644 = vmatpush1.msra.mxu0 0.0
      %1645 = vmatprep.subr.mxu0 0.0
      %1646 = vmatpush1.msra.mxu0 0.0
      %1647 = vmatprep.mubr.f32.mxu0 0.0
      %1648 = vmatmul.mubr.f32.gmra.mrb[0].mxu0 %v1504
      %v1649 = vpop.f32.mrb[0].mxu0
      %v1650 = vadd.f32 0.0, %v1649
      %v1651 = vpop.f32.mrb[0].mxu0
      %1652 = vdwg.mxu0
      %v1653 = vadd.f32 %v1484, %v1579
      %v1654 = vadd.f32 %v1485, %v1581
      %v1655 = vadd.f32 %v1486, %v1650
      %v1656 = vld [vmem:[%s300] sm:$0xff]
      %v1657 = vld [vmem:[%s300 + $0x8] sm:$0xf]
      %s1658 = scalar_lea.vmem %s1, 32
      %v1659 = vld [vmem:[%s1658] sm:$0xf]
      %v1662 = vcombine.high %v1656, %v1656
      %1663 = vrot.lane.b32.xlu0 %v1656, 90
      %v1664 = vpop.permute.xlu0 %1663
      %1665 = vrot.lane.b32.xlu0 %v1662, 90
      %v1666 = vpop.permute.xlu0 %1665
      %1667 = vrot.lane.b32.xlu0 %v1657, 90
      %v1668 = vpop.permute.xlu0 %1667
      %vm1669 = vcmask 736256
      %v1670 = vsel %vm1669, %v1664, %v1666
      %v1671 = vsel %vm1669, %v1666, %v1668
      %v1673 = vsel %vm318, %v1659, 0
      %v1675 = vsel %vm322, %v1670, 0
      %v1677 = vsel %vm322, %v1671, 0
      %v1679 = vsel %vm322, %v1668, 0
      %1681 = vmatprep.subr.mxu0 %v1677
      %1682 = vmatpush1.msra.mxu0 %v1675
      %1683 = vmatprep.subr.mxu0 0.0
      %1684 = vmatpush1.msra.mxu0 0.0
      %1685 = vmatprep.subr.mxu0 0.0
      %1686 = vmatpush1.msra.mxu0 0.0
      %1687 = vmatprep.subr.mxu0 0.0
      %1688 = vmatpush1.msra.mxu0 0.0
      %1689 = vmatprep.subr.mxu0 0.0
      %1690 = vmatpush1.msra.mxu0 0.0
      %1691 = vmatprep.subr.mxu0 0.0
      %1692 = vmatpush1.msra.mxu0 0.0
      %1693 = vmatprep.subr.mxu0 0.0
      %1694 = vmatpush1.msra.mxu0 0.0
      %1695 = vmatprep.subr.mxu0 0.0
      %1696 = vmatpush1.msra.mxu0 0.0
      %1697 = vmatprep.subr.mxu0 0.0
      %1698 = vmatpush1.msra.mxu0 0.0
      %1699 = vmatprep.subr.mxu0 0.0
      %1700 = vmatpush1.msra.mxu0 0.0
      %1701 = vmatprep.subr.mxu0 0.0
      %1702 = vmatpush1.msra.mxu0 0.0
      %1703 = vmatprep.subr.mxu0 0.0
      %1704 = vmatpush1.msra.mxu0 0.0
      %1705 = vmatprep.subr.mxu0 0.0
      %1706 = vmatpush1.msra.mxu0 0.0
      %1707 = vmatprep.subr.mxu0 0.0
      %1708 = vmatpush1.msra.mxu0 0.0
      %1709 = vmatprep.subr.mxu0 0.0
      %1710 = vmatpush1.msra.mxu0 0.0
      %1711 = vmatprep.subr.mxu0 0.0
      %1712 = vmatpush1.msra.mxu0 0.0
      %1713 = vmatprep.subr.mxu0 0.0
      %1714 = vmatpush1.msra.mxu0 0.0
      %1715 = vmatprep.subr.mxu0 0.0
      %1716 = vmatpush1.msra.mxu0 0.0
      %1717 = vmatprep.subr.mxu0 0.0
      %1718 = vmatpush1.msra.mxu0 0.0
      %1719 = vmatprep.subr.mxu0 0.0
      %1720 = vmatpush1.msra.mxu0 0.0
      %1721 = vmatprep.subr.mxu0 0.0
      %1722 = vmatpush1.msra.mxu0 0.0
      %1723 = vmatprep.subr.mxu0 0.0
      %1724 = vmatpush1.msra.mxu0 0.0
      %1725 = vmatprep.subr.mxu0 0.0
      %1726 = vmatpush1.msra.mxu0 0.0
      %1727 = vmatprep.subr.mxu0 0.0
      %1728 = vmatpush1.msra.mxu0 0.0
      %1729 = vmatprep.subr.mxu0 0.0
      %1730 = vmatpush1.msra.mxu0 0.0
      %1731 = vmatprep.subr.mxu0 0.0
      %1732 = vmatpush1.msra.mxu0 0.0
      %1733 = vmatprep.subr.mxu0 0.0
      %1734 = vmatpush1.msra.mxu0 0.0
      %1735 = vmatprep.subr.mxu0 0.0
      %1736 = vmatpush1.msra.mxu0 0.0
      %1737 = vmatprep.subr.mxu0 0.0
      %1738 = vmatpush1.msra.mxu0 0.0
      %1739 = vmatprep.subr.mxu0 0.0
      %1740 = vmatpush1.msra.mxu0 0.0
      %1741 = vmatprep.subr.mxu0 0.0
      %1742 = vmatpush1.msra.mxu0 0.0
      %1743 = vmatprep.subr.mxu0 0.0
      %1744 = vmatpush1.msra.mxu0 0.0
      %1745 = vmatprep.mubr.f32.mxu0 0.0
      %1746 = vmatmul.mubr.f32.gmra.mrb[0].mxu0 %v1673
      %v1747 = vpop.f32.mrb[0].mxu0
      %v1748 = vadd.f32 0.0, %v1747
      %v1749 = vpop.f32.mrb[0].mxu0
      %v1750 = vadd.f32 0.0, %v1749
      %1751 = vdwg.mxu0
      %1752 = vmatprep.subr.mxu0 0.0
      %1753 = vmatpush1.msra.mxu0 %v1679
      %1754 = vmatprep.subr.mxu0 0.0
      %1755 = vmatpush1.msra.mxu0 0.0
      %1756 = vmatprep.subr.mxu0 0.0
      %1757 = vmatpush1.msra.mxu0 0.0
      %1758 = vmatprep.subr.mxu0 0.0
      %1759 = vmatpush1.msra.mxu0 0.0
      %1760 = vmatprep.subr.mxu0 0.0
      %1761 = vmatpush1.msra.mxu0 0.0
      %1762 = vmatprep.subr.mxu0 0.0
      %1763 = vmatpush1.msra.mxu0 0.0
      %1764 = vmatprep.subr.mxu0 0.0
      %1765 = vmatpush1.msra.mxu0 0.0
      %1766 = vmatprep.subr.mxu0 0.0
      %1767 = vmatpush1.msra.mxu0 0.0
      %1768 = vmatprep.subr.mxu0 0.0
      %1769 = vmatpush1.msra.mxu0 0.0
      %1770 = vmatprep.subr.mxu0 0.0
      %1771 = vmatpush1.msra.mxu0 0.0
      %1772 = vmatprep.subr.mxu0 0.0
      %1773 = vmatpush1.msra.mxu0 0.0
      %1774 = vmatprep.subr.mxu0 0.0
      %1775 = vmatpush1.msra.mxu0 0.0
      %1776 = vmatprep.subr.mxu0 0.0
      %1777 = vmatpush1.msra.mxu0 0.0
      %1778 = vmatprep.subr.mxu0 0.0
      %1779 = vmatpush1.msra.mxu0 0.0
      %1780 = vmatprep.subr.mxu0 0.0
      %1781 = vmatpush1.msra.mxu0 0.0
      %1782 = vmatprep.subr.mxu0 0.0
      %1783 = vmatpush1.msra.mxu0 0.0
      %1784 = vmatprep.subr.mxu0 0.0
      %1785 = vmatpush1.msra.mxu0 0.0
      %1786 = vmatprep.subr.mxu0 0.0
      %1787 = vmatpush1.msra.mxu0 0.0
      %1788 = vmatprep.subr.mxu0 0.0
      %1789 = vmatpush1.msra.mxu0 0.0
      %1790 = vmatprep.subr.mxu0 0.0
      %1791 = vmatpush1.msra.mxu0 0.0
      %1792 = vmatprep.subr.mxu0 0.0
      %1793 = vmatpush1.msra.mxu0 0.0
      %1794 = vmatprep.subr.mxu0 0.0
      %1795 = vmatpush1.msra.mxu0 0.0
      %1796 = vmatprep.subr.mxu0 0.0
      %1797 = vmatpush1.msra.mxu0 0.0
      %1798 = vmatprep.subr.mxu0 0.0
      %1799 = vmatpush1.msra.mxu0 0.0
      %1800 = vmatprep.subr.mxu0 0.0
      %1801 = vmatpush1.msra.mxu0 0.0
      %1802 = vmatprep.subr.mxu0 0.0
      %1803 = vmatpush1.msra.mxu0 0.0
      %1804 = vmatprep.subr.mxu0 0.0
      %1805 = vmatpush1.msra.mxu0 0.0
      %1806 = vmatprep.subr.mxu0 0.0
      %1807 = vmatpush1.msra.mxu0 0.0
      %1808 = vmatprep.subr.mxu0 0.0
      %1809 = vmatpush1.msra.mxu0 0.0
      %1810 = vmatprep.subr.mxu0 0.0
      %1811 = vmatpush1.msra.mxu0 0.0
      %1812 = vmatprep.subr.mxu0 0.0
      %1813 = vmatpush1.msra.mxu0 0.0
      %1814 = vmatprep.subr.mxu0 0.0
      %1815 = vmatpush1.msra.mxu0 0.0
      %1816 = vmatprep.mubr.f32.mxu0 0.0
      %1817 = vmatmul.mubr.f32.gmra.mrb[0].mxu0 %v1673
      %v1818 = vpop.f32.mrb[0].mxu0
      %v1819 = vadd.f32 0.0, %v1818
      %v1820 = vpop.f32.mrb[0].mxu0
      %1821 = vdwg.mxu0
      %v1822 = vadd.f32 %v1653, %v1748
      %v1823 = vadd.f32 %v1654, %v1750
      %v1824 = vadd.f32 %v1655, %v1819
      %vm1825 = vcmp.ge.f32.partialorder %v1822, 0.0
      %vm1826 = vcmp.ge.f32.partialorder %v1823, 0.0
      %vm1827 = vcmp.ge.f32.partialorder %v1824, 0.0
      %v1828 = vld [vmem:[%s3] sm:$0xf]
      %1830 = vset.pattern.permute.xlu0 0
      %1831 = vperm.xlu0 %1830, %v1828
      %v1832 = vpop.permute.xlu0 %1831
      %v1834 = vmul.f32 %v1832, %v1822
      %v1835 = vmul.f32 %v1832, %v1823
      %v1836 = vmul.f32 %v1832, %v1824
      %v1837 = vsel %vm1825, %v1822, %v1834
      %v1838 = vsel %vm1826, %v1823, %v1835
      %v1839 = vsel %vm1827, %v1824, %v1836
      %v1840 = vld [vmem:[%s7] sm:$0x7]
      %v1842 = vlaneseq
      %v1843 = vshrl.u32 %v1842, 7
      %v1844 = vsub.s32 0, %v1843
      %v1845 = vrot.slane %v1840, %v1844
      %v1846 = vlaneseq
      %v1847 = vshrl.u32 %v1846, 7
      %v1848 = vsub.s32 1, %v1847
      %v1849 = vrot.slane %v1840, %v1848
      %v1850 = vlaneseq
      %v1851 = vshrl.u32 %v1850, 7
      %v1852 = vsub.s32 2, %v1851
      %v1853 = vrot.slane %v1840, %v1852
      %v1857 = vmul.f32 %v1837, %v1845
      %v1858 = vmul.f32 %v1838, %v1849
      %v1859 = vmul.f32 %v1839, %v1853
      %1863 = vrot.lane.b32.xlu0 %v1857, 19
      %v1864 = vpop.permute.xlu0 %1863
      %1865 = vrot.lane.b32.xlu0 %v1858, 19
      %v1866 = vpop.permute.xlu0 %1865
      %1867 = vrot.lane.b32.xlu0 %v1859, 19
      %v1868 = vpop.permute.xlu0 %1867
      %vm1869 = vcmask 154624
      %v1870 = vsel %vm1869, %v1864, %v1866
      %v1871 = vsel %vm1869, %v1866, %v1868
      %v1874 = vsel %vm1869, 0.0, %v1864
      %vm1875 = vcmask 416768
      %v1876 = vsel %vm1875, %v1871, 0.0
      %v1878 = vcombine.low %v1874, %v1870
      %1880 = vst [vmem:[#allocation2] sm:$0xff] %v1878
      %vm1881 = vcmask 699392
      %1882 = vst.msk [vmem:[#allocation2 + $0x8] sm:$0xf] %vm1881, %v1876
      %v1883 = vld [vmem:[%s5] sm:$0x7]
      %1885 = vset.pattern.permute.xlu0 0
      %1886 = vperm.xlu0 %1885, %v1883
      %v1887 = vpop.permute.xlu0 %1886
      %v1889 = vld [vmem:[#allocation2] sm:$0xff]
      %v1890 = vld [vmem:[#allocation2 + $0x8] sm:$0xf]
      %v1891 = vld [vmem:[%s4] sm:$0x7]
      %v1894 = vcombine.high %v1889, %v1889
      %v1896 = vsel %vm318, %v1891, 0
      %v1898 = vsel %vm322, %v1889, 0
      %v1900 = vsel %vm322, %v1894, 0
      %v1902 = vsel %vm322, %v1890, 0
      %1904 = vmatprep.subr.mxu0 %v1900
      %1905 = vmatpush1.msra.mxu0 %v1898
      %1906 = vmatprep.subr.mxu0 0.0
      %1907 = vmatpush1.msra.mxu0 0.0
      %1908 = vmatprep.subr.mxu0 0.0
      %1909 = vmatpush1.msra.mxu0 0.0
      %1910 = vmatprep.subr.mxu0 0.0
      %1911 = vmatpush1.msra.mxu0 0.0
      %1912 = vmatprep.subr.mxu0 0.0
      %1913 = vmatpush1.msra.mxu0 0.0
      %1914 = vmatprep.subr.mxu0 0.0
      %1915 = vmatpush1.msra.mxu0 0.0
      %1916 = vmatprep.subr.mxu0 0.0
      %1917 = vmatpush1.msra.mxu0 0.0
      %1918 = vmatprep.subr.mxu0 0.0
      %1919 = vmatpush1.msra.mxu0 0.0
      %1920 = vmatprep.subr.mxu0 0.0
      %1921 = vmatpush1.msra.mxu0 0.0
      %1922 = vmatprep.subr.mxu0 0.0
      %1923 = vmatpush1.msra.mxu0 0.0
      %1924 = vmatprep.subr.mxu0 0.0
      %1925 = vmatpush1.msra.mxu0 0.0
      %1926 = vmatprep.subr.mxu0 0.0
      %1927 = vmatpush1.msra.mxu0 0.0
      %1928 = vmatprep.subr.mxu0 0.0
      %1929 = vmatpush1.msra.mxu0 0.0
      %1930 = vmatprep.subr.mxu0 0.0
      %1931 = vmatpush1.msra.mxu0 0.0
      %1932 = vmatprep.subr.mxu0 0.0
      %1933 = vmatpush1.msra.mxu0 0.0
      %1934 = vmatprep.subr.mxu0 0.0
      %1935 = vmatpush1.msra.mxu0 0.0
      %1936 = vmatprep.subr.mxu0 0.0
      %1937 = vmatpush1.msra.mxu0 0.0
      %1938 = vmatprep.subr.mxu0 0.0
      %1939 = vmatpush1.msra.mxu0 0.0
      %1940 = vmatprep.subr.mxu0 0.0
      %1941 = vmatpush1.msra.mxu0 0.0
      %1942 = vmatprep.subr.mxu0 0.0
      %1943 = vmatpush1.msra.mxu0 0.0
      %1944 = vmatprep.subr.mxu0 0.0
      %1945 = vmatpush1.msra.mxu0 0.0
      %1946 = vmatprep.subr.mxu0 0.0
      %1947 = vmatpush1.msra.mxu0 0.0
      %1948 = vmatprep.subr.mxu0 0.0
      %1949 = vmatpush1.msra.mxu0 0.0
      %1950 = vmatprep.subr.mxu0 0.0
      %1951 = vmatpush1.msra.mxu0 0.0
      %1952 = vmatprep.subr.mxu0 0.0
      %1953 = vmatpush1.msra.mxu0 0.0
      %1954 = vmatprep.subr.mxu0 0.0
      %1955 = vmatpush1.msra.mxu0 0.0
      %1956 = vmatprep.subr.mxu0 0.0
      %1957 = vmatpush1.msra.mxu0 0.0
      %1958 = vmatprep.subr.mxu0 0.0
      %1959 = vmatpush1.msra.mxu0 0.0
      %1960 = vmatprep.subr.mxu0 0.0
      %1961 = vmatpush1.msra.mxu0 0.0
      %1962 = vmatprep.subr.mxu0 0.0
      %1963 = vmatpush1.msra.mxu0 0.0
      %1964 = vmatprep.subr.mxu0 0.0
      %1965 = vmatpush1.msra.mxu0 0.0
      %1966 = vmatprep.subr.mxu0 0.0
      %1967 = vmatpush1.msra.mxu0 0.0
      %1968 = vmatprep.mubr.f32.mxu0 0.0
      %1969 = vmatmul.mubr.f32.gmra.mrb[0].mxu0 %v1896
      %v1970 = vpop.f32.mrb[0].mxu0
      %v1971 = vadd.f32 0.0, %v1970
      %v1972 = vpop.f32.mrb[0].mxu0
      %v1973 = vadd.f32 0.0, %v1972
      %1974 = vdwg.mxu0
      %1975 = vmatprep.subr.mxu0 0.0
      %1976 = vmatpush1.msra.mxu0 %v1902
      %1977 = vmatprep.subr.mxu0 0.0
      %1978 = vmatpush1.msra.mxu0 0.0
      %1979 = vmatprep.subr.mxu0 0.0
      %1980 = vmatpush1.msra.mxu0 0.0
      %1981 = vmatprep.subr.mxu0 0.0
      %1982 = vmatpush1.msra.mxu0 0.0
      %1983 = vmatprep.subr.mxu0 0.0
      %1984 = vmatpush1.msra.mxu0 0.0
      %1985 = vmatprep.subr.mxu0 0.0
      %1986 = vmatpush1.msra.mxu0 0.0
      %1987 = vmatprep.subr.mxu0 0.0
      %1988 = vmatpush1.msra.mxu0 0.0
      %1989 = vmatprep.subr.mxu0 0.0
      %1990 = vmatpush1.msra.mxu0 0.0
      %1991 = vmatprep.subr.mxu0 0.0
      %1992 = vmatpush1.msra.mxu0 0.0
      %1993 = vmatprep.subr.mxu0 0.0
      %1994 = vmatpush1.msra.mxu0 0.0
      %1995 = vmatprep.subr.mxu0 0.0
      %1996 = vmatpush1.msra.mxu0 0.0
      %1997 = vmatprep.subr.mxu0 0.0
      %1998 = vmatpush1.msra.mxu0 0.0
      %1999 = vmatprep.subr.mxu0 0.0
      %2000 = vmatpush1.msra.mxu0 0.0
      %2001 = vmatprep.subr.mxu0 0.0
      %2002 = vmatpush1.msra.mxu0 0.0
      %2003 = vmatprep.subr.mxu0 0.0
      %2004 = vmatpush1.msra.mxu0 0.0
      %2005 = vmatprep.subr.mxu0 0.0
      %2006 = vmatpush1.msra.mxu0 0.0
      %2007 = vmatprep.subr.mxu0 0.0
      %2008 = vmatpush1.msra.mxu0 0.0
      %2009 = vmatprep.subr.mxu0 0.0
      %2010 = vmatpush1.msra.mxu0 0.0
      %2011 = vmatprep.subr.mxu0 0.0
      %2012 = vmatpush1.msra.mxu0 0.0
      %2013 = vmatprep.subr.mxu0 0.0
      %2014 = vmatpush1.msra.mxu0 0.0
      %2015 = vmatprep.subr.mxu0 0.0
      %2016 = vmatpush1.msra.mxu0 0.0
      %2017 = vmatprep.subr.mxu0 0.0
      %2018 = vmatpush1.msra.mxu0 0.0
      %2019 = vmatprep.subr.mxu0 0.0
      %2020 = vmatpush1.msra.mxu0 0.0
      %2021 = vmatprep.subr.mxu0 0.0
      %2022 = vmatpush1.msra.mxu0 0.0
      %2023 = vmatprep.subr.mxu0 0.0
      %2024 = vmatpush1.msra.mxu0 0.0
      %2025 = vmatprep.subr.mxu0 0.0
      %2026 = vmatpush1.msra.mxu0 0.0
      %2027 = vmatprep.subr.mxu0 0.0
      %2028 = vmatpush1.msra.mxu0 0.0
      %2029 = vmatprep.subr.mxu0 0.0
      %2030 = vmatpush1.msra.mxu0 0.0
      %2031 = vmatprep.subr.mxu0 0.0
      %2032 = vmatpush1.msra.mxu0 0.0
      %2033 = vmatprep.subr.mxu0 0.0
      %2034 = vmatpush1.msra.mxu0 0.0
      %2035 = vmatprep.subr.mxu0 0.0
      %2036 = vmatpush1.msra.mxu0 0.0
      %2037 = vmatprep.subr.mxu0 0.0
      %2038 = vmatpush1.msra.mxu0 0.0
      %2039 = vmatprep.mubr.f32.mxu0 0.0
      %2040 = vmatmul.mubr.f32.gmra.mrb[0].mxu0 %v1896
      %v2041 = vpop.f32.mrb[0].mxu0
      %v2042 = vadd.f32 0.0, %v2041
      %v2043 = vpop.f32.mrb[0].mxu0
      %2044 = vdwg.mxu0
      %v2045 = vadd.f32 %v1887, %v1971
      %v2046 = vadd.f32 %v1887, %v1973
      %v2047 = vadd.f32 %v1887, %v2042
      %v2048 = vld [vmem:[#allocation2] sm:$0xff]
      %v2049 = vld [vmem:[#allocation2 + $0x8] sm:$0xf]
      %s2050 = scalar_lea.vmem %s4, 4
      %v2051 = vld [vmem:[%s2050] sm:$0x7]
      %v2054 = vcombine.high %v2048, %v2048
      %2055 = vrot.lane.b32.xlu0 %v2048, 127
      %v2056 = vpop.permute.xlu0 %2055
      %2057 = vrot.lane.b32.xlu0 %v2054, 127
      %v2058 = vpop.permute.xlu0 %2057
      %2059 = vrot.lane.b32.xlu0 %v2049, 127
      %v2060 = vpop.permute.xlu0 %2059
      %v2061 = vsel %vm486, %v2056, %v2058
      %v2062 = vsel %vm486, %v2058, %v2060
      %v2064 = vsel %vm318, %v2051, 0
      %v2066 = vsel %vm322, %v2061, 0
      %v2068 = vsel %vm322, %v2062, 0
      %v2070 = vsel %vm322, %v2060, 0
      %2072 = vmatprep.subr.mxu0 %v2068
      %2073 = vmatpush1.msra.mxu0 %v2066
      %2074 = vmatprep.subr.mxu0 0.0
      %2075 = vmatpush1.msra.mxu0 0.0
      %2076 = vmatprep.subr.mxu0 0.0
      %2077 = vmatpush1.msra.mxu0 0.0
      %2078 = vmatprep.subr.mxu0 0.0
      %2079 = vmatpush1.msra.mxu0 0.0
      %2080 = vmatprep.subr.mxu0 0.0
      %2081 = vmatpush1.msra.mxu0 0.0
      %2082 = vmatprep.subr.mxu0 0.0
      %2083 = vmatpush1.msra.mxu0 0.0
      %2084 = vmatprep.subr.mxu0 0.0
      %2085 = vmatpush1.msra.mxu0 0.0
      %2086 = vmatprep.subr.mxu0 0.0
      %2087 = vmatpush1.msra.mxu0 0.0
      %2088 = vmatprep.subr.mxu0 0.0
      %2089 = vmatpush1.msra.mxu0 0.0
      %2090 = vmatprep.subr.mxu0 0.0
      %2091 = vmatpush1.msra.mxu0 0.0
      %2092 = vmatprep.subr.mxu0 0.0
      %2093 = vmatpush1.msra.mxu0 0.0
      %2094 = vmatprep.subr.mxu0 0.0
      %2095 = vmatpush1.msra.mxu0 0.0
      %2096 = vmatprep.subr.mxu0 0.0
      %2097 = vmatpush1.msra.mxu0 0.0
      %2098 = vmatprep.subr.mxu0 0.0
      %2099 = vmatpush1.msra.mxu0 0.0
      %2100 = vmatprep.subr.mxu0 0.0
      %2101 = vmatpush1.msra.mxu0 0.0
      %2102 = vmatprep.subr.mxu0 0.0
      %2103 = vmatpush1.msra.mxu0 0.0
      %2104 = vmatprep.subr.mxu0 0.0
      %2105 = vmatpush1.msra.mxu0 0.0
      %2106 = vmatprep.subr.mxu0 0.0
      %2107 = vmatpush1.msra.mxu0 0.0
      %2108 = vmatprep.subr.mxu0 0.0
      %2109 = vmatpush1.msra.mxu0 0.0
      %2110 = vmatprep.subr.mxu0 0.0
      %2111 = vmatpush1.msra.mxu0 0.0
      %2112 = vmatprep.subr.mxu0 0.0
      %2113 = vmatpush1.msra.mxu0 0.0
      %2114 = vmatprep.subr.mxu0 0.0
      %2115 = vmatpush1.msra.mxu0 0.0
      %2116 = vmatprep.subr.mxu0 0.0
      %2117 = vmatpush1.msra.mxu0 0.0
      %2118 = vmatprep.subr.mxu0 0.0
      %2119 = vmatpush1.msra.mxu0 0.0
      %2120 = vmatprep.subr.mxu0 0.0
      %2121 = vmatpush1.msra.mxu0 0.0
      %2122 = vmatprep.subr.mxu0 0.0
      %2123 = vmatpush1.msra.mxu0 0.0
      %2124 = vmatprep.subr.mxu0 0.0
      %2125 = vmatpush1.msra.mxu0 0.0
      %2126 = vmatprep.subr.mxu0 0.0
      %2127 = vmatpush1.msra.mxu0 0.0
      %2128 = vmatprep.subr.mxu0 0.0
      %2129 = vmatpush1.msra.mxu0 0.0
      %2130 = vmatprep.subr.mxu0 0.0
      %2131 = vmatpush1.msra.mxu0 0.0
      %2132 = vmatprep.subr.mxu0 0.0
      %2133 = vmatpush1.msra.mxu0 0.0
      %2134 = vmatprep.subr.mxu0 0.0
      %2135 = vmatpush1.msra.mxu0 0.0
      %2136 = vmatprep.mubr.f32.mxu0 0.0
      %2137 = vmatmul.mubr.f32.gmra.mrb[0].mxu0 %v2064
      %v2138 = vpop.f32.mrb[0].mxu0
      %v2139 = vadd.f32 0.0, %v2138
      %v2140 = vpop.f32.mrb[0].mxu0
      %v2141 = vadd.f32 0.0, %v2140
      %2142 = vdwg.mxu0
      %2143 = vmatprep.subr.mxu0 0.0
      %2144 = vmatpush1.msra.mxu0 %v2070
      %2145 = vmatprep.subr.mxu0 0.0
      %2146 = vmatpush1.msra.mxu0 0.0
      %2147 = vmatprep.subr.mxu0 0.0
      %2148 = vmatpush1.msra.mxu0 0.0
      %2149 = vmatprep.subr.mxu0 0.0
      %2150 = vmatpush1.msra.mxu0 0.0
      %2151 = vmatprep.subr.mxu0 0.0
      %2152 = vmatpush1.msra.mxu0 0.0
      %2153 = vmatprep.subr.mxu0 0.0
      %2154 = vmatpush1.msra.mxu0 0.0
      %2155 = vmatprep.subr.mxu0 0.0
      %2156 = vmatpush1.msra.mxu0 0.0
      %2157 = vmatprep.subr.mxu0 0.0
      %2158 = vmatpush1.msra.mxu0 0.0
      %2159 = vmatprep.subr.mxu0 0.0
      %2160 = vmatpush1.msra.mxu0 0.0
      %2161 = vmatprep.subr.mxu0 0.0
      %2162 = vmatpush1.msra.mxu0 0.0
      %2163 = vmatprep.subr.mxu0 0.0
      %2164 = vmatpush1.msra.mxu0 0.0
      %2165 = vmatprep.subr.mxu0 0.0
      %2166 = vmatpush1.msra.mxu0 0.0
      %2167 = vmatprep.subr.mxu0 0.0
      %2168 = vmatpush1.msra.mxu0 0.0
      %2169 = vmatprep.subr.mxu0 0.0
      %2170 = vmatpush1.msra.mxu0 0.0
      %2171 = vmatprep.subr.mxu0 0.0
      %2172 = vmatpush1.msra.mxu0 0.0
      %2173 = vmatprep.subr.mxu0 0.0
      %2174 = vmatpush1.msra.mxu0 0.0
      %2175 = vmatprep.subr.mxu0 0.0
      %2176 = vmatpush1.msra.mxu0 0.0
      %2177 = vmatprep.subr.mxu0 0.0
      %2178 = vmatpush1.msra.mxu0 0.0
      %2179 = vmatprep.subr.mxu0 0.0
      %2180 = vmatpush1.msra.mxu0 0.0
      %2181 = vmatprep.subr.mxu0 0.0
      %2182 = vmatpush1.msra.mxu0 0.0
      %2183 = vmatprep.subr.mxu0 0.0
      %2184 = vmatpush1.msra.mxu0 0.0
      %2185 = vmatprep.subr.mxu0 0.0
      %2186 = vmatpush1.msra.mxu0 0.0
      %2187 = vmatprep.subr.mxu0 0.0
      %2188 = vmatpush1.msra.mxu0 0.0
      %2189 = vmatprep.subr.mxu0 0.0
      %2190 = vmatpush1.msra.mxu0 0.0
      %2191 = vmatprep.subr.mxu0 0.0
      %2192 = vmatpush1.msra.mxu0 0.0
      %2193 = vmatprep.subr.mxu0 0.0
      %2194 = vmatpush1.msra.mxu0 0.0
      %2195 = vmatprep.subr.mxu0 0.0
      %2196 = vmatpush1.msra.mxu0 0.0
      %2197 = vmatprep.subr.mxu0 0.0
      %2198 = vmatpush1.msra.mxu0 0.0
      %2199 = vmatprep.subr.mxu0 0.0
      %2200 = vmatpush1.msra.mxu0 0.0
      %2201 = vmatprep.subr.mxu0 0.0
      %2202 = vmatpush1.msra.mxu0 0.0
      %2203 = vmatprep.subr.mxu0 0.0
      %2204 = vmatpush1.msra.mxu0 0.0
      %2205 = vmatprep.subr.mxu0 0.0
      %2206 = vmatpush1.msra.mxu0 0.0
      %2207 = vmatprep.mubr.f32.mxu0 0.0
      %2208 = vmatmul.mubr.f32.gmra.mrb[0].mxu0 %v2064
      %v2209 = vpop.f32.mrb[0].mxu0
      %v2210 = vadd.f32 0.0, %v2209
      %v2211 = vpop.f32.mrb[0].mxu0
      %2212 = vdwg.mxu0
      %v2213 = vadd.f32 %v2045, %v2139
      %v2214 = vadd.f32 %v2046, %v2141
      %v2215 = vadd.f32 %v2047, %v2210
      %v2216 = vld [vmem:[#allocation2] sm:$0xff]
      %v2217 = vld [vmem:[#allocation2 + $0x8] sm:$0xf]
      %s2218 = scalar_lea.vmem %s4, 8
      %v2219 = vld [vmem:[%s2218] sm:$0x7]
      %v2222 = vcombine.high %v2216, %v2216
      %2223 = vrot.lane.b32.xlu0 %v2216, 126
      %v2224 = vpop.permute.xlu0 %2223
      %2225 = vrot.lane.b32.xlu0 %v2222, 126
      %v2226 = vpop.permute.xlu0 %2225
      %2227 = vrot.lane.b32.xlu0 %v2217, 126
      %v2228 = vpop.permute.xlu0 %2227
      %v2229 = vsel %vm655, %v2224, %v2226
      %v2230 = vsel %vm655, %v2226, %v2228
      %v2232 = vsel %vm318, %v2219, 0
      %v2234 = vsel %vm322, %v2229, 0
      %v2236 = vsel %vm322, %v2230, 0
      %v2238 = vsel %vm322, %v2228, 0
      %2240 = vmatprep.subr.mxu0 %v2236
      %2241 = vmatpush1.msra.mxu0 %v2234
      %2242 = vmatprep.subr.mxu0 0.0
      %2243 = vmatpush1.msra.mxu0 0.0
      %2244 = vmatprep.subr.mxu0 0.0
      %2245 = vmatpush1.msra.mxu0 0.0
      %2246 = vmatprep.subr.mxu0 0.0
      %2247 = vmatpush1.msra.mxu0 0.0
      %2248 = vmatprep.subr.mxu0 0.0
      %2249 = vmatpush1.msra.mxu0 0.0
      %2250 = vmatprep.subr.mxu0 0.0
      %2251 = vmatpush1.msra.mxu0 0.0
      %2252 = vmatprep.subr.mxu0 0.0
      %2253 = vmatpush1.msra.mxu0 0.0
      %2254 = vmatprep.subr.mxu0 0.0
      %2255 = vmatpush1.msra.mxu0 0.0
      %2256 = vmatprep.subr.mxu0 0.0
      %2257 = vmatpush1.msra.mxu0 0.0
      %2258 = vmatprep.subr.mxu0 0.0
      %2259 = vmatpush1.msra.mxu0 0.0
      %2260 = vmatprep.subr.mxu0 0.0
      %2261 = vmatpush1.msra.mxu0 0.0
      %2262 = vmatprep.subr.mxu0 0.0
      %2263 = vmatpush1.msra.mxu0 0.0
      %2264 = vmatprep.subr.mxu0 0.0
      %2265 = vmatpush1.msra.mxu0 0.0
      %2266 = vmatprep.subr.mxu0 0.0
      %2267 = vmatpush1.msra.mxu0 0.0
      %2268 = vmatprep.subr.mxu0 0.0
      %2269 = vmatpush1.msra.mxu0 0.0
      %2270 = vmatprep.subr.mxu0 0.0
      %2271 = vmatpush1.msra.mxu0 0.0
      %2272 = vmatprep.subr.mxu0 0.0
      %2273 = vmatpush1.msra.mxu0 0.0
      %2274 = vmatprep.subr.mxu0 0.0
      %2275 = vmatpush1.msra.mxu0 0.0
      %2276 = vmatprep.subr.mxu0 0.0
      %2277 = vmatpush1.msra.mxu0 0.0
      %2278 = vmatprep.subr.mxu0 0.0
      %2279 = vmatpush1.msra.mxu0 0.0
      %2280 = vmatprep.subr.mxu0 0.0
      %2281 = vmatpush1.msra.mxu0 0.0
      %2282 = vmatprep.subr.mxu0 0.0
      %2283 = vmatpush1.msra.mxu0 0.0
      %2284 = vmatprep.subr.mxu0 0.0
      %2285 = vmatpush1.msra.mxu0 0.0
      %2286 = vmatprep.subr.mxu0 0.0
      %2287 = vmatpush1.msra.mxu0 0.0
      %2288 = vmatprep.subr.mxu0 0.0
      %2289 = vmatpush1.msra.mxu0 0.0
      %2290 = vmatprep.subr.mxu0 0.0
      %2291 = vmatpush1.msra.mxu0 0.0
      %2292 = vmatprep.subr.mxu0 0.0
      %2293 = vmatpush1.msra.mxu0 0.0
      %2294 = vmatprep.subr.mxu0 0.0
      %2295 = vmatpush1.msra.mxu0 0.0
      %2296 = vmatprep.subr.mxu0 0.0
      %2297 = vmatpush1.msra.mxu0 0.0
      %2298 = vmatprep.subr.mxu0 0.0
      %2299 = vmatpush1.msra.mxu0 0.0
      %2300 = vmatprep.subr.mxu0 0.0
      %2301 = vmatpush1.msra.mxu0 0.0
      %2302 = vmatprep.subr.mxu0 0.0
      %2303 = vmatpush1.msra.mxu0 0.0
      %2304 = vmatprep.mubr.f32.mxu0 0.0
      %2305 = vmatmul.mubr.f32.gmra.mrb[0].mxu0 %v2232
      %v2306 = vpop.f32.mrb[0].mxu0
      %v2307 = vadd.f32 0.0, %v2306
      %v2308 = vpop.f32.mrb[0].mxu0
      %v2309 = vadd.f32 0.0, %v2308
      %2310 = vdwg.mxu0
      %2311 = vmatprep.subr.mxu0 0.0
      %2312 = vmatpush1.msra.mxu0 %v2238
      %2313 = vmatprep.subr.mxu0 0.0
      %2314 = vmatpush1.msra.mxu0 0.0
      %2315 = vmatprep.subr.mxu0 0.0
      %2316 = vmatpush1.msra.mxu0 0.0
      %2317 = vmatprep.subr.mxu0 0.0
      %2318 = vmatpush1.msra.mxu0 0.0
      %2319 = vmatprep.subr.mxu0 0.0
      %2320 = vmatpush1.msra.mxu0 0.0
      %2321 = vmatprep.subr.mxu0 0.0
      %2322 = vmatpush1.msra.mxu0 0.0
      %2323 = vmatprep.subr.mxu0 0.0
      %2324 = vmatpush1.msra.mxu0 0.0
      %2325 = vmatprep.subr.mxu0 0.0
      %2326 = vmatpush1.msra.mxu0 0.0
      %2327 = vmatprep.subr.mxu0 0.0
      %2328 = vmatpush1.msra.mxu0 0.0
      %2329 = vmatprep.subr.mxu0 0.0
      %2330 = vmatpush1.msra.mxu0 0.0
      %2331 = vmatprep.subr.mxu0 0.0
      %2332 = vmatpush1.msra.mxu0 0.0
      %2333 = vmatprep.subr.mxu0 0.0
      %2334 = vmatpush1.msra.mxu0 0.0
      %2335 = vmatprep.subr.mxu0 0.0
      %2336 = vmatpush1.msra.mxu0 0.0
      %2337 = vmatprep.subr.mxu0 0.0
      %2338 = vmatpush1.msra.mxu0 0.0
      %2339 = vmatprep.subr.mxu0 0.0
      %2340 = vmatpush1.msra.mxu0 0.0
      %2341 = vmatprep.subr.mxu0 0.0
      %2342 = vmatpush1.msra.mxu0 0.0
      %2343 = vmatprep.subr.mxu0 0.0
      %2344 = vmatpush1.msra.mxu0 0.0
      %2345 = vmatprep.subr.mxu0 0.0
      %2346 = vmatpush1.msra.mxu0 0.0
      %2347 = vmatprep.subr.mxu0 0.0
      %2348 = vmatpush1.msra.mxu0 0.0
      %2349 = vmatprep.subr.mxu0 0.0
      %2350 = vmatpush1.msra.mxu0 0.0
      %2351 = vmatprep.subr.mxu0 0.0
      %2352 = vmatpush1.msra.mxu0 0.0
      %2353 = vmatprep.subr.mxu0 0.0
      %2354 = vmatpush1.msra.mxu0 0.0
      %2355 = vmatprep.subr.mxu0 0.0
      %2356 = vmatpush1.msra.mxu0 0.0
      %2357 = vmatprep.subr.mxu0 0.0
      %2358 = vmatpush1.msra.mxu0 0.0
      %2359 = vmatprep.subr.mxu0 0.0
      %2360 = vmatpush1.msra.mxu0 0.0
      %2361 = vmatprep.subr.mxu0 0.0
      %2362 = vmatpush1.msra.mxu0 0.0
      %2363 = vmatprep.subr.mxu0 0.0
      %2364 = vmatpush1.msra.mxu0 0.0
      %2365 = vmatprep.subr.mxu0 0.0
      %2366 = vmatpush1.msra.mxu0 0.0
      %2367 = vmatprep.subr.mxu0 0.0
      %2368 = vmatpush1.msra.mxu0 0.0
      %2369 = vmatprep.subr.mxu0 0.0
      %2370 = vmatpush1.msra.mxu0 0.0
      %2371 = vmatprep.subr.mxu0 0.0
      %2372 = vmatpush1.msra.mxu0 0.0
      %2373 = vmatprep.subr.mxu0 0.0
      %2374 = vmatpush1.msra.mxu0 0.0
      %2375 = vmatprep.mubr.f32.mxu0 0.0
      %2376 = vmatmul.mubr.f32.gmra.mrb[0].mxu0 %v2232
      %v2377 = vpop.f32.mrb[0].mxu0
      %v2378 = vadd.f32 0.0, %v2377
      %v2379 = vpop.f32.mrb[0].mxu0
      %2380 = vdwg.mxu0
      %v2381 = vadd.f32 %v2213, %v2307
      %v2382 = vadd.f32 %v2214, %v2309
      %v2383 = vadd.f32 %v2215, %v2378
      %v2384 = vld [vmem:[#allocation2] sm:$0xff]
      %v2385 = vld [vmem:[#allocation2 + $0x8] sm:$0xf]
      %s2386 = scalar_lea.vmem %s4, 12
      %v2387 = vld [vmem:[%s2386] sm:$0x7]
      %v2390 = vcombine.high %v2384, %v2384
      %2391 = vrot.lane.b32.xlu0 %v2384, 110
      %v2392 = vpop.permute.xlu0 %2391
      %2393 = vrot.lane.b32.xlu0 %v2390, 110
      %v2394 = vpop.permute.xlu0 %2393
      %2395 = vrot.lane.b32.xlu0 %v2385, 110
      %v2396 = vpop.permute.xlu0 %2395
      %v2397 = vsel %vm824, %v2392, %v2394
      %v2398 = vsel %vm824, %v2394, %v2396
      %v2400 = vsel %vm318, %v2387, 0
      %v2402 = vsel %vm322, %v2397, 0
      %v2404 = vsel %vm322, %v2398, 0
      %v2406 = vsel %vm322, %v2396, 0
      %2408 = vmatprep.subr.mxu0 %v2404
      %2409 = vmatpush1.msra.mxu0 %v2402
      %2410 = vmatprep.subr.mxu0 0.0
      %2411 = vmatpush1.msra.mxu0 0.0
      %2412 = vmatprep.subr.mxu0 0.0
      %2413 = vmatpush1.msra.mxu0 0.0
      %2414 = vmatprep.subr.mxu0 0.0
      %2415 = vmatpush1.msra.mxu0 0.0
      %2416 = vmatprep.subr.mxu0 0.0
      %2417 = vmatpush1.msra.mxu0 0.0
      %2418 = vmatprep.subr.mxu0 0.0
      %2419 = vmatpush1.msra.mxu0 0.0
      %2420 = vmatprep.subr.mxu0 0.0
      %2421 = vmatpush1.msra.mxu0 0.0
      %2422 = vmatprep.subr.mxu0 0.0
      %2423 = vmatpush1.msra.mxu0 0.0
      %2424 = vmatprep.subr.mxu0 0.0
      %2425 = vmatpush1.msra.mxu0 0.0
      %2426 = vmatprep.subr.mxu0 0.0
      %2427 = vmatpush1.msra.mxu0 0.0
      %2428 = vmatprep.subr.mxu0 0.0
      %2429 = vmatpush1.msra.mxu0 0.0
      %2430 = vmatprep.subr.mxu0 0.0
      %2431 = vmatpush1.msra.mxu0 0.0
      %2432 = vmatprep.subr.mxu0 0.0
      %2433 = vmatpush1.msra.mxu0 0.0
      %2434 = vmatprep.subr.mxu0 0.0
      %2435 = vmatpush1.msra.mxu0 0.0
      %2436 = vmatprep.subr.mxu0 0.0
      %2437 = vmatpush1.msra.mxu0 0.0
      %2438 = vmatprep.subr.mxu0 0.0
      %2439 = vmatpush1.msra.mxu0 0.0
      %2440 = vmatprep.subr.mxu0 0.0
      %2441 = vmatpush1.msra.mxu0 0.0
      %2442 = vmatprep.subr.mxu0 0.0
      %2443 = vmatpush1.msra.mxu0 0.0
      %2444 = vmatprep.subr.mxu0 0.0
      %2445 = vmatpush1.msra.mxu0 0.0
      %2446 = vmatprep.subr.mxu0 0.0
      %2447 = vmatpush1.msra.mxu0 0.0
      %2448 = vmatprep.subr.mxu0 0.0
      %2449 = vmatpush1.msra.mxu0 0.0
      %2450 = vmatprep.subr.mxu0 0.0
      %2451 = vmatpush1.msra.mxu0 0.0
      %2452 = vmatprep.subr.mxu0 0.0
      %2453 = vmatpush1.msra.mxu0 0.0
      %2454 = vmatprep.subr.mxu0 0.0
      %2455 = vmatpush1.msra.mxu0 0.0
      %2456 = vmatprep.subr.mxu0 0.0
      %2457 = vmatpush1.msra.mxu0 0.0
      %2458 = vmatprep.subr.mxu0 0.0
      %2459 = vmatpush1.msra.mxu0 0.0
      %2460 = vmatprep.subr.mxu0 0.0
      %2461 = vmatpush1.msra.mxu0 0.0
      %2462 = vmatprep.subr.mxu0 0.0
      %2463 = vmatpush1.msra.mxu0 0.0
      %2464 = vmatprep.subr.mxu0 0.0
      %2465 = vmatpush1.msra.mxu0 0.0
      %2466 = vmatprep.subr.mxu0 0.0
      %2467 = vmatpush1.msra.mxu0 0.0
      %2468 = vmatprep.subr.mxu0 0.0
      %2469 = vmatpush1.msra.mxu0 0.0
      %2470 = vmatprep.subr.mxu0 0.0
      %2471 = vmatpush1.msra.mxu0 0.0
      %2472 = vmatprep.mubr.f32.mxu0 0.0
      %2473 = vmatmul.mubr.f32.gmra.mrb[0].mxu0 %v2400
      %v2474 = vpop.f32.mrb[0].mxu0
      %v2475 = vadd.f32 0.0, %v2474
      %v2476 = vpop.f32.mrb[0].mxu0
      %v2477 = vadd.f32 0.0, %v2476
      %2478 = vdwg.mxu0
      %2479 = vmatprep.subr.mxu0 0.0
      %2480 = vmatpush1.msra.mxu0 %v2406
      %2481 = vmatprep.subr.mxu0 0.0
      %2482 = vmatpush1.msra.mxu0 0.0
      %2483 = vmatprep.subr.mxu0 0.0
      %2484 = vmatpush1.msra.mxu0 0.0
      %2485 = vmatprep.subr.mxu0 0.0
      %2486 = vmatpush1.msra.mxu0 0.0
      %2487 = vmatprep.subr.mxu0 0.0
      %2488 = vmatpush1.msra.mxu0 0.0
      %2489 = vmatprep.subr.mxu0 0.0
      %2490 = vmatpush1.msra.mxu0 0.0
      %2491 = vmatprep.subr.mxu0 0.0
      %2492 = vmatpush1.msra.mxu0 0.0
      %2493 = vmatprep.subr.mxu0 0.0
      %2494 = vmatpush1.msra.mxu0 0.0
      %2495 = vmatprep.subr.mxu0 0.0
      %2496 = vmatpush1.msra.mxu0 0.0
      %2497 = vmatprep.subr.mxu0 0.0
      %2498 = vmatpush1.msra.mxu0 0.0
      %2499 = vmatprep.subr.mxu0 0.0
      %2500 = vmatpush1.msra.mxu0 0.0
      %2501 = vmatprep.subr.mxu0 0.0
      %2502 = vmatpush1.msra.mxu0 0.0
      %2503 = vmatprep.subr.mxu0 0.0
      %2504 = vmatpush1.msra.mxu0 0.0
      %2505 = vmatprep.subr.mxu0 0.0
      %2506 = vmatpush1.msra.mxu0 0.0
      %2507 = vmatprep.subr.mxu0 0.0
      %2508 = vmatpush1.msra.mxu0 0.0
      %2509 = vmatprep.subr.mxu0 0.0
      %2510 = vmatpush1.msra.mxu0 0.0
      %2511 = vmatprep.subr.mxu0 0.0
      %2512 = vmatpush1.msra.mxu0 0.0
      %2513 = vmatprep.subr.mxu0 0.0
      %2514 = vmatpush1.msra.mxu0 0.0
      %2515 = vmatprep.subr.mxu0 0.0
      %2516 = vmatpush1.msra.mxu0 0.0
      %2517 = vmatprep.subr.mxu0 0.0
      %2518 = vmatpush1.msra.mxu0 0.0
      %2519 = vmatprep.subr.mxu0 0.0
      %2520 = vmatpush1.msra.mxu0 0.0
      %2521 = vmatprep.subr.mxu0 0.0
      %2522 = vmatpush1.msra.mxu0 0.0
      %2523 = vmatprep.subr.mxu0 0.0
      %2524 = vmatpush1.msra.mxu0 0.0
      %2525 = vmatprep.subr.mxu0 0.0
      %2526 = vmatpush1.msra.mxu0 0.0
      %2527 = vmatprep.subr.mxu0 0.0
      %2528 = vmatpush1.msra.mxu0 0.0
      %2529 = vmatprep.subr.mxu0 0.0
      %2530 = vmatpush1.msra.mxu0 0.0
      %2531 = vmatprep.subr.mxu0 0.0
      %2532 = vmatpush1.msra.mxu0 0.0
      %2533 = vmatprep.subr.mxu0 0.0
      %2534 = vmatpush1.msra.mxu0 0.0
      %2535 = vmatprep.subr.mxu0 0.0
      %2536 = vmatpush1.msra.mxu0 0.0
      %2537 = vmatprep.subr.mxu0 0.0
      %2538 = vmatpush1.msra.mxu0 0.0
      %2539 = vmatprep.subr.mxu0 0.0
      %2540 = vmatpush1.msra.mxu0 0.0
      %2541 = vmatprep.subr.mxu0 0.0
      %2542 = vmatpush1.msra.mxu0 0.0
      %2543 = vmatprep.mubr.f32.mxu0 0.0
      %2544 = vmatmul.mubr.f32.gmra.mrb[0].mxu0 %v2400
      %v2545 = vpop.f32.mrb[0].mxu0
      %v2546 = vadd.f32 0.0, %v2545
      %v2547 = vpop.f32.mrb[0].mxu0
      %2548 = vdwg.mxu0
      %v2549 = vadd.f32 %v2381, %v2475
      %v2550 = vadd.f32 %v2382, %v2477
      %v2551 = vadd.f32 %v2383, %v2546
      %v2552 = vld [vmem:[#allocation2] sm:$0xff]
      %v2553 = vld [vmem:[#allocation2 + $0x8] sm:$0xf]
      %s2554 = scalar_lea.vmem %s4, 16
      %v2555 = vld [vmem:[%s2554] sm:$0x7]
      %v2558 = vcombine.high %v2552, %v2552
      %2559 = vrot.lane.b32.xlu0 %v2552, 109
      %v2560 = vpop.permute.xlu0 %2559
      %2561 = vrot.lane.b32.xlu0 %v2558, 109
      %v2562 = vpop.permute.xlu0 %2561
      %2563 = vrot.lane.b32.xlu0 %v2553, 109
      %v2564 = vpop.permute.xlu0 %2563
      %v2565 = vsel %vm993, %v2560, %v2562
      %v2566 = vsel %vm993, %v2562, %v2564
      %v2568 = vsel %vm318, %v2555, 0
      %v2570 = vsel %vm322, %v2565, 0
      %v2572 = vsel %vm322, %v2566, 0
      %v2574 = vsel %vm322, %v2564, 0
      %2576 = vmatprep.subr.mxu0 %v2572
      %2577 = vmatpush1.msra.mxu0 %v2570
      %2578 = vmatprep.subr.mxu0 0.0
      %2579 = vmatpush1.msra.mxu0 0.0
      %2580 = vmatprep.subr.mxu0 0.0
      %2581 = vmatpush1.msra.mxu0 0.0
      %2582 = vmatprep.subr.mxu0 0.0
      %2583 = vmatpush1.msra.mxu0 0.0
      %2584 = vmatprep.subr.mxu0 0.0
      %2585 = vmatpush1.msra.mxu0 0.0
      %2586 = vmatprep.subr.mxu0 0.0
      %2587 = vmatpush1.msra.mxu0 0.0
      %2588 = vmatprep.subr.mxu0 0.0
      %2589 = vmatpush1.msra.mxu0 0.0
      %2590 = vmatprep.subr.mxu0 0.0
      %2591 = vmatpush1.msra.mxu0 0.0
      %2592 = vmatprep.subr.mxu0 0.0
      %2593 = vmatpush1.msra.mxu0 0.0
      %2594 = vmatprep.subr.mxu0 0.0
      %2595 = vmatpush1.msra.mxu0 0.0
      %2596 = vmatprep.subr.mxu0 0.0
      %2597 = vmatpush1.msra.mxu0 0.0
      %2598 = vmatprep.subr.mxu0 0.0
      %2599 = vmatpush1.msra.mxu0 0.0
      %2600 = vmatprep.subr.mxu0 0.0
      %2601 = vmatpush1.msra.mxu0 0.0
      %2602 = vmatprep.subr.mxu0 0.0
      %2603 = vmatpush1.msra.mxu0 0.0
      %2604 = vmatprep.subr.mxu0 0.0
      %2605 = vmatpush1.msra.mxu0 0.0
      %2606 = vmatprep.subr.mxu0 0.0
      %2607 = vmatpush1.msra.mxu0 0.0
      %2608 = vmatprep.subr.mxu0 0.0
      %2609 = vmatpush1.msra.mxu0 0.0
      %2610 = vmatprep.subr.mxu0 0.0
      %2611 = vmatpush1.msra.mxu0 0.0
      %2612 = vmatprep.subr.mxu0 0.0
      %2613 = vmatpush1.msra.mxu0 0.0
      %2614 = vmatprep.subr.mxu0 0.0
      %2615 = vmatpush1.msra.mxu0 0.0
      %2616 = vmatprep.subr.mxu0 0.0
      %2617 = vmatpush1.msra.mxu0 0.0
      %2618 = vmatprep.subr.mxu0 0.0
      %2619 = vmatpush1.msra.mxu0 0.0
      %2620 = vmatprep.subr.mxu0 0.0
      %2621 = vmatpush1.msra.mxu0 0.0
      %2622 = vmatprep.subr.mxu0 0.0
      %2623 = vmatpush1.msra.mxu0 0.0
      %2624 = vmatprep.subr.mxu0 0.0
      %2625 = vmatpush1.msra.mxu0 0.0
      %2626 = vmatprep.subr.mxu0 0.0
      %2627 = vmatpush1.msra.mxu0 0.0
      %2628 = vmatprep.subr.mxu0 0.0
      %2629 = vmatpush1.msra.mxu0 0.0
      %2630 = vmatprep.subr.mxu0 0.0
      %2631 = vmatpush1.msra.mxu0 0.0
      %2632 = vmatprep.subr.mxu0 0.0
      %2633 = vmatpush1.msra.mxu0 0.0
      %2634 = vmatprep.subr.mxu0 0.0
      %2635 = vmatpush1.msra.mxu0 0.0
      %2636 = vmatprep.subr.mxu0 0.0
      %2637 = vmatpush1.msra.mxu0 0.0
      %2638 = vmatprep.subr.mxu0 0.0
      %2639 = vmatpush1.msra.mxu0 0.0
      %2640 = vmatprep.mubr.f32.mxu0 0.0
      %2641 = vmatmul.mubr.f32.gmra.mrb[0].mxu0 %v2568
      %v2642 = vpop.f32.mrb[0].mxu0
      %v2643 = vadd.f32 0.0, %v2642
      %v2644 = vpop.f32.mrb[0].mxu0
      %v2645 = vadd.f32 0.0, %v2644
      %2646 = vdwg.mxu0
      %2647 = vmatprep.subr.mxu0 0.0
      %2648 = vmatpush1.msra.mxu0 %v2574
      %2649 = vmatprep.subr.mxu0 0.0
      %2650 = vmatpush1.msra.mxu0 0.0
      %2651 = vmatprep.subr.mxu0 0.0
      %2652 = vmatpush1.msra.mxu0 0.0
      %2653 = vmatprep.subr.mxu0 0.0
      %2654 = vmatpush1.msra.mxu0 0.0
      %2655 = vmatprep.subr.mxu0 0.0
      %2656 = vmatpush1.msra.mxu0 0.0
      %2657 = vmatprep.subr.mxu0 0.0
      %2658 = vmatpush1.msra.mxu0 0.0
      %2659 = vmatprep.subr.mxu0 0.0
      %2660 = vmatpush1.msra.mxu0 0.0
      %2661 = vmatprep.subr.mxu0 0.0
      %2662 = vmatpush1.msra.mxu0 0.0
      %2663 = vmatprep.subr.mxu0 0.0
      %2664 = vmatpush1.msra.mxu0 0.0
      %2665 = vmatprep.subr.mxu0 0.0
      %2666 = vmatpush1.msra.mxu0 0.0
      %2667 = vmatprep.subr.mxu0 0.0
      %2668 = vmatpush1.msra.mxu0 0.0
      %2669 = vmatprep.subr.mxu0 0.0
      %2670 = vmatpush1.msra.mxu0 0.0
      %2671 = vmatprep.subr.mxu0 0.0
      %2672 = vmatpush1.msra.mxu0 0.0
      %2673 = vmatprep.subr.mxu0 0.0
      %2674 = vmatpush1.msra.mxu0 0.0
      %2675 = vmatprep.subr.mxu0 0.0
      %2676 = vmatpush1.msra.mxu0 0.0
      %2677 = vmatprep.subr.mxu0 0.0
      %2678 = vmatpush1.msra.mxu0 0.0
      %2679 = vmatprep.subr.mxu0 0.0
      %2680 = vmatpush1.msra.mxu0 0.0
      %2681 = vmatprep.subr.mxu0 0.0
      %2682 = vmatpush1.msra.mxu0 0.0
      %2683 = vmatprep.subr.mxu0 0.0
      %2684 = vmatpush1.msra.mxu0 0.0
      %2685 = vmatprep.subr.mxu0 0.0
      %2686 = vmatpush1.msra.mxu0 0.0
      %2687 = vmatprep.subr.mxu0 0.0
      %2688 = vmatpush1.msra.mxu0 0.0
      %2689 = vmatprep.subr.mxu0 0.0
      %2690 = vmatpush1.msra.mxu0 0.0
      %2691 = vmatprep.subr.mxu0 0.0
      %2692 = vmatpush1.msra.mxu0 0.0
      %2693 = vmatprep.subr.mxu0 0.0
      %2694 = vmatpush1.msra.mxu0 0.0
      %2695 = vmatprep.subr.mxu0 0.0
      %2696 = vmatpush1.msra.mxu0 0.0
      %2697 = vmatprep.subr.mxu0 0.0
      %2698 = vmatpush1.msra.mxu0 0.0
      %2699 = vmatprep.subr.mxu0 0.0
      %2700 = vmatpush1.msra.mxu0 0.0
      %2701 = vmatprep.subr.mxu0 0.0
      %2702 = vmatpush1.msra.mxu0 0.0
      %2703 = vmatprep.subr.mxu0 0.0
      %2704 = vmatpush1.msra.mxu0 0.0
      %2705 = vmatprep.subr.mxu0 0.0
      %2706 = vmatpush1.msra.mxu0 0.0
      %2707 = vmatprep.subr.mxu0 0.0
      %2708 = vmatpush1.msra.mxu0 0.0
      %2709 = vmatprep.subr.mxu0 0.0
      %2710 = vmatpush1.msra.mxu0 0.0
      %2711 = vmatprep.mubr.f32.mxu0 0.0
      %2712 = vmatmul.mubr.f32.gmra.mrb[0].mxu0 %v2568
      %v2713 = vpop.f32.mrb[0].mxu0
      %v2714 = vadd.f32 0.0, %v2713
      %v2715 = vpop.f32.mrb[0].mxu0
      %2716 = vdwg.mxu0
      %v2717 = vadd.f32 %v2549, %v2643
      %v2718 = vadd.f32 %v2550, %v2645
      %v2719 = vadd.f32 %v2551, %v2714
      %v2720 = vld [vmem:[#allocation2] sm:$0xff]
      %v2721 = vld [vmem:[#allocation2 + $0x8] sm:$0xf]
      %s2722 = scalar_lea.vmem %s4, 20
      %v2723 = vld [vmem:[%s2722] sm:$0x7]
      %v2726 = vcombine.high %v2720, %v2720
      %2727 = vrot.lane.b32.xlu0 %v2720, 108
      %v2728 = vpop.permute.xlu0 %2727
      %2729 = vrot.lane.b32.xlu0 %v2726, 108
      %v2730 = vpop.permute.xlu0 %2729
      %2731 = vrot.lane.b32.xlu0 %v2721, 108
      %v2732 = vpop.permute.xlu0 %2731
      %v2733 = vsel %vm1162, %v2728, %v2730
      %v2734 = vsel %vm1162, %v2730, %v2732
      %v2736 = vsel %vm318, %v2723, 0
      %v2738 = vsel %vm322, %v2733, 0
      %v2740 = vsel %vm322, %v2734, 0
      %v2742 = vsel %vm322, %v2732, 0
      %2744 = vmatprep.subr.mxu0 %v2740
      %2745 = vmatpush1.msra.mxu0 %v2738
      %2746 = vmatprep.subr.mxu0 0.0
      %2747 = vmatpush1.msra.mxu0 0.0
      %2748 = vmatprep.subr.mxu0 0.0
      %2749 = vmatpush1.msra.mxu0 0.0
      %2750 = vmatprep.subr.mxu0 0.0
      %2751 = vmatpush1.msra.mxu0 0.0
      %2752 = vmatprep.subr.mxu0 0.0
      %2753 = vmatpush1.msra.mxu0 0.0
      %2754 = vmatprep.subr.mxu0 0.0
      %2755 = vmatpush1.msra.mxu0 0.0
      %2756 = vmatprep.subr.mxu0 0.0
      %2757 = vmatpush1.msra.mxu0 0.0
      %2758 = vmatprep.subr.mxu0 0.0
      %2759 = vmatpush1.msra.mxu0 0.0
      %2760 = vmatprep.subr.mxu0 0.0
      %2761 = vmatpush1.msra.mxu0 0.0
      %2762 = vmatprep.subr.mxu0 0.0
      %2763 = vmatpush1.msra.mxu0 0.0
      %2764 = vmatprep.subr.mxu0 0.0
      %2765 = vmatpush1.msra.mxu0 0.0
      %2766 = vmatprep.subr.mxu0 0.0
      %2767 = vmatpush1.msra.mxu0 0.0
      %2768 = vmatprep.subr.mxu0 0.0
      %2769 = vmatpush1.msra.mxu0 0.0
      %2770 = vmatprep.subr.mxu0 0.0
      %2771 = vmatpush1.msra.mxu0 0.0
      %2772 = vmatprep.subr.mxu0 0.0
      %2773 = vmatpush1.msra.mxu0 0.0
      %2774 = vmatprep.subr.mxu0 0.0
      %2775 = vmatpush1.msra.mxu0 0.0
      %2776 = vmatprep.subr.mxu0 0.0
      %2777 = vmatpush1.msra.mxu0 0.0
      %2778 = vmatprep.subr.mxu0 0.0
      %2779 = vmatpush1.msra.mxu0 0.0
      %2780 = vmatprep.subr.mxu0 0.0
      %2781 = vmatpush1.msra.mxu0 0.0
      %2782 = vmatprep.subr.mxu0 0.0
      %2783 = vmatpush1.msra.mxu0 0.0
      %2784 = vmatprep.subr.mxu0 0.0
      %2785 = vmatpush1.msra.mxu0 0.0
      %2786 = vmatprep.subr.mxu0 0.0
      %2787 = vmatpush1.msra.mxu0 0.0
      %2788 = vmatprep.subr.mxu0 0.0
      %2789 = vmatpush1.msra.mxu0 0.0
      %2790 = vmatprep.subr.mxu0 0.0
      %2791 = vmatpush1.msra.mxu0 0.0
      %2792 = vmatprep.subr.mxu0 0.0
      %2793 = vmatpush1.msra.mxu0 0.0
      %2794 = vmatprep.subr.mxu0 0.0
      %2795 = vmatpush1.msra.mxu0 0.0
      %2796 = vmatprep.subr.mxu0 0.0
      %2797 = vmatpush1.msra.mxu0 0.0
      %2798 = vmatprep.subr.mxu0 0.0
      %2799 = vmatpush1.msra.mxu0 0.0
      %2800 = vmatprep.subr.mxu0 0.0
      %2801 = vmatpush1.msra.mxu0 0.0
      %2802 = vmatprep.subr.mxu0 0.0
      %2803 = vmatpush1.msra.mxu0 0.0
      %2804 = vmatprep.subr.mxu0 0.0
      %2805 = vmatpush1.msra.mxu0 0.0
      %2806 = vmatprep.subr.mxu0 0.0
      %2807 = vmatpush1.msra.mxu0 0.0
      %2808 = vmatprep.mubr.f32.mxu0 0.0
      %2809 = vmatmul.mubr.f32.gmra.mrb[0].mxu0 %v2736
      %v2810 = vpop.f32.mrb[0].mxu0
      %v2811 = vadd.f32 0.0, %v2810
      %v2812 = vpop.f32.mrb[0].mxu0
      %v2813 = vadd.f32 0.0, %v2812
      %2814 = vdwg.mxu0
      %2815 = vmatprep.subr.mxu0 0.0
      %2816 = vmatpush1.msra.mxu0 %v2742
      %2817 = vmatprep.subr.mxu0 0.0
      %2818 = vmatpush1.msra.mxu0 0.0
      %2819 = vmatprep.subr.mxu0 0.0
      %2820 = vmatpush1.msra.mxu0 0.0
      %2821 = vmatprep.subr.mxu0 0.0
      %2822 = vmatpush1.msra.mxu0 0.0
      %2823 = vmatprep.subr.mxu0 0.0
      %2824 = vmatpush1.msra.mxu0 0.0
      %2825 = vmatprep.subr.mxu0 0.0
      %2826 = vmatpush1.msra.mxu0 0.0
      %2827 = vmatprep.subr.mxu0 0.0
      %2828 = vmatpush1.msra.mxu0 0.0
      %2829 = vmatprep.subr.mxu0 0.0
      %2830 = vmatpush1.msra.mxu0 0.0
      %2831 = vmatprep.subr.mxu0 0.0
      %2832 = vmatpush1.msra.mxu0 0.0
      %2833 = vmatprep.subr.mxu0 0.0
      %2834 = vmatpush1.msra.mxu0 0.0
      %2835 = vmatprep.subr.mxu0 0.0
      %2836 = vmatpush1.msra.mxu0 0.0
      %2837 = vmatprep.subr.mxu0 0.0
      %2838 = vmatpush1.msra.mxu0 0.0
      %2839 = vmatprep.subr.mxu0 0.0
      %2840 = vmatpush1.msra.mxu0 0.0
      %2841 = vmatprep.subr.mxu0 0.0
      %2842 = vmatpush1.msra.mxu0 0.0
      %2843 = vmatprep.subr.mxu0 0.0
      %2844 = vmatpush1.msra.mxu0 0.0
      %2845 = vmatprep.subr.mxu0 0.0
      %2846 = vmatpush1.msra.mxu0 0.0
      %2847 = vmatprep.subr.mxu0 0.0
      %2848 = vmatpush1.msra.mxu0 0.0
      %2849 = vmatprep.subr.mxu0 0.0
      %2850 = vmatpush1.msra.mxu0 0.0
      %2851 = vmatprep.subr.mxu0 0.0
      %2852 = vmatpush1.msra.mxu0 0.0
      %2853 = vmatprep.subr.mxu0 0.0
      %2854 = vmatpush1.msra.mxu0 0.0
      %2855 = vmatprep.subr.mxu0 0.0
      %2856 = vmatpush1.msra.mxu0 0.0
      %2857 = vmatprep.subr.mxu0 0.0
      %2858 = vmatpush1.msra.mxu0 0.0
      %2859 = vmatprep.subr.mxu0 0.0
      %2860 = vmatpush1.msra.mxu0 0.0
      %2861 = vmatprep.subr.mxu0 0.0
      %2862 = vmatpush1.msra.mxu0 0.0
      %2863 = vmatprep.subr.mxu0 0.0
      %2864 = vmatpush1.msra.mxu0 0.0
      %2865 = vmatprep.subr.mxu0 0.0
      %2866 = vmatpush1.msra.mxu0 0.0
      %2867 = vmatprep.subr.mxu0 0.0
      %2868 = vmatpush1.msra.mxu0 0.0
      %2869 = vmatprep.subr.mxu0 0.0
      %2870 = vmatpush1.msra.mxu0 0.0
      %2871 = vmatprep.subr.mxu0 0.0
      %2872 = vmatpush1.msra.mxu0 0.0
      %2873 = vmatprep.subr.mxu0 0.0
      %2874 = vmatpush1.msra.mxu0 0.0
      %2875 = vmatprep.subr.mxu0 0.0
      %2876 = vmatpush1.msra.mxu0 0.0
      %2877 = vmatprep.subr.mxu0 0.0
      %2878 = vmatpush1.msra.mxu0 0.0
      %2879 = vmatprep.mubr.f32.mxu0 0.0
      %2880 = vmatmul.mubr.f32.gmra.mrb[0].mxu0 %v2736
      %v2881 = vpop.f32.mrb[0].mxu0
      %v2882 = vadd.f32 0.0, %v2881
      %v2883 = vpop.f32.mrb[0].mxu0
      %2884 = vdwg.mxu0
      %v2885 = vadd.f32 %v2717, %v2811
      %v2886 = vadd.f32 %v2718, %v2813
      %v2887 = vadd.f32 %v2719, %v2882
      %v2888 = vld [vmem:[#allocation2] sm:$0xff]
      %v2889 = vld [vmem:[#allocation2 + $0x8] sm:$0xf]
      %s2890 = scalar_lea.vmem %s4, 24
      %v2891 = vld [vmem:[%s2890] sm:$0x7]
      %v2894 = vcombine.high %v2888, %v2888
      %2895 = vrot.lane.b32.xlu0 %v2888, 92
      %v2896 = vpop.permute.xlu0 %2895
      %2897 = vrot.lane.b32.xlu0 %v2894, 92
      %v2898 = vpop.permute.xlu0 %2897
      %2899 = vrot.lane.b32.xlu0 %v2889, 92
      %v2900 = vpop.permute.xlu0 %2899
      %v2901 = vsel %vm1331, %v2896, %v2898
      %v2902 = vsel %vm1331, %v2898, %v2900
      %v2904 = vsel %vm318, %v2891, 0
      %v2906 = vsel %vm322, %v2901, 0
      %v2908 = vsel %vm322, %v2902, 0
      %v2910 = vsel %vm322, %v2900, 0
      %2912 = vmatprep.subr.mxu0 %v2908
      %2913 = vmatpush1.msra.mxu0 %v2906
      %2914 = vmatprep.subr.mxu0 0.0
      %2915 = vmatpush1.msra.mxu0 0.0
      %2916 = vmatprep.subr.mxu0 0.0
      %2917 = vmatpush1.msra.mxu0 0.0
      %2918 = vmatprep.subr.mxu0 0.0
      %2919 = vmatpush1.msra.mxu0 0.0
      %2920 = vmatprep.subr.mxu0 0.0
      %2921 = vmatpush1.msra.mxu0 0.0
      %2922 = vmatprep.subr.mxu0 0.0
      %2923 = vmatpush1.msra.mxu0 0.0
      %2924 = vmatprep.subr.mxu0 0.0
      %2925 = vmatpush1.msra.mxu0 0.0
      %2926 = vmatprep.subr.mxu0 0.0
      %2927 = vmatpush1.msra.mxu0 0.0
      %2928 = vmatprep.subr.mxu0 0.0
      %2929 = vmatpush1.msra.mxu0 0.0
      %2930 = vmatprep.subr.mxu0 0.0
      %2931 = vmatpush1.msra.mxu0 0.0
      %2932 = vmatprep.subr.mxu0 0.0
      %2933 = vmatpush1.msra.mxu0 0.0
      %2934 = vmatprep.subr.mxu0 0.0
      %2935 = vmatpush1.msra.mxu0 0.0
      %2936 = vmatprep.subr.mxu0 0.0
      %2937 = vmatpush1.msra.mxu0 0.0
      %2938 = vmatprep.subr.mxu0 0.0
      %2939 = vmatpush1.msra.mxu0 0.0
      %2940 = vmatprep.subr.mxu0 0.0
      %2941 = vmatpush1.msra.mxu0 0.0
      %2942 = vmatprep.subr.mxu0 0.0
      %2943 = vmatpush1.msra.mxu0 0.0
      %2944 = vmatprep.subr.mxu0 0.0
      %2945 = vmatpush1.msra.mxu0 0.0
      %2946 = vmatprep.subr.mxu0 0.0
      %2947 = vmatpush1.msra.mxu0 0.0
      %2948 = vmatprep.subr.mxu0 0.0
      %2949 = vmatpush1.msra.mxu0 0.0
      %2950 = vmatprep.subr.mxu0 0.0
      %2951 = vmatpush1.msra.mxu0 0.0
      %2952 = vmatprep.subr.mxu0 0.0
      %2953 = vmatpush1.msra.mxu0 0.0
      %2954 = vmatprep.subr.mxu0 0.0
      %2955 = vmatpush1.msra.mxu0 0.0
      %2956 = vmatprep.subr.mxu0 0.0
      %2957 = vmatpush1.msra.mxu0 0.0
      %2958 = vmatprep.subr.mxu0 0.0
      %2959 = vmatpush1.msra.mxu0 0.0
      %2960 = vmatprep.subr.mxu0 0.0
      %2961 = vmatpush1.msra.mxu0 0.0
      %2962 = vmatprep.subr.mxu0 0.0
      %2963 = vmatpush1.msra.mxu0 0.0
      %2964 = vmatprep.subr.mxu0 0.0
      %2965 = vmatpush1.msra.mxu0 0.0
      %2966 = vmatprep.subr.mxu0 0.0
      %2967 = vmatpush1.msra.mxu0 0.0
      %2968 = vmatprep.subr.mxu0 0.0
      %2969 = vmatpush1.msra.mxu0 0.0
      %2970 = vmatprep.subr.mxu0 0.0
      %2971 = vmatpush1.msra.mxu0 0.0
      %2972 = vmatprep.subr.mxu0 0.0
      %2973 = vmatpush1.msra.mxu0 0.0
      %2974 = vmatprep.subr.mxu0 0.0
      %2975 = vmatpush1.msra.mxu0 0.0
      %2976 = vmatprep.mubr.f32.mxu0 0.0
      %2977 = vmatmul.mubr.f32.gmra.mrb[0].mxu0 %v2904
      %v2978 = vpop.f32.mrb[0].mxu0
      %v2979 = vadd.f32 0.0, %v2978
      %v2980 = vpop.f32.mrb[0].mxu0
      %v2981 = vadd.f32 0.0, %v2980
      %2982 = vdwg.mxu0
      %2983 = vmatprep.subr.mxu0 0.0
      %2984 = vmatpush1.msra.mxu0 %v2910
      %2985 = vmatprep.subr.mxu0 0.0
      %2986 = vmatpush1.msra.mxu0 0.0
      %2987 = vmatprep.subr.mxu0 0.0
      %2988 = vmatpush1.msra.mxu0 0.0
      %2989 = vmatprep.subr.mxu0 0.0
      %2990 = vmatpush1.msra.mxu0 0.0
      %2991 = vmatprep.subr.mxu0 0.0
      %2992 = vmatpush1.msra.mxu0 0.0
      %2993 = vmatprep.subr.mxu0 0.0
      %2994 = vmatpush1.msra.mxu0 0.0
      %2995 = vmatprep.subr.mxu0 0.0
      %2996 = vmatpush1.msra.mxu0 0.0
      %2997 = vmatprep.subr.mxu0 0.0
      %2998 = vmatpush1.msra.mxu0 0.0
      %2999 = vmatprep.subr.mxu0 0.0
      %3000 = vmatpush1.msra.mxu0 0.0
      %3001 = vmatprep.subr.mxu0 0.0
      %3002 = vmatpush1.msra.mxu0 0.0
      %3003 = vmatprep.subr.mxu0 0.0
      %3004 = vmatpush1.msra.mxu0 0.0
      %3005 = vmatprep.subr.mxu0 0.0
      %3006 = vmatpush1.msra.mxu0 0.0
      %3007 = vmatprep.subr.mxu0 0.0
      %3008 = vmatpush1.msra.mxu0 0.0
      %3009 = vmatprep.subr.mxu0 0.0
      %3010 = vmatpush1.msra.mxu0 0.0
      %3011 = vmatprep.subr.mxu0 0.0
      %3012 = vmatpush1.msra.mxu0 0.0
      %3013 = vmatprep.subr.mxu0 0.0
      %3014 = vmatpush1.msra.mxu0 0.0
      %3015 = vmatprep.subr.mxu0 0.0
      %3016 = vmatpush1.msra.mxu0 0.0
      %3017 = vmatprep.subr.mxu0 0.0
      %3018 = vmatpush1.msra.mxu0 0.0
      %3019 = vmatprep.subr.mxu0 0.0
      %3020 = vmatpush1.msra.mxu0 0.0
      %3021 = vmatprep.subr.mxu0 0.0
      %3022 = vmatpush1.msra.mxu0 0.0
      %3023 = vmatprep.subr.mxu0 0.0
      %3024 = vmatpush1.msra.mxu0 0.0
      %3025 = vmatprep.subr.mxu0 0.0
      %3026 = vmatpush1.msra.mxu0 0.0
      %3027 = vmatprep.subr.mxu0 0.0
      %3028 = vmatpush1.msra.mxu0 0.0
      %3029 = vmatprep.subr.mxu0 0.0
      %3030 = vmatpush1.msra.mxu0 0.0
      %3031 = vmatprep.subr.mxu0 0.0
      %3032 = vmatpush1.msra.mxu0 0.0
      %3033 = vmatprep.subr.mxu0 0.0
      %3034 = vmatpush1.msra.mxu0 0.0
      %3035 = vmatprep.subr.mxu0 0.0
      %3036 = vmatpush1.msra.mxu0 0.0
      %3037 = vmatprep.subr.mxu0 0.0
      %3038 = vmatpush1.msra.mxu0 0.0
      %3039 = vmatprep.subr.mxu0 0.0
      %3040 = vmatpush1.msra.mxu0 0.0
      %3041 = vmatprep.subr.mxu0 0.0
      %3042 = vmatpush1.msra.mxu0 0.0
      %3043 = vmatprep.subr.mxu0 0.0
      %3044 = vmatpush1.msra.mxu0 0.0
      %3045 = vmatprep.subr.mxu0 0.0
      %3046 = vmatpush1.msra.mxu0 0.0
      %3047 = vmatprep.mubr.f32.mxu0 0.0
      %3048 = vmatmul.mubr.f32.gmra.mrb[0].mxu0 %v2904
      %v3049 = vpop.f32.mrb[0].mxu0
      %v3050 = vadd.f32 0.0, %v3049
      %v3051 = vpop.f32.mrb[0].mxu0
      %3052 = vdwg.mxu0
      %v3053 = vadd.f32 %v2885, %v2979
      %v3054 = vadd.f32 %v2886, %v2981
      %v3055 = vadd.f32 %v2887, %v3050
      %v3056 = vld [vmem:[#allocation2] sm:$0xff]
      %v3057 = vld [vmem:[#allocation2 + $0x8] sm:$0xf]
      %s3058 = scalar_lea.vmem %s4, 28
      %v3059 = vld [vmem:[%s3058] sm:$0x7]
      %v3062 = vcombine.high %v3056, %v3056
      %3063 = vrot.lane.b32.xlu0 %v3056, 91
      %v3064 = vpop.permute.xlu0 %3063
      %3065 = vrot.lane.b32.xlu0 %v3062, 91
      %v3066 = vpop.permute.xlu0 %3065
      %3067 = vrot.lane.b32.xlu0 %v3057, 91
      %v3068 = vpop.permute.xlu0 %3067
      %v3069 = vsel %vm1500, %v3064, %v3066
      %v3070 = vsel %vm1500, %v3066, %v3068
      %v3072 = vsel %vm318, %v3059, 0
      %v3074 = vsel %vm322, %v3069, 0
      %v3076 = vsel %vm322, %v3070, 0
      %v3078 = vsel %vm322, %v3068, 0
      %3080 = vmatprep.subr.mxu0 %v3076
      %3081 = vmatpush1.msra.mxu0 %v3074
      %3082 = vmatprep.subr.mxu0 0.0
      %3083 = vmatpush1.msra.mxu0 0.0
      %3084 = vmatprep.subr.mxu0 0.0
      %3085 = vmatpush1.msra.mxu0 0.0
      %3086 = vmatprep.subr.mxu0 0.0
      %3087 = vmatpush1.msra.mxu0 0.0
      %3088 = vmatprep.subr.mxu0 0.0
      %3089 = vmatpush1.msra.mxu0 0.0
      %3090 = vmatprep.subr.mxu0 0.0
      %3091 = vmatpush1.msra.mxu0 0.0
      %3092 = vmatprep.subr.mxu0 0.0
      %3093 = vmatpush1.msra.mxu0 0.0
      %3094 = vmatprep.subr.mxu0 0.0
      %3095 = vmatpush1.msra.mxu0 0.0
      %3096 = vmatprep.subr.mxu0 0.0
      %3097 = vmatpush1.msra.mxu0 0.0
      %3098 = vmatprep.subr.mxu0 0.0
      %3099 = vmatpush1.msra.mxu0 0.0
      %3100 = vmatprep.subr.mxu0 0.0
      %3101 = vmatpush1.msra.mxu0 0.0
      %3102 = vmatprep.subr.mxu0 0.0
      %3103 = vmatpush1.msra.mxu0 0.0
      %3104 = vmatprep.subr.mxu0 0.0
      %3105 = vmatpush1.msra.mxu0 0.0
      %3106 = vmatprep.subr.mxu0 0.0
      %3107 = vmatpush1.msra.mxu0 0.0
      %3108 = vmatprep.subr.mxu0 0.0
      %3109 = vmatpush1.msra.mxu0 0.0
      %3110 = vmatprep.subr.mxu0 0.0
      %3111 = vmatpush1.msra.mxu0 0.0
      %3112 = vmatprep.subr.mxu0 0.0
      %3113 = vmatpush1.msra.mxu0 0.0
      %3114 = vmatprep.subr.mxu0 0.0
      %3115 = vmatpush1.msra.mxu0 0.0
      %3116 = vmatprep.subr.mxu0 0.0
      %3117 = vmatpush1.msra.mxu0 0.0
      %3118 = vmatprep.subr.mxu0 0.0
      %3119 = vmatpush1.msra.mxu0 0.0
      %3120 = vmatprep.subr.mxu0 0.0
      %3121 = vmatpush1.msra.mxu0 0.0
      %3122 = vmatprep.subr.mxu0 0.0
      %3123 = vmatpush1.msra.mxu0 0.0
      %3124 = vmatprep.subr.mxu0 0.0
      %3125 = vmatpush1.msra.mxu0 0.0
      %3126 = vmatprep.subr.mxu0 0.0
      %3127 = vmatpush1.msra.mxu0 0.0
      %3128 = vmatprep.subr.mxu0 0.0
      %3129 = vmatpush1.msra.mxu0 0.0
      %3130 = vmatprep.subr.mxu0 0.0
      %3131 = vmatpush1.msra.mxu0 0.0
      %3132 = vmatprep.subr.mxu0 0.0
      %3133 = vmatpush1.msra.mxu0 0.0
      %3134 = vmatprep.subr.mxu0 0.0
      %3135 = vmatpush1.msra.mxu0 0.0
      %3136 = vmatprep.subr.mxu0 0.0
      %3137 = vmatpush1.msra.mxu0 0.0
      %3138 = vmatprep.subr.mxu0 0.0
      %3139 = vmatpush1.msra.mxu0 0.0
      %3140 = vmatprep.subr.mxu0 0.0
      %3141 = vmatpush1.msra.mxu0 0.0
      %3142 = vmatprep.subr.mxu0 0.0
      %3143 = vmatpush1.msra.mxu0 0.0
      %3144 = vmatprep.mubr.f32.mxu0 0.0
      %3145 = vmatmul.mubr.f32.gmra.mrb[0].mxu0 %v3072
      %v3146 = vpop.f32.mrb[0].mxu0
      %v3147 = vadd.f32 0.0, %v3146
      %v3148 = vpop.f32.mrb[0].mxu0
      %v3149 = vadd.f32 0.0, %v3148
      %3150 = vdwg.mxu0
      %3151 = vmatprep.subr.mxu0 0.0
      %3152 = vmatpush1.msra.mxu0 %v3078
      %3153 = vmatprep.subr.mxu0 0.0
      %3154 = vmatpush1.msra.mxu0 0.0
      %3155 = vmatprep.subr.mxu0 0.0
      %3156 = vmatpush1.msra.mxu0 0.0
      %3157 = vmatprep.subr.mxu0 0.0
      %3158 = vmatpush1.msra.mxu0 0.0
      %3159 = vmatprep.subr.mxu0 0.0
      %3160 = vmatpush1.msra.mxu0 0.0
      %3161 = vmatprep.subr.mxu0 0.0
      %3162 = vmatpush1.msra.mxu0 0.0
      %3163 = vmatprep.subr.mxu0 0.0
      %3164 = vmatpush1.msra.mxu0 0.0
      %3165 = vmatprep.subr.mxu0 0.0
      %3166 = vmatpush1.msra.mxu0 0.0
      %3167 = vmatprep.subr.mxu0 0.0
      %3168 = vmatpush1.msra.mxu0 0.0
      %3169 = vmatprep.subr.mxu0 0.0
      %3170 = vmatpush1.msra.mxu0 0.0
      %3171 = vmatprep.subr.mxu0 0.0
      %3172 = vmatpush1.msra.mxu0 0.0
      %3173 = vmatprep.subr.mxu0 0.0
      %3174 = vmatpush1.msra.mxu0 0.0
      %3175 = vmatprep.subr.mxu0 0.0
      %3176 = vmatpush1.msra.mxu0 0.0
      %3177 = vmatprep.subr.mxu0 0.0
      %3178 = vmatpush1.msra.mxu0 0.0
      %3179 = vmatprep.subr.mxu0 0.0
      %3180 = vmatpush1.msra.mxu0 0.0
      %3181 = vmatprep.subr.mxu0 0.0
      %3182 = vmatpush1.msra.mxu0 0.0
      %3183 = vmatprep.subr.mxu0 0.0
      %3184 = vmatpush1.msra.mxu0 0.0
      %3185 = vmatprep.subr.mxu0 0.0
      %3186 = vmatpush1.msra.mxu0 0.0
      %3187 = vmatprep.subr.mxu0 0.0
      %3188 = vmatpush1.msra.mxu0 0.0
      %3189 = vmatprep.subr.mxu0 0.0
      %3190 = vmatpush1.msra.mxu0 0.0
      %3191 = vmatprep.subr.mxu0 0.0
      %3192 = vmatpush1.msra.mxu0 0.0
      %3193 = vmatprep.subr.mxu0 0.0
      %3194 = vmatpush1.msra.mxu0 0.0
      %3195 = vmatprep.subr.mxu0 0.0
      %3196 = vmatpush1.msra.mxu0 0.0
      %3197 = vmatprep.subr.mxu0 0.0
      %3198 = vmatpush1.msra.mxu0 0.0
      %3199 = vmatprep.subr.mxu0 0.0
      %3200 = vmatpush1.msra.mxu0 0.0
      %3201 = vmatprep.subr.mxu0 0.0
      %3202 = vmatpush1.msra.mxu0 0.0
      %3203 = vmatprep.subr.mxu0 0.0
      %3204 = vmatpush1.msra.mxu0 0.0
      %3205 = vmatprep.subr.mxu0 0.0
      %3206 = vmatpush1.msra.mxu0 0.0
      %3207 = vmatprep.subr.mxu0 0.0
      %3208 = vmatpush1.msra.mxu0 0.0
      %3209 = vmatprep.subr.mxu0 0.0
      %3210 = vmatpush1.msra.mxu0 0.0
      %3211 = vmatprep.subr.mxu0 0.0
      %3212 = vmatpush1.msra.mxu0 0.0
      %3213 = vmatprep.subr.mxu0 0.0
      %3214 = vmatpush1.msra.mxu0 0.0
      %3215 = vmatprep.mubr.f32.mxu0 0.0
      %3216 = vmatmul.mubr.f32.gmra.mrb[0].mxu0 %v3072
      %v3217 = vpop.f32.mrb[0].mxu0
      %v3218 = vadd.f32 0.0, %v3217
      %v3219 = vpop.f32.mrb[0].mxu0
      %3220 = vdwg.mxu0
      %v3221 = vadd.f32 %v3053, %v3147
      %v3222 = vadd.f32 %v3054, %v3149
      %v3223 = vadd.f32 %v3055, %v3218
      %v3224 = vld [vmem:[#allocation2] sm:$0xff]
      %v3225 = vld [vmem:[#allocation2 + $0x8] sm:$0xf]
      %s3226 = scalar_lea.vmem %s4, 32
      %v3227 = vld [vmem:[%s3226] sm:$0x7]
      %v3230 = vcombine.high %v3224, %v3224
      %3231 = vrot.lane.b32.xlu0 %v3224, 90
      %v3232 = vpop.permute.xlu0 %3231
      %3233 = vrot.lane.b32.xlu0 %v3230, 90
      %v3234 = vpop.permute.xlu0 %3233
      %3235 = vrot.lane.b32.xlu0 %v3225, 90
      %v3236 = vpop.permute.xlu0 %3235
      %v3237 = vsel %vm1669, %v3232, %v3234
      %v3238 = vsel %vm1669, %v3234, %v3236
      %v3240 = vsel %vm318, %v3227, 0
      %v3242 = vsel %vm322, %v3237, 0
      %v3244 = vsel %vm322, %v3238, 0
      %v3246 = vsel %vm322, %v3236, 0
      %3248 = vmatprep.subr.mxu0 %v3244
      %3249 = vmatpush1.msra.mxu0 %v3242
      %3250 = vmatprep.subr.mxu0 0.0
      %3251 = vmatpush1.msra.mxu0 0.0
      %3252 = vmatprep.subr.mxu0 0.0
      %3253 = vmatpush1.msra.mxu0 0.0
      %3254 = vmatprep.subr.mxu0 0.0
      %3255 = vmatpush1.msra.mxu0 0.0
      %3256 = vmatprep.subr.mxu0 0.0
      %3257 = vmatpush1.msra.mxu0 0.0
      %3258 = vmatprep.subr.mxu0 0.0
      %3259 = vmatpush1.msra.mxu0 0.0
      %3260 = vmatprep.subr.mxu0 0.0
      %3261 = vmatpush1.msra.mxu0 0.0
      %3262 = vmatprep.subr.mxu0 0.0
      %3263 = vmatpush1.msra.mxu0 0.0
      %3264 = vmatprep.subr.mxu0 0.0
      %3265 = vmatpush1.msra.mxu0 0.0
      %3266 = vmatprep.subr.mxu0 0.0
      %3267 = vmatpush1.msra.mxu0 0.0
      %3268 = vmatprep.subr.mxu0 0.0
      %3269 = vmatpush1.msra.mxu0 0.0
      %3270 = vmatprep.subr.mxu0 0.0
      %3271 = vmatpush1.msra.mxu0 0.0
      %3272 = vmatprep.subr.mxu0 0.0
      %3273 = vmatpush1.msra.mxu0 0.0
      %3274 = vmatprep.subr.mxu0 0.0
      %3275 = vmatpush1.msra.mxu0 0.0
      %3276 = vmatprep.subr.mxu0 0.0
      %3277 = vmatpush1.msra.mxu0 0.0
      %3278 = vmatprep.subr.mxu0 0.0
      %3279 = vmatpush1.msra.mxu0 0.0
      %3280 = vmatprep.subr.mxu0 0.0
      %3281 = vmatpush1.msra.mxu0 0.0
      %3282 = vmatprep.subr.mxu0 0.0
      %3283 = vmatpush1.msra.mxu0 0.0
      %3284 = vmatprep.subr.mxu0 0.0
      %3285 = vmatpush1.msra.mxu0 0.0
      %3286 = vmatprep.subr.mxu0 0.0
      %3287 = vmatpush1.msra.mxu0 0.0
      %3288 = vmatprep.subr.mxu0 0.0
      %3289 = vmatpush1.msra.mxu0 0.0
      %3290 = vmatprep.subr.mxu0 0.0
      %3291 = vmatpush1.msra.mxu0 0.0
      %3292 = vmatprep.subr.mxu0 0.0
      %3293 = vmatpush1.msra.mxu0 0.0
      %3294 = vmatprep.subr.mxu0 0.0
      %3295 = vmatpush1.msra.mxu0 0.0
      %3296 = vmatprep.subr.mxu0 0.0
      %3297 = vmatpush1.msra.mxu0 0.0
      %3298 = vmatprep.subr.mxu0 0.0
      %3299 = vmatpush1.msra.mxu0 0.0
      %3300 = vmatprep.subr.mxu0 0.0
      %3301 = vmatpush1.msra.mxu0 0.0
      %3302 = vmatprep.subr.mxu0 0.0
      %3303 = vmatpush1.msra.mxu0 0.0
      %3304 = vmatprep.subr.mxu0 0.0
      %3305 = vmatpush1.msra.mxu0 0.0
      %3306 = vmatprep.subr.mxu0 0.0
      %3307 = vmatpush1.msra.mxu0 0.0
      %3308 = vmatprep.subr.mxu0 0.0
      %3309 = vmatpush1.msra.mxu0 0.0
      %3310 = vmatprep.subr.mxu0 0.0
      %3311 = vmatpush1.msra.mxu0 0.0
      %3312 = vmatprep.mubr.f32.mxu0 0.0
      %3313 = vmatmul.mubr.f32.gmra.mrb[0].mxu0 %v3240
      %v3314 = vpop.f32.mrb[0].mxu0
      %v3315 = vadd.f32 0.0, %v3314
      %v3316 = vpop.f32.mrb[0].mxu0
      %v3317 = vadd.f32 0.0, %v3316
      %3318 = vdwg.mxu0
      %3319 = vmatprep.subr.mxu0 0.0
      %3320 = vmatpush1.msra.mxu0 %v3246
      %3321 = vmatprep.subr.mxu0 0.0
      %3322 = vmatpush1.msra.mxu0 0.0
      %3323 = vmatprep.subr.mxu0 0.0
      %3324 = vmatpush1.msra.mxu0 0.0
      %3325 = vmatprep.subr.mxu0 0.0
      %3326 = vmatpush1.msra.mxu0 0.0
      %3327 = vmatprep.subr.mxu0 0.0
      %3328 = vmatpush1.msra.mxu0 0.0
      %3329 = vmatprep.subr.mxu0 0.0
      %3330 = vmatpush1.msra.mxu0 0.0
      %3331 = vmatprep.subr.mxu0 0.0
      %3332 = vmatpush1.msra.mxu0 0.0
      %3333 = vmatprep.subr.mxu0 0.0
      %3334 = vmatpush1.msra.mxu0 0.0
      %3335 = vmatprep.subr.mxu0 0.0
      %3336 = vmatpush1.msra.mxu0 0.0
      %3337 = vmatprep.subr.mxu0 0.0
      %3338 = vmatpush1.msra.mxu0 0.0
      %3339 = vmatprep.subr.mxu0 0.0
      %3340 = vmatpush1.msra.mxu0 0.0
      %3341 = vmatprep.subr.mxu0 0.0
      %3342 = vmatpush1.msra.mxu0 0.0
      %3343 = vmatprep.subr.mxu0 0.0
      %3344 = vmatpush1.msra.mxu0 0.0
      %3345 = vmatprep.subr.mxu0 0.0
      %3346 = vmatpush1.msra.mxu0 0.0
      %3347 = vmatprep.subr.mxu0 0.0
      %3348 = vmatpush1.msra.mxu0 0.0
      %3349 = vmatprep.subr.mxu0 0.0
      %3350 = vmatpush1.msra.mxu0 0.0
      %3351 = vmatprep.subr.mxu0 0.0
      %3352 = vmatpush1.msra.mxu0 0.0
      %3353 = vmatprep.subr.mxu0 0.0
      %3354 = vmatpush1.msra.mxu0 0.0
      %3355 = vmatprep.subr.mxu0 0.0
      %3356 = vmatpush1.msra.mxu0 0.0
      %3357 = vmatprep.subr.mxu0 0.0
      %3358 = vmatpush1.msra.mxu0 0.0
      %3359 = vmatprep.subr.mxu0 0.0
      %3360 = vmatpush1.msra.mxu0 0.0
      %3361 = vmatprep.subr.mxu0 0.0
      %3362 = vmatpush1.msra.mxu0 0.0
      %3363 = vmatprep.subr.mxu0 0.0
      %3364 = vmatpush1.msra.mxu0 0.0
      %3365 = vmatprep.subr.mxu0 0.0
      %3366 = vmatpush1.msra.mxu0 0.0
      %3367 = vmatprep.subr.mxu0 0.0
      %3368 = vmatpush1.msra.mxu0 0.0
      %3369 = vmatprep.subr.mxu0 0.0
      %3370 = vmatpush1.msra.mxu0 0.0
      %3371 = vmatprep.subr.mxu0 0.0
      %3372 = vmatpush1.msra.mxu0 0.0
      %3373 = vmatprep.subr.mxu0 0.0
      %3374 = vmatpush1.msra.mxu0 0.0
      %3375 = vmatprep.subr.mxu0 0.0
      %3376 = vmatpush1.msra.mxu0 0.0
      %3377 = vmatprep.subr.mxu0 0.0
      %3378 = vmatpush1.msra.mxu0 0.0
      %3379 = vmatprep.subr.mxu0 0.0
      %3380 = vmatpush1.msra.mxu0 0.0
      %3381 = vmatprep.subr.mxu0 0.0
      %3382 = vmatpush1.msra.mxu0 0.0
      %3383 = vmatprep.mubr.f32.mxu0 0.0
      %3384 = vmatmul.mubr.f32.gmra.mrb[0].mxu0 %v3240
      %v3385 = vpop.f32.mrb[0].mxu0
      %v3386 = vadd.f32 0.0, %v3385
      %v3387 = vpop.f32.mrb[0].mxu0
      %3388 = vdwg.mxu0
      %v3389 = vadd.f32 %v3221, %v3315
      %v3390 = vadd.f32 %v3222, %v3317
      %v3391 = vadd.f32 %v3223, %v3386
      %vm3392 = vcmp.ge.f32.partialorder %v3389, 0.0
      %vm3393 = vcmp.ge.f32.partialorder %v3390, 0.0
      %vm3394 = vcmp.ge.f32.partialorder %v3391, 0.0
      %v3395 = vld [vmem:[%s6] sm:$0x7]
      %3397 = vset.pattern.permute.xlu0 0
      %3398 = vperm.xlu0 %3397, %v3395
      %v3399 = vpop.permute.xlu0 %3398
      %v3401 = vmul.f32 %v3399, %v3389
      %v3402 = vmul.f32 %v3399, %v3390
      %v3403 = vmul.f32 %v3399, %v3391
      %v3404 = vsel %vm3392, %v3389, %v3401
      %v3405 = vsel %vm3393, %v3390, %v3402
      %v3406 = vsel %vm3394, %v3391, %v3403
      %v3409 = vcombine.low %v3404, %v3405
      %3411 = vst [vmem:[%s305] sm:$0x77] %v3409
      %vm3412 = vcmask 256000
      %3413 = vst.msk [vmem:[%s305 + $0x8] sm:$0x7] %vm3412, %v3406
      %p3414 = scmp.lt.s32.totalorder %s19, 1
      %s3415 = scalar_select %p3414, %s19, 1
      %s3416 = smul.addr %s3415, 3
      %s3417 = smul.addr %s3416, 4
      %s3418 = scalar_lea.vmem %s8, %s3417
      // Predicated region
      $region53: #{tpu_custom_call.1} parent=51 // pred_check
        %p3419 = pneg %p210
      $region54: #{tpu_custom_call.1} parent=51 // pred_check_branch
        %3421 = sbr.rel (%p3419) target = $region56
      $region55: #{tpu_custom_call.1} parent=51 // pred_region
        _
      $region56: #{tpu_custom_call.1} parent=51 // pred_fallthru
        _
    $region52: #{tpu_custom_call.1} parent=5 // pred_fallthru
      _
    %p3422 = scmp.le.s32.totalorder 2, %s14
    // Predicated region
    $region57: #{tpu_custom_call.1} parent=5 // pred_check
      %p3423 = pneg %p3422
    $region58: #{tpu_custom_call.1} parent=5 // pred_check_branch
      %3425 = sbr.rel (%p3423) target = $region60
    $region59: #{tpu_custom_call.1} parent=5 // pred_region
      %s3426 = ssub.s32 %s14, 2
      // Predicated region
      $region61: #{tpu_custom_call.1} parent=59 // pred_check
        %p3427 = pneg %p216
      $region62: #{tpu_custom_call.1} parent=59 // pred_check_branch
        %3429 = sbr.rel (%p3427) target = $region64
      $region63: #{tpu_custom_call.1} parent=59 // pred_region
        %p3430 = scmp.lt.s32.totalorder %s20, 1
        %s3431 = scalar_select %p3430, %s20, 1
        %s3432 = smul.addr %s3431, 3
        %s3433 = smul.addr %s3432, 4
        %s3434 = scalar_lea.vmem %s8, %s3433
      $region64: #{tpu_custom_call.1} parent=59 // pred_fallthru
        _
    $region60: #{tpu_custom_call.1} parent=5 // pred_fallthru
      _
  $region6: #{tpu_custom_call.1} parent=0 // loop_footer
    %s18 = sadd.s32 1, %s14
  $region7: #{tpu_custom_call.1} parent=0 // loop_footer_branch
    %13 = sbr.rel target = $region3
  $region8: #{tpu_custom_call.1} parent=0 // loop_exit
    _

</llo_original>
